<compile_context>
chip_gen: v5e
topology: v5e:2x2
jax: 0.10.0
libtpu: 0.0.40
codegen_flags: <defaults>
</compile_context>

<pallas_src>
import functools
import numpy as np

import jax
import jax.numpy as jnp
from jax.experimental import pallas as pl
from jax.experimental.pallas import tpu as pltpu

RGB_MEAN = (0.4488, 0.4371, 0.404)  # rgb_range = 1, rgb_std = (1, 1, 1)


def _round_up(x, m):
    return (x + m - 1) // m * m


# ---------------------------------------------------------------------------
# Bicubic interpolation matrix matching
# F.interpolate(mode='bicubic', align_corners=False) (A=-0.75, half-pixel,
# clamped border indices).
# ---------------------------------------------------------------------------
def _bicubic_matrix(in_size, out_size, a=-0.75):
    def cc1(x):  # |x| <= 1
        return ((a + 2.0) * x - (a + 3.0)) * x * x + 1.0

    def cc2(x):  # 1 < |x| <= 2
        return ((a * x - 5.0 * a) * x + 8.0 * a) * x - 4.0 * a

    scale = in_size / out_size
    m = np.zeros((out_size, in_size), dtype=np.float64)
    for o in range(out_size):
        src = (o + 0.5) * scale - 0.5
        i0 = int(np.floor(src))
        t = src - i0
        coeffs = (cc2(t + 1.0), cc1(t), cc1(1.0 - t), cc2(2.0 - t))
        for k in range(4):
            idx = min(max(i0 - 1 + k, 0), in_size - 1)
            m[o, idx] += coeffs[k]
    return m.astype(np.float32)


# ---------------------------------------------------------------------------
# Static geometry of the padded / flattened layouts.
# ---------------------------------------------------------------------------
def _geometry(hin, win, scale):
    hout, wout = hin * scale, win * scale
    hp, wp = hout + 2, wout + 2              # 1-px zero halo
    lflat = hp * wp                          # flat padded length
    lspan = _round_up(lflat, 128)            # computed/stored span (aligned)
    e0 = 2                                   # extra zero rows on top  (>=(wp+1)/wp)
    e1 = -(-(lspan - lflat + wp + 1) // wp)  # extra zero rows on the bottom
    hx = e0 + hp + e1                        # kernel-1 output rows per channel
    pad0 = _round_up(wp + 1, 128)            # scratch leading pad (aligned)
    pad1 = _round_up(wp + 1 + (lspan - lflat), 128)
    lbuf = pad0 + lspan + pad1               # scratch row length
    return dict(hout=hout, wout=wout, hp=hp, wp=wp, lflat=lflat, lspan=lspan,
                e0=e0, e1=e1, hx=hx, pad0=pad0, lbuf=lbuf)


# ---------------------------------------------------------------------------
# Kernel 1: bicubic upsample + sub_mean, 3 channels only, zero-halo layout.
#   x_ref   : (1, 3*Hin, Win)    f32
#   whp_ref : (3*Hx, 3*Hin)      f32  block-diag height matrix (zero halo rows)
#   wwt_ref : (Win, Wp)          f32  width matrix^T            (zero halo cols)
#   ms_ref  : (3*Hx, Wp)         f32  per-channel mean on the interior, else 0
#   o_ref   : (1, 3*Hx, Wp)      f32
# ---------------------------------------------------------------------------
def _upsample_submean_kernel(x_ref, whp_ref, wwt_ref, ms_ref, o_ref):
    t = jnp.dot(x_ref[0], wwt_ref[...], preferred_element_type=jnp.float32)
    y = jnp.dot(whp_ref[...], t, preferred_element_type=jnp.float32)
    o_ref[0] = y - ms_ref[...]               # sub_mean (interior only)


def _bicubic_upsample_submean(x, geo):
    n, c, hin, win = x.shape
    hout, wout, wp = geo["hout"], geo["wout"], geo["wp"]
    e0, hx = geo["e0"], geo["hx"]

    wh = _bicubic_matrix(hin, hout)                       # (hout, hin)
    whp = np.zeros((hx, hin), np.float32)
    whp[e0 + 1:e0 + 1 + hout, :] = wh                     # zero halo/pad rows
    whp_bd = np.zeros((c * hx, c * hin), np.float32)      # block-diagonal
    for ch in range(c):
        whp_bd[ch * hx:(ch + 1) * hx, ch * hin:(ch + 1) * hin] = whp

    wwt = _bicubic_matrix(win, wout).T                    # (win, wout)
    wwtp = np.zeros((win, wp), np.float32)
    wwtp[:, 1:wout + 1] = wwt                             # zero halo cols

    msub = np.zeros((c * hx, wp), np.float32)
    for ch in range(c):
        msub[ch * hx + e0 + 1:ch * hx + e0 + 1 + hout, 1:wout + 1] = RGB_MEAN[ch]

    x2 = x.reshape(n, c * hin, win)                       # free reshape (NCHW)
    return pl.pallas_call(
        _upsample_submean_kernel,
        out_shape=jax.ShapeDtypeStruct((n, c * hx, wp), jnp.float32),
        grid=(n,),
        in_specs=[
            pl.BlockSpec((1, c * hin, win), lambda i: (i, 0, 0)),
            pl.BlockSpec((c * hx, c * hin), lambda i: (0, 0)),
            pl.BlockSpec((win, wp), lambda i: (0, 0)),
            pl.BlockSpec((c * hx, wp), lambda i: (0, 0)),
        ],
        out_specs=pl.BlockSpec((1, c * hx, wp), lambda i: (i, 0, 0)),
        compiler_params=pltpu.CompilerParams(dimension_semantics=("parallel",)),
    )(x2, jnp.asarray(whp_bd), jnp.asarray(wwtp), jnp.asarray(msub))


# ---------------------------------------------------------------------------
# Kernel 2: the whole conv body in one kernel.
#   x_ref  : (1, 3, Lin)          f32  flattened padded x_sub (zero halo)
#   w_ref  : (L-1, Cpad, 9*Cpad)  bf16 conv weights (layers 0..L-2)
#   b_ref  : (L-1, Cpad, 1)       f32  biases
#   wl_ref : (8, 9*Cpad)          bf16 last-layer weights (rows 0..2 used)
#   bl_ref : (8, 1)               f32  last-layer bias (+ add_mean folded in)
#   o_ref  : (1, 3, Lflat)        f32  result in the flattened padded layout
#   buf    : (2, Cpad, Lbuf)      bf16 ping-pong VMEM activation scratch
# ---------------------------------------------------------------------------
def _vdsr_body_kernel(x_ref, w_ref, b_ref, wl_ref, bl_ref, o_ref, buf_ref, *,
                      n_body, cpad, wp, hout, wout, lflat, lspan, pad0, s0):
    # Interior mask over the computed span (padded position q in [0, lspan)):
    # row in [1, hout]  <=>  wp <= q < (hout+1)*wp ;  col = q mod wp in [1, wout].
    q = jax.lax.broadcasted_iota(jnp.int32, (1, lspan), 1)
    colq = jax.lax.rem(q, wp)
    valid = jnp.logical_and(
        jnp.logical_and(q >= wp, q < (hout + 1) * wp),
        jnp.logical_and(colq >= 1, colq <= wout))

    offs = [pad0 + (dy - 1) * wp + (dx - 1)
            for dy in range(3) for dx in range(3)]

    # Stage x_sub into bf16 slot 0 (aligned, multiple-of-128 width store) and
    # zero the padded feature channels once so every conv uses K = 9*Cpad.
    buf_ref[0, 0:3, pad0:pad0 + lspan] = (
        x_ref[0, :, s0:s0 + lspan].astype(jnp.bfloat16))
    buf_ref[0, 3:cpad, pad0:pad0 + lspan] = jnp.zeros(
        (cpad - 3, lspan), jnp.bfloat16)

    def im2col(src):
        # 9 lane-offset slices of the resident bf16 activation -> (9*Cpad, lspan)
        taps = [buf_ref[src, :, off:off + lspan] for off in offs]
        return jnp.concatenate(taps, axis=0)

    # conv + ReLU layers (first + middle), ping-ponging the two bf16 slots.
    @pl.loop(0, n_body)
    def _(m):
        src = jax.lax.rem(m, 2)
        dst = 1 - src
        a = jnp.dot(w_ref[m], im2col(src), preferred_element_type=jnp.float32)
        a = a + b_ref[m]                                      # f32 bias
        act = jnp.where(valid, jnp.maximum(a, 0.0), 0.0)      # ReLU + zero halo
        buf_ref[dst, :, pad0:pad0 + lspan] = act.astype(jnp.bfloat16)

    # Last conv (no ReLU) + residual; add_mean is folded into bl_ref.
    a = jnp.dot(wl_ref[...], im2col(n_body % 2),
                preferred_element_type=jnp.float32)           # (8, lspan)
    a = a + bl_ref[...]
    res = a[0:3, :] + x_ref[0, :, s0:s0 + lspan]              # res += x_sub (f32)
    o_ref[0] = jnp.where(valid, res, 0.0)[:, :lflat]


def _vdsr_body(x_flat, w_body, b_body, w_last, b_last, n_body, geo):
    n, _, lin = x_flat.shape
    cpad = w_body.shape[1]
    kernel = functools.partial(
        _vdsr_body_kernel, n_body=n_body, cpad=cpad, wp=geo["wp"],
        hout=geo["hout"], wout=geo["wout"], lflat=geo["lflat"],
        lspan=geo["lspan"], pad0=geo["pad0"], s0=geo["e0"] * geo["wp"])
    return pl.pallas_call(
        kernel,
        out_shape=jax.ShapeDtypeStruct((n, 3, geo["lflat"]), jnp.float32),
        grid=(n,),
        in_specs=[
            pl.BlockSpec((1, 3, lin), lambda i: (i, 0, 0)),
            pl.BlockSpec(tuple(w_body.shape), lambda i: (0, 0, 0)),
            pl.BlockSpec(tuple(b_body.shape), lambda i: (0, 0, 0)),
            pl.BlockSpec(tuple(w_last.shape), lambda i: (0, 0)),
            pl.BlockSpec(tuple(b_last.shape), lambda i: (0, 0)),
        ],
        out_specs=pl.BlockSpec((1, 3, geo["lflat"]), lambda i: (i, 0, 0)),
        scratch_shapes=[pltpu.VMEM((2, cpad, geo["lbuf"]), jnp.bfloat16)],
        compiler_params=pltpu.CompilerParams(
            dimension_semantics=("parallel",),
            vmem_limit_bytes=48 * 1024 * 1024),
    )(x_flat, w_body, b_body, w_last, b_last)


# ---------------------------------------------------------------------------
# Parameter handling.
# ---------------------------------------------------------------------------
def init_params(key, n_resblocks, n_feats, n_colors=3):
    dims = ([(n_colors, n_feats)]
            + [(n_feats, n_feats)] * (n_resblocks - 2)
            + [(n_feats, n_colors)])
    params = []
    for i, (cin, cout) in enumerate(dims):
        kw, kb = jax.random.split(jax.random.fold_in(key, i))
        w = jax.random.normal(kw, (3, 3, cin, cout), jnp.float32) * 0.05
        b = jax.random.normal(kb, (cout,), jnp.float32) * 0.01
        params.append((w, b))
    return params


def pack_params(params, cpad):
    """HWIO (3,3,Cin,Cout) conv weights -> packed bf16 matmul weights.
       Body layers: (L-1, Cpad, 9*Cpad) + (L-1, Cpad, 1) biases.
       Last layer : (8, 9*Cpad) + (8, 1) bias with add_mean folded in
       (exact, rgb_std = 1)."""
    n_layers = len(params)
    n_body = n_layers - 1
    n_feats = params[0][0].shape[3]

    w = np.zeros((n_body, cpad, 9 * cpad), np.float32)
    b = np.zeros((n_body, cpad, 1), np.float32)
    for l in range(n_body):
        wl_, bl_ = params[l]
        cin, cout = wl_.shape[2], wl_.shape[3]
        wl_np = np.asarray(wl_)
        for dy in range(3):
            for dx in range(3):
                t = dy * 3 + dx
                w[l, :cout, t * cpad:t * cpad + cin] = wl_np[dy, dx].T
        b[l, :cout, 0] = np.asarray(bl_)

    wlast, blast = params[-1]
    wlast_np = np.asarray(wlast)
    wl = np.zeros((8, 9 * cpad), np.float32)
    bl = np.zeros((8, 1), np.float32)
    for dy in range(3):
        for dx in range(3):
            t = dy * 3 + dx
            wl[:3, t * cpad:t * cpad + n_feats] = wlast_np[dy, dx].T
    bl[:3, 0] = np.asarray(blast) + np.asarray(RGB_MEAN, np.float32)  # add_mean

    return (jnp.asarray(w, jnp.bfloat16), jnp.asarray(b, jnp.float32),
            jnp.asarray(wl, jnp.bfloat16), jnp.asarray(bl, jnp.float32),
            n_body)


# ---------------------------------------------------------------------------
# VDSR forward: bicubic upsample -> sub_mean -> fused conv body (+ residual
# and add_mean, both inside the fused kernel).
# ---------------------------------------------------------------------------
def vdsr_forward(x, w_body, b_body, w_last, b_last, *, n_body, scale):
    n, c, hin, win = x.shape                     # NCHW, like PyTorch
    assert c == 3
    geo = _geometry(hin, win, scale)
    x_up = _bicubic_upsample_submean(x, geo)                 # (N, 3*Hx, Wp) f32
    x_flat = x_up.reshape(n, 3, geo["hx"] * geo["wp"])       # free reshape
    out_flat = _vdsr_body(x_flat, w_body, b_body, w_last, b_last, n_body, geo)
    out = out_flat.reshape(n, 3, geo["hp"], geo["wp"])
    return out[:, :, 1:geo["hout"] + 1, 1:geo["wout"] + 1]   # (N, 3, Hout, Wout)


if __name__ == "__main__":
    n_resblocks, n_feats, scale = 4, 16, 2
    key = jax.random.PRNGKey(0)
    kx, kp = jax.random.split(key)
    x = jax.random.normal(kx, (2, 3, 16, 16), jnp.float32)
    params = init_params(kp, n_resblocks, n_feats)
    cpad = max(8, _round_up(n_feats, 8))
    w_body, b_body, w_last, b_last, n_body = pack_params(params, cpad)

    fwd = jax.jit(functools.partial(vdsr_forward, n_body=n_body, scale=scale))
    out = fwd(x, w_body, b_body, w_last, b_last)
    jax.block_until_ready(out)
    assert out.shape == (2, 3, 32, 32), out.shape
    assert out.dtype == jnp.float32
    print("KERNEL_OK")
</pallas_src>

<mosaic_0001>
module attributes {stable_mosaic.version = 11 : i64} {
  func.func @_vdsr_body_kernel(%arg0: i32, %arg1: memref<1x3x1394xf32, #tpu.memory_space<vmem>>, %arg2: memref<3x16x144xbf16, #tpu.memory_space<vmem>>, %arg3: memref<3x16x1xf32, #tpu.memory_space<vmem>>, %arg4: memref<8x144xbf16, #tpu.memory_space<vmem>>, %arg5: memref<8x1xf32, #tpu.memory_space<vmem>>, %arg6: memref<1x3x1156xf32, #tpu.memory_space<vmem>>, %arg7: memref<2x16x1664xbf16, #tpu.memory_space<vmem>>) attributes {dimension_semantics = [#tpu.dimension_semantics<parallel>], iteration_bounds = array<i64: 2>, scalar_prefetch = 0 : i64, scratch_operands = 1 : i64, tpu.core_type = #tpu.core_type<tc>, window_params = [{transform_indices = @transform_0, window_bounds = array<i64: 1, 3, 1394>}, {pipeline_mode = #tpu.pipeline_mode<synchronous>, transform_indices = @transform_1, window_bounds = array<i64: 3, 16, 144>}, {pipeline_mode = #tpu.pipeline_mode<synchronous>, transform_indices = @transform_2, window_bounds = array<i64: 3, 16, 1>}, {pipeline_mode = #tpu.pipeline_mode<synchronous>, transform_indices = @transform_3, window_bounds = array<i64: 8, 144>}, {pipeline_mode = #tpu.pipeline_mode<synchronous>, transform_indices = @transform_4, window_bounds = array<i64: 8, 1>}, {transform_indices = @transform_5, window_bounds = array<i64: 1, 3, 1156>}]} {
    %0 = tpu.iota {dimensions = array<i32: 1>} : vector<1x1280xi32>
    %c34_i32 = arith.constant 34 : i32
    %1 = vector.broadcast %c34_i32 : i32 to vector<1x1280xi32>
    %2 = arith.remsi %0, %1 : vector<1x1280xi32>
    %c34_i32_0 = arith.constant 34 : i32
    %3 = vector.broadcast %c34_i32_0 : i32 to vector<1x1280xi32>
    %4 = arith.cmpi sge, %0, %3 : vector<1x1280xi32>
    %c1122_i32 = arith.constant 1122 : i32
    %5 = vector.broadcast %c1122_i32 : i32 to vector<1x1280xi32>
    %6 = arith.cmpi slt, %0, %5 : vector<1x1280xi32>
    %7 = arith.andi %4, %6 : vector<1x1280xi1>
    %c1_i32 = arith.constant 1 : i32
    %8 = vector.broadcast %c1_i32 : i32 to vector<1x1280xi32>
    %9 = arith.cmpi sge, %2, %8 : vector<1x1280xi32>
    %c32_i32 = arith.constant 32 : i32
    %10 = vector.broadcast %c32_i32 : i32 to vector<1x1280xi32>
    %11 = arith.cmpi sle, %2, %10 : vector<1x1280xi32>
    %12 = arith.andi %9, %11 : vector<1x1280xi1>
    %13 = arith.andi %7, %12 : vector<1x1280xi1>
    %c0 = arith.constant 0 : index
    %c0_1 = arith.constant 0 : index
    %c68 = arith.constant 68 : index
    %14 = vector.load %arg1[%c0, %c0_1, %c68] : memref<1x3x1394xf32, #tpu.memory_space<vmem>>, vector<1x3x1280xf32>
    %15 = vector.shape_cast %14 : vector<1x3x1280xf32> to vector<3x1280xf32>
    %16 = arith.truncf %15 : vector<3x1280xf32> to vector<3x1280xbf16>
    %c0_2 = arith.constant 0 : index
    %c0_3 = arith.constant 0 : index
    %c128 = arith.constant 128 : index
    %17 = vector.load %arg7[%c0_2, %c0_3, %c128] : memref<2x16x1664xbf16, #tpu.memory_space<vmem>>, vector<1x3x1280xbf16>
    %18 = vector.shape_cast %17 : vector<1x3x1280xbf16> to vector<3x1280xbf16>
    %19 = vector.shape_cast %16 : vector<3x1280xbf16> to vector<1x3x1280xbf16>
    tpu.vector_store %arg7[%c0_2, %c0_3, %c128], %19 {strides = array<i32>} : memref<2x16x1664xbf16, #tpu.memory_space<vmem>>, vector<1x3x1280xbf16>,
    %cst = arith.constant 0.000000e+00 : bf16
    %20 = vector.broadcast %cst : bf16 to vector<13x1280xbf16>
    %c0_4 = arith.constant 0 : index
    %c3 = arith.constant 3 : index
    %c128_5 = arith.constant 128 : index
    %21 = vector.load %arg7[%c0_4, %c3, %c128_5] : memref<2x16x1664xbf16, #tpu.memory_space<vmem>>, vector<1x13x1280xbf16>
    %22 = vector.shape_cast %21 : vector<1x13x1280xbf16> to vector<13x1280xbf16>
    %23 = vector.shape_cast %20 : vector<13x1280xbf16> to vector<1x13x1280xbf16>
    tpu.vector_store %arg7[%c0_4, %c3, %c128_5], %23 {strides = array<i32>} : memref<2x16x1664xbf16, #tpu.memory_space<vmem>>, vector<1x13x1280xbf16>,
    %c0_i32 = arith.constant 0 : i32
    %c3_i32 = arith.constant 3 : i32
    %24 = arith.addi %c0_i32, %c3_i32 : i32
    %c1_i32_6 = arith.constant 1 : i32
    scf.for %arg8 = %c0_i32 to %24 step %c1_i32_6  : i32 {
      %c1_i32_38 = arith.constant 1 : i32
      %61 = arith.muli %arg8, %c1_i32_38 : i32
      %c0_i32_39 = arith.constant 0 : i32
      %62 = arith.addi %c0_i32_39, %61 : i32
      %c2_i32 = arith.constant 2 : i32
      %63 = arith.remsi %62, %c2_i32 : i32
      %c1_i32_40 = arith.constant 1 : i32
      %64 = arith.subi %c1_i32_40, %63 : i32
      %65 = arith.index_cast %62 : i32 to index
      %c0_41 = arith.constant 0 : index
      %c0_42 = arith.constant 0 : index
      %66 = vector.load %arg2[%65, %c0_41, %c0_42] : memref<3x16x144xbf16, #tpu.memory_space<vmem>>, vector<1x16x144xbf16>
      %67 = vector.shape_cast %66 : vector<1x16x144xbf16> to vector<16x144xbf16>
      %68 = arith.index_cast %63 : i32 to index
      %c0_43 = arith.constant 0 : index
      %c93_44 = arith.constant 93 : index
      %69 = vector.load %arg7[%68, %c0_43, %c93_44] : memref<2x16x1664xbf16, #tpu.memory_space<vmem>>, vector<1x16x1280xbf16>
      %70 = vector.shape_cast %69 : vector<1x16x1280xbf16> to vector<16x1280xbf16>
      %71 = arith.index_cast %63 : i32 to index
      %c0_45 = arith.constant 0 : index
      %c94_46 = arith.constant 94 : index
      %72 = vector.load %arg7[%71, %c0_45, %c94_46] : memref<2x16x1664xbf16, #tpu.memory_space<vmem>>, vector<1x16x1280xbf16>
      %73 = vector.shape_cast %72 : vector<1x16x1280xbf16> to vector<16x1280xbf16>
      %74 = arith.index_cast %63 : i32 to index
      %c0_47 = arith.constant 0 : index
      %c95_48 = arith.constant 95 : index
      %75 = vector.load %arg7[%74, %c0_47, %c95_48] : memref<2x16x1664xbf16, #tpu.memory_space<vmem>>, vector<1x16x1280xbf16>
      %76 = vector.shape_cast %75 : vector<1x16x1280xbf16> to vector<16x1280xbf16>
      %77 = arith.index_cast %63 : i32 to index
      %c0_49 = arith.constant 0 : index
      %c127_50 = arith.constant 127 : index
      %78 = vector.load %arg7[%77, %c0_49, %c127_50] : memref<2x16x1664xbf16, #tpu.memory_space<vmem>>, vector<1x16x1280xbf16>
      %79 = vector.shape_cast %78 : vector<1x16x1280xbf16> to vector<16x1280xbf16>
      %80 = arith.index_cast %63 : i32 to index
      %c0_51 = arith.constant 0 : index
      %c128_52 = arith.constant 128 : index
      %81 = vector.load %arg7[%80, %c0_51, %c128_52] : memref<2x16x1664xbf16, #tpu.memory_space<vmem>>, vector<1x16x1280xbf16>
      %82 = vector.shape_cast %81 : vector<1x16x1280xbf16> to vector<16x1280xbf16>
      %83 = arith.index_cast %63 : i32 to index
      %c0_53 = arith.constant 0 : index
      %c129_54 = arith.constant 129 : index
      %84 = vector.load %arg7[%83, %c0_53, %c129_54] : memref<2x16x1664xbf16, #tpu.memory_space<vmem>>, vector<1x16x1280xbf16>
      %85 = vector.shape_cast %84 : vector<1x16x1280xbf16> to vector<16x1280xbf16>
      %86 = arith.index_cast %63 : i32 to index
      %c0_55 = arith.constant 0 : index
      %c161_56 = arith.constant 161 : index
      %87 = vector.load %arg7[%86, %c0_55, %c161_56] : memref<2x16x1664xbf16, #tpu.memory_space<vmem>>, vector<1x16x1280xbf16>
      %88 = vector.shape_cast %87 : vector<1x16x1280xbf16> to vector<16x1280xbf16>
      %89 = arith.index_cast %63 : i32 to index
      %c0_57 = arith.constant 0 : index
      %c162_58 = arith.constant 162 : index
      %90 = vector.load %arg7[%89, %c0_57, %c162_58] : memref<2x16x1664xbf16, #tpu.memory_space<vmem>>, vector<1x16x1280xbf16>
      %91 = vector.shape_cast %90 : vector<1x16x1280xbf16> to vector<16x1280xbf16>
      %92 = arith.index_cast %63 : i32 to index
      %c0_59 = arith.constant 0 : index
      %c163_60 = arith.constant 163 : index
      %93 = vector.load %arg7[%92, %c0_59, %c163_60] : memref<2x16x1664xbf16, #tpu.memory_space<vmem>>, vector<1x16x1280xbf16>
      %94 = vector.shape_cast %93 : vector<1x16x1280xbf16> to vector<16x1280xbf16>
      %95 = tpu.concatenate %70, %73, %76, %79, %82, %85, %88, %91, %94 in 0 : vector<16x1280xbf16>, vector<16x1280xbf16>, vector<16x1280xbf16>, vector<16x1280xbf16>, vector<16x1280xbf16>, vector<16x1280xbf16>, vector<16x1280xbf16>, vector<16x1280xbf16>, vector<16x1280xbf16> -> vector<144x1280xbf16>
      %cst_61 = arith.constant dense<0.000000e+00> : vector<16x1280xf32>
      %96 = tpu.matmul %67, %95, %cst_61 {dimension_numbers = #tpu.dot_dimension_numbers<[1], [0], [0], [1], [0, 0, 1, 1], [], []>} : vector<16x144xbf16>, vector<144x1280xbf16>, vector<16x1280xf32> -> vector<16x1280xf32>
      %97 = arith.index_cast %62 : i32 to index
      %c0_62 = arith.constant 0 : index
      %c0_63 = arith.constant 0 : index
      %98 = vector.load %arg3[%97, %c0_62, %c0_63] : memref<3x16x1xf32, #tpu.memory_space<vmem>>, vector<1x16x1xf32>
      %99 = vector.shape_cast %98 : vector<1x16x1xf32> to vector<16x1xf32>
      %100 = vector.broadcast %99 : vector<16x1xf32> to vector<16x1280xf32>
      %101 = arith.addf %96, %100 : vector<16x1280xf32>
      %cst_64 = arith.constant 0.000000e+00 : f32
      %102 = vector.broadcast %cst_64 : f32 to vector<16x1280xf32>
      %103 = arith.maximumf %101, %102 : vector<16x1280xf32>
      %cst_65 = arith.constant 0.000000e+00 : f32
      %104 = vector.shape_cast %13 : vector<1x1280xi1> to vector<1x1280xi1>
      %105 = vector.broadcast %104 : vector<1x1280xi1> to vector<16x1280xi1>
      %106 = vector.broadcast %cst_65 : f32 to vector<16x1280xf32>
      %107 = arith.select %105, %103, %106 : vector<16x1280xi1>, vector<16x1280xf32>
      %108 = arith.truncf %107 : vector<16x1280xf32> to vector<16x1280xbf16>
      %109 = arith.index_cast %64 : i32 to index
      %c0_66 = arith.constant 0 : index
      %c128_67 = arith.constant 128 : index
      %110 = vector.load %arg7[%109, %c0_66, %c128_67] : memref<2x16x1664xbf16, #tpu.memory_space<vmem>>, vector<1x16x1280xbf16>
      %111 = vector.shape_cast %110 : vector<1x16x1280xbf16> to vector<16x1280xbf16>
      %112 = vector.shape_cast %108 : vector<16x1280xbf16> to vector<1x16x1280xbf16>
      tpu.vector_store %arg7[%109, %c0_66, %c128_67], %112 {strides = array<i32>} : memref<2x16x1664xbf16, #tpu.memory_space<vmem>>, vector<1x16x1280xbf16>,
    }
    %c3_i32_7 = arith.constant 3 : i32
    %c0_8 = arith.constant 0 : index
    %c0_9 = arith.constant 0 : index
    %25 = vector.load %arg4[%c0_8, %c0_9] : memref<8x144xbf16, #tpu.memory_space<vmem>>, vector<8x144xbf16>
    %c1 = arith.constant 1 : index
    %c0_10 = arith.constant 0 : index
    %c93 = arith.constant 93 : index
    %26 = vector.load %arg7[%c1, %c0_10, %c93] : memref<2x16x1664xbf16, #tpu.memory_space<vmem>>, vector<1x16x1280xbf16>
    %27 = vector.shape_cast %26 : vector<1x16x1280xbf16> to vector<16x1280xbf16>
    %c1_11 = arith.constant 1 : index
    %c0_12 = arith.constant 0 : index
    %c94 = arith.constant 94 : index
    %28 = vector.load %arg7[%c1_11, %c0_12, %c94] : memref<2x16x1664xbf16, #tpu.memory_space<vmem>>, vector<1x16x1280xbf16>
    %29 = vector.shape_cast %28 : vector<1x16x1280xbf16> to vector<16x1280xbf16>
    %c1_13 = arith.constant 1 : index
    %c0_14 = arith.constant 0 : index
    %c95 = arith.constant 95 : index
    %30 = vector.load %arg7[%c1_13, %c0_14, %c95] : memref<2x16x1664xbf16, #tpu.memory_space<vmem>>, vector<1x16x1280xbf16>
    %31 = vector.shape_cast %30 : vector<1x16x1280xbf16> to vector<16x1280xbf16>
    %c1_15 = arith.constant 1 : index
    %c0_16 = arith.constant 0 : index
    %c127 = arith.constant 127 : index
    %32 = vector.load %arg7[%c1_15, %c0_16, %c127] : memref<2x16x1664xbf16, #tpu.memory_space<vmem>>, vector<1x16x1280xbf16>
    %33 = vector.shape_cast %32 : vector<1x16x1280xbf16> to vector<16x1280xbf16>
    %c1_17 = arith.constant 1 : index
    %c0_18 = arith.constant 0 : index
    %c128_19 = arith.constant 128 : index
    %34 = vector.load %arg7[%c1_17, %c0_18, %c128_19] : memref<2x16x1664xbf16, #tpu.memory_space<vmem>>, vector<1x16x1280xbf16>
    %35 = vector.shape_cast %34 : vector<1x16x1280xbf16> to vector<16x1280xbf16>
    %c1_20 = arith.constant 1 : index
    %c0_21 = arith.constant 0 : index
    %c129 = arith.constant 129 : index
    %36 = vector.load %arg7[%c1_20, %c0_21, %c129] : memref<2x16x1664xbf16, #tpu.memory_space<vmem>>, vector<1x16x1280xbf16>
    %37 = vector.shape_cast %36 : vector<1x16x1280xbf16> to vector<16x1280xbf16>
    %c1_22 = arith.constant 1 : index
    %c0_23 = arith.constant 0 : index
    %c161 = arith.constant 161 : index
    %38 = vector.load %arg7[%c1_22, %c0_23, %c161] : memref<2x16x1664xbf16, #tpu.memory_space<vmem>>, vector<1x16x1280xbf16>
    %39 = vector.shape_cast %38 : vector<1x16x1280xbf16> to vector<16x1280xbf16>
    %c1_24 = arith.constant 1 : index
    %c0_25 = arith.constant 0 : index
    %c162 = arith.constant 162 : index
    %40 = vector.load %arg7[%c1_24, %c0_25, %c162] : memref<2x16x1664xbf16, #tpu.memory_space<vmem>>, vector<1x16x1280xbf16>
    %41 = vector.shape_cast %40 : vector<1x16x1280xbf16> to vector<16x1280xbf16>
    %c1_26 = arith.constant 1 : index
    %c0_27 = arith.constant 0 : index
    %c163 = arith.constant 163 : index
    %42 = vector.load %arg7[%c1_26, %c0_27, %c163] : memref<2x16x1664xbf16, #tpu.memory_space<vmem>>, vector<1x16x1280xbf16>
    %43 = vector.shape_cast %42 : vector<1x16x1280xbf16> to vector<16x1280xbf16>
    %44 = tpu.concatenate %27, %29, %31, %33, %35, %37, %39, %41, %43 in 0 : vector<16x1280xbf16>, vector<16x1280xbf16>, vector<16x1280xbf16>, vector<16x1280xbf16>, vector<16x1280xbf16>, vector<16x1280xbf16>, vector<16x1280xbf16>, vector<16x1280xbf16>, vector<16x1280xbf16> -> vector<144x1280xbf16>
    %cst_28 = arith.constant dense<0.000000e+00> : vector<8x1280xf32>
    %45 = tpu.matmul %25, %44, %cst_28 {dimension_numbers = #tpu.dot_dimension_numbers<[1], [0], [0], [1], [0, 0, 1, 1], [], []>} : vector<8x144xbf16>, vector<144x1280xbf16>, vector<8x1280xf32> -> vector<8x1280xf32>
    %c0_29 = arith.constant 0 : index
    %c0_30 = arith.constant 0 : index
    %46 = vector.load %arg5[%c0_29, %c0_30] : memref<8x1xf32, #tpu.memory_space<vmem>>, vector<8x1xf32>
    %47 = vector.broadcast %46 : vector<8x1xf32> to vector<8x1280xf32>
    %48 = arith.addf %45, %47 : vector<8x1280xf32>
    %49 = vector.extract_strided_slice %48 {offsets = [0, 0], sizes = [3, 1280], strides = [1, 1]} : vector<8x1280xf32> to vector<3x1280xf32>
    %c0_31 = arith.constant 0 : index
    %c0_32 = arith.constant 0 : index
    %c68_33 = arith.constant 68 : index
    %50 = vector.load %arg1[%c0_31, %c0_32, %c68_33] : memref<1x3x1394xf32, #tpu.memory_space<vmem>>, vector<1x3x1280xf32>
    %51 = vector.shape_cast %50 : vector<1x3x1280xf32> to vector<3x1280xf32>
    %52 = arith.addf %49, %51 : vector<3x1280xf32>
    %cst_34 = arith.constant 0.000000e+00 : f32
    %53 = vector.shape_cast %13 : vector<1x1280xi1> to vector<1x1280xi1>
    %54 = vector.broadcast %53 : vector<1x1280xi1> to vector<3x1280xi1>
    %55 = vector.broadcast %cst_34 : f32 to vector<3x1280xf32>
    %56 = arith.select %54, %52, %55 : vector<3x1280xi1>, vector<3x1280xf32>
    %57 = vector.extract_strided_slice %56 {offsets = [0, 0], sizes = [3, 1156], strides = [1, 1]} : vector<3x1280xf32> to vector<3x1156xf32>
    %c0_35 = arith.constant 0 : index
    %c0_36 = arith.constant 0 : index
    %c0_37 = arith.constant 0 : index
    %58 = vector.load %arg6[%c0_35, %c0_36, %c0_37] : memref<1x3x1156xf32, #tpu.memory_space<vmem>>, vector<1x3x1156xf32>
    %59 = vector.shape_cast %58 : vector<1x3x1156xf32> to vector<3x1156xf32>
    %60 = vector.shape_cast %57 : vector<3x1156xf32> to vector<1x3x1156xf32>
    tpu.vector_store %arg6[%c0_35, %c0_36, %c0_37], %60 {strides = array<i32>} : memref<1x3x1156xf32, #tpu.memory_space<vmem>>, vector<1x3x1156xf32>,
    return
  }
  func.func @transform_0(%arg0: i32) -> (i32, i32, i32) {
    %c0_i32 = arith.constant 0 : i32
    %c0_i32_0 = arith.constant 0 : i32
    %c0_i32_1 = arith.constant 0 : i32
    return %arg0, %c0_i32, %c0_i32_0 : i32, i32, i32
  }
  func.func @transform_1(%arg0: i32) -> (i32, i32, i32) {
    %c0_i32 = arith.constant 0 : i32
    %c0_i32_0 = arith.constant 0 : i32
    %c0_i32_1 = arith.constant 0 : i32
    %c0_i32_2 = arith.constant 0 : i32
    return %c0_i32, %c0_i32_0, %c0_i32_1 : i32, i32, i32
  }
  func.func @transform_2(%arg0: i32) -> (i32, i32, i32) {
    %c0_i32 = arith.constant 0 : i32
    %c0_i32_0 = arith.constant 0 : i32
    %c0_i32_1 = arith.constant 0 : i32
    %c0_i32_2 = arith.constant 0 : i32
    return %c0_i32, %c0_i32_0, %c0_i32_1 : i32, i32, i32
  }
  func.func @transform_3(%arg0: i32) -> (i32, i32) {
    %c0_i32 = arith.constant 0 : i32
    %c0_i32_0 = arith.constant 0 : i32
    %c0_i32_1 = arith.constant 0 : i32
    return %c0_i32, %c0_i32_0 : i32, i32
  }
  func.func @transform_4(%arg0: i32) -> (i32, i32) {
    %c0_i32 = arith.constant 0 : i32
    %c0_i32_0 = arith.constant 0 : i32
    %c0_i32_1 = arith.constant 0 : i32
    return %c0_i32, %c0_i32_0 : i32, i32
  }
  func.func @transform_5(%arg0: i32) -> (i32, i32, i32) {
    %c0_i32 = arith.constant 0 : i32
    %c0_i32_0 = arith.constant 0 : i32
    %c0_i32_1 = arith.constant 0 : i32
    return %arg0, %c0_i32, %c0_i32_0 : i32, i32, i32
  }
}

module attributes {stable_mosaic.version = 11 : i64} {
  func.func @_upsample_submean_kernel(%arg0: i32, %arg1: memref<1x48x16xf32, #tpu.memory_space<vmem>>, %arg2: memref<123x48xf32, #tpu.memory_space<vmem>>, %arg3: memref<16x34xf32, #tpu.memory_space<vmem>>, %arg4: memref<123x34xf32, #tpu.memory_space<vmem>>, %arg5: memref<1x123x34xf32, #tpu.memory_space<vmem>>) attributes {dimension_semantics = [#tpu.dimension_semantics<parallel>], iteration_bounds = array<i64: 2>, scalar_prefetch = 0 : i64, scratch_operands = 0 : i64, tpu.core_type = #tpu.core_type<tc>, window_params = [{transform_indices = @transform_0, window_bounds = array<i64: 1, 48, 16>}, {pipeline_mode = #tpu.pipeline_mode<synchronous>, transform_indices = @transform_1, window_bounds = array<i64: 123, 48>}, {pipeline_mode = #tpu.pipeline_mode<synchronous>, transform_indices = @transform_2, window_bounds = array<i64: 16, 34>}, {pipeline_mode = #tpu.pipeline_mode<synchronous>, transform_indices = @transform_3, window_bounds = array<i64: 123, 34>}, {transform_indices = @transform_4, window_bounds = array<i64: 1, 123, 34>}]} {
    %c0 = arith.constant 0 : index
    %c0_0 = arith.constant 0 : index
    %c0_1 = arith.constant 0 : index
    %0 = vector.load %arg1[%c0, %c0_0, %c0_1] : memref<1x48x16xf32, #tpu.memory_space<vmem>>, vector<1x48x16xf32>
    %1 = vector.shape_cast %0 : vector<1x48x16xf32> to vector<48x16xf32>
    %c0_2 = arith.constant 0 : index
    %c0_3 = arith.constant 0 : index
    %2 = vector.load %arg3[%c0_2, %c0_3] : memref<16x34xf32, #tpu.memory_space<vmem>>, vector<16x34xf32>
    %cst = arith.constant dense<0.000000e+00> : vector<48x34xf32>
    %3 = tpu.matmul %1, %2, %cst {dimension_numbers = #tpu.dot_dimension_numbers<[1], [0], [0], [1], [0, 0, 1, 1], [], []>} : vector<48x16xf32>, vector<16x34xf32>, vector<48x34xf32> -> vector<48x34xf32>
    %c0_4 = arith.constant 0 : index
    %c0_5 = arith.constant 0 : index
    %4 = vector.load %arg2[%c0_4, %c0_5] : memref<123x48xf32, #tpu.memory_space<vmem>>, vector<123x48xf32>
    %cst_6 = arith.constant dense<0.000000e+00> : vector<123x34xf32>
    %5 = tpu.matmul %4, %3, %cst_6 {dimension_numbers = #tpu.dot_dimension_numbers<[1], [0], [0], [1], [0, 0, 1, 1], [], []>} : vector<123x48xf32>, vector<48x34xf32>, vector<123x34xf32> -> vector<123x34xf32>
    %c0_7 = arith.constant 0 : index
    %c0_8 = arith.constant 0 : index
    %6 = vector.load %arg4[%c0_7, %c0_8] : memref<123x34xf32, #tpu.memory_space<vmem>>, vector<123x34xf32>
    %7 = arith.subf %5, %6 : vector<123x34xf32>
    %c0_9 = arith.constant 0 : index
    %c0_10 = arith.constant 0 : index
    %c0_11 = arith.constant 0 : index
    %8 = vector.load %arg5[%c0_9, %c0_10, %c0_11] : memref<1x123x34xf32, #tpu.memory_space<vmem>>, vector<1x123x34xf32>
    %9 = vector.shape_cast %8 : vector<1x123x34xf32> to vector<123x34xf32>
    %10 = vector.shape_cast %7 : vector<123x34xf32> to vector<1x123x34xf32>
    tpu.vector_store %arg5[%c0_9, %c0_10, %c0_11], %10 {strides = array<i32>} : memref<1x123x34xf32, #tpu.memory_space<vmem>>, vector<1x123x34xf32>,
    return
  }
  func.func @transform_0(%arg0: i32) -> (i32, i32, i32) {
    %c0_i32 = arith.constant 0 : i32
    %c0_i32_0 = arith.constant 0 : i32
    %c0_i32_1 = arith.constant 0 : i32
    return %arg0, %c0_i32, %c0_i32_0 : i32, i32, i32
  }
  func.func @transform_1(%arg0: i32) -> (i32, i32) {
    %c0_i32 = arith.constant 0 : i32
    %c0_i32_0 = arith.constant 0 : i32
    %c0_i32_1 = arith.constant 0 : i32
    return %c0_i32, %c0_i32_0 : i32, i32
  }
  func.func @transform_2(%arg0: i32) -> (i32, i32) {
    %c0_i32 = arith.constant 0 : i32
    %c0_i32_0 = arith.constant 0 : i32
    %c0_i32_1 = arith.constant 0 : i32
    return %c0_i32, %c0_i32_0 : i32, i32
  }
  func.func @transform_3(%arg0: i32) -> (i32, i32) {
    %c0_i32 = arith.constant 0 : i32
    %c0_i32_0 = arith.constant 0 : i32
    %c0_i32_1 = arith.constant 0 : i32
    return %c0_i32, %c0_i32_0 : i32, i32
  }
  func.func @transform_4(%arg0: i32) -> (i32, i32, i32) {
    %c0_i32 = arith.constant 0 : i32
    %c0_i32_0 = arith.constant 0 : i32
    %c0_i32_1 = arith.constant 0 : i32
    return %arg0, %c0_i32, %c0_i32_0 : i32, i32, i32
  }
}

</mosaic_0001>

<llo_original>
// kernel: vdsr_forward.2
$region0: #{vdsr_forward.2}
  #allocation0 [shape = 'u32[]', space=smem, size = 0x4, offset = 0x4, fixed_abs, tag = 'smem constant byte address 0x4 - core index']
  #allocation1 [shape = 'u32[72,128]{1,0:T(1,128)}', space=vmem, size = 0x9000, scoped, tag = 'internal scratch']
  %s0 = inlined_call_operand.hbm [shape: f32[2,48,16], index: 0, kind: input, shape index: {}]
  %s1 = inlined_call_operand.hbm [shape: f32[123,48], index: 1, kind: input, shape index: {}]
  %s2 = inlined_call_operand.vmem [shape: f32[16,34], index: 2, kind: input, shape index: {}]
  %s3 = inlined_call_operand.hbm [shape: f32[123,34], index: 3, kind: input, shape index: {}]
  %s4 = inlined_call_operand.vmem [shape: f32[2,123,34], index: 4, kind: output, shape index: {}]
  %s5 = sld [smem:[#allocation0]]
  $region61: #{vdsr_forward.2} parent=0
    _
  %s7 = ssub.s32 1, %s5
  %s8 = scalar_select 0, %s7, %s5
  $region1: #{vdsr_forward.2} parent=0
    #allocation2 [shape = 'u8[49152]{0}', space=vmem, size = 0xc000, scoped, tag = 'input window, operand 0']
    #allocation3 [shape = 's32[2]{0}', space=sflag, size = 0x8, scoped, tag = 'scoped memory for vdsr_forward.2']
    #allocation4 [shape = 'u8[65536]{0}', space=vmem, size = 0x10000, scoped, tag = 'input window, operand 1, single buffered']
    #allocation5 [shape = 's32[1]{0}', space=sflag, size = 0x4, scoped, tag = 'scoped memory for vdsr_forward.2']
    #allocation6 [shape = 'u8[65536]{0}', space=vmem, size = 0x10000, scoped, tag = 'input window, operand 3, single buffered']
    %9 = vsyncpa [#allocation3], 0
    %s10 = scalar_lea.sflag [#allocation3], 1
    %11 = vsyncpa %s10, 0
    %12 = vsyncpa [#allocation5], 0
    loop: start=0, step=1, limit=4
    $region2: #{vdsr_forward.2} parent=1 // loop_pre_header
      _
    $region3: #{vdsr_forward.2} parent=1 // loop_header
      %s14 = sphi 0, %s18
      %p15 = scmp.ge.s32.totalorder %s14, 4
      %s24 = sphi 0, %s26
      %s27 = sphi 0, %s24
      %s28 = sphi 0, %s27
      %s44 = sphi 0, %s28
      %s48 = sphi 0, %s48
      %s50 = sphi 0, %s48
      %s51 = sphi 0, %s50
      %s65 = sphi 0, %s51
      %s69 = sphi 0, %s69
      %s71 = sphi 0, %s69
      %s72 = sphi 0, %s71
      %s86 = sphi 0, %s72
      %s90 = sphi 0, %s90
      %s92 = sphi 0, %s90
      %s93 = sphi 0, %s92
      %s107 = sphi 0, %s93
      %s113 = sphi 0, %s115
      %s116 = sphi 0, %s113
      %s117 = sphi 0, %s116
      %s133 = sphi 0, %s117
    $region4: #{vdsr_forward.2} parent=1 // loop_header_branch
      %17 = sbr.rel (%p15) target = $region8
    $region5: #{vdsr_forward.2} parent=1 // loop_body
      %s19 = ssub.s32 %s14, 1
      %s20 = ssub.s32 %s14, 2
      %s21 = sadd.s32 %s14, 1
      %s22 = ssub.s32 %s14, %s21
      %p23 = scmp.eq.s32.totalorder %s22, 0
      %s25 = sadd.s32 %s24, 1
      %s26 = scalar_select %p23, %s24, %s25
      %p29 = pneg %p23
      %p30 = scmp.eq.s32.totalorder %s14, 1
      %p31 = por %p29, %p30
      %p32 = scmp.ne.s32.totalorder %s24, %s27
      %p33 = scmp.eq.s32.totalorder %s14, 0
      %p34 = por %p32, %p33
      %p35 = scmp.ne.s32.totalorder %s24, %s27
      %p36 = scmp.eq.s32.totalorder %s19, 1
      %p37 = por %p35, %p36
      %p38 = scmp.ne.s32.totalorder %s27, %s28
      %p39 = scmp.eq.s32.totalorder %s19, 0
      %p40 = por %p38, %p39
      %p41 = scmp.ne.s32.totalorder %s27, %s28
      %p42 = scmp.eq.s32.totalorder %s20, 1
      %p43 = por %p41, %p42
      %p45 = scmp.ne.s32.totalorder %s28, %s44
      %p46 = scmp.eq.s32.totalorder %s20, 0
      %p47 = por %p45, %p46
      %s49 = sadd.s32 %s48, 1
      %p52 = scmp.eq.s32.totalorder %s14, 1
      %p53 = scmp.ne.s32.totalorder %s48, %s50
      %p54 = scmp.eq.s32.totalorder %s14, 0
      %p55 = por %p53, %p54
      %p56 = scmp.ne.s32.totalorder %s48, %s50
      %p57 = scmp.eq.s32.totalorder %s19, 1
      %p58 = por %p56, %p57
      %p59 = scmp.ne.s32.totalorder %s50, %s51
      %p60 = scmp.eq.s32.totalorder %s19, 0
      %p61 = por %p59, %p60
      %p62 = scmp.ne.s32.totalorder %s50, %s51
      %p63 = scmp.eq.s32.totalorder %s20, 1
      %p64 = por %p62, %p63
      %p66 = scmp.ne.s32.totalorder %s51, %s65
      %p67 = scmp.eq.s32.totalorder %s20, 0
      %p68 = por %p66, %p67
      %s70 = sadd.s32 %s69, 1
      %p73 = scmp.eq.s32.totalorder %s14, 1
      %p74 = scmp.ne.s32.totalorder %s69, %s71
      %p75 = scmp.eq.s32.totalorder %s14, 0
      %p76 = por %p74, %p75
      %p77 = scmp.ne.s32.totalorder %s69, %s71
      %p78 = scmp.eq.s32.totalorder %s19, 1
      %p79 = por %p77, %p78
      %p80 = scmp.ne.s32.totalorder %s71, %s72
      %p81 = scmp.eq.s32.totalorder %s19, 0
      %p82 = por %p80, %p81
      %p83 = scmp.ne.s32.totalorder %s71, %s72
      %p84 = scmp.eq.s32.totalorder %s20, 1
      %p85 = por %p83, %p84
      %p87 = scmp.ne.s32.totalorder %s72, %s86
      %p88 = scmp.eq.s32.totalorder %s20, 0
      %p89 = por %p87, %p88
      %s91 = sadd.s32 %s90, 1
      %p94 = scmp.eq.s32.totalorder %s14, 1
      %p95 = scmp.ne.s32.totalorder %s90, %s92
      %p96 = scmp.eq.s32.totalorder %s14, 0
      %p97 = por %p95, %p96
      %p98 = scmp.ne.s32.totalorder %s90, %s92
      %p99 = scmp.eq.s32.totalorder %s19, 1
      %p100 = por %p98, %p99
      %p101 = scmp.ne.s32.totalorder %s92, %s93
      %p102 = scmp.eq.s32.totalorder %s19, 0
      %p103 = por %p101, %p102
      %p104 = scmp.ne.s32.totalorder %s92, %s93
      %p105 = scmp.eq.s32.totalorder %s20, 1
      %p106 = por %p104, %p105
      %p108 = scmp.ne.s32.totalorder %s93, %s107
      %p109 = scmp.eq.s32.totalorder %s20, 0
      %p110 = por %p108, %p109
      %s111 = ssub.s32 %s14, %s21
      %p112 = scmp.eq.s32.totalorder %s111, 0
      %s114 = sadd.s32 %s113, 1
      %s115 = scalar_select %p112, %s113, %s114
      %p118 = pneg %p112
      %p119 = scmp.eq.s32.totalorder %s14, 1
      %p120 = por %p118, %p119
      %p121 = scmp.ne.s32.totalorder %s113, %s116
      %p122 = scmp.eq.s32.totalorder %s14, 0
      %p123 = por %p121, %p122
      %p124 = scmp.ne.s32.totalorder %s113, %s116
      %p125 = scmp.eq.s32.totalorder %s19, 1
      %p126 = por %p124, %p125
      %p127 = scmp.ne.s32.totalorder %s116, %s117
      %p128 = scmp.eq.s32.totalorder %s19, 0
      %p129 = por %p127, %p128
      %p130 = scmp.ne.s32.totalorder %s116, %s117
      %p131 = scmp.eq.s32.totalorder %s20, 1
      %p132 = por %p130, %p131
      %p134 = scmp.ne.s32.totalorder %s117, %s133
      %p135 = scmp.eq.s32.totalorder %s20, 0
      %p136 = por %p134, %p135
      %p137 = scmp.le.s32.totalorder 1, %s14
      %p138 = scmp.lt.s32.totalorder %s14, 3
      %p139 = pnand %p137, %p138
      %p140 = pneg %p139
      // Predicated region
      $region9: #{vdsr_forward.2} parent=5 // pred_check
        _
      $region10: #{vdsr_forward.2} parent=5 // pred_check_branch
        %142 = sbr.rel (%p139) target = $region12
      $region11: #{vdsr_forward.2} parent=5 // pred_region
        %s143 = ssub.s32 %s14, 1
        // Predicated region
        $region13: #{vdsr_forward.2} parent=11 // pred_check
          %p144 = pneg %p61
        $region14: #{vdsr_forward.2} parent=11 // pred_check_branch
          %146 = sbr.rel (%p144) target = $region16
        $region15: #{vdsr_forward.2} parent=11 // pred_region
          %148 = vsyncadd [#allocation5], 0
          %s149 = sshll.u32 %s1, 4
          %s150 = int_to_ptr.hbm [resolvable:$true] %s149
          %s151 = sshll.u32 [#allocation4], 4
          %s152 = int_to_ptr.vmem [resolvable:$true] %s151
          %157 = dma.hbm_to_vmem [thread:$0]  %s150, 2048, %s152, [#allocation5], 128, 128, 8
        $region16: #{vdsr_forward.2} parent=11 // pred_fallthru
          _
        // Predicated region
        $region17: #{vdsr_forward.2} parent=11 // pred_check
          %p158 = pneg %p82
        $region18: #{vdsr_forward.2} parent=11 // pred_check_branch
          %160 = sbr.rel (%p158) target = $region20
        $region19: #{vdsr_forward.2} parent=11 // pred_region
          _
        $region20: #{vdsr_forward.2} parent=11 // pred_fallthru
          _
        // Predicated region
        $region21: #{vdsr_forward.2} parent=11 // pred_check
          %p161 = pneg %p103
        $region22: #{vdsr_forward.2} parent=11 // pred_check_branch
          %163 = sbr.rel (%p161) target = $region24
        $region23: #{vdsr_forward.2} parent=11 // pred_region
          %165 = vsyncadd [#allocation5], 0
          %s166 = sshll.u32 %s3, 4
          %s167 = int_to_ptr.hbm [resolvable:$true] %s166
          %s168 = sshll.u32 [#allocation6], 4
          %s169 = int_to_ptr.vmem [resolvable:$true] %s168
          %174 = dma.hbm_to_vmem [thread:$0]  %s167, 2048, %s169, [#allocation5], 128, 128, 8
        $region24: #{vdsr_forward.2} parent=11 // pred_fallthru
          _
      $region12: #{vdsr_forward.2} parent=5 // pred_fallthru
        _
      %p175 = scmp.lt.s32.totalorder %s14, 2
      // Predicated region
      $region25: #{vdsr_forward.2} parent=5 // pred_check
        %p176 = pneg %p175
      $region26: #{vdsr_forward.2} parent=5 // pred_check_branch
        %178 = sbr.rel (%p176) target = $region28
      $region27: #{vdsr_forward.2} parent=5 // pred_region
        // Predicated region
        $region29: #{vdsr_forward.2} parent=27 // pred_check
          %p179 = pneg %p34
        $region30: #{vdsr_forward.2} parent=27 // pred_check_branch
          %181 = sbr.rel (%p179) target = $region32
        $region31: #{vdsr_forward.2} parent=27 // pred_region
          %s182 = sand.u32 %s24, 1
          %s183 = scalar_lea.sflag [#allocation3], %s182
          %s184 = sand.u32 %s24, 1
          %s185 = smul.addr %s184, 48
          %s186 = scalar_lea.vmem [#allocation2], %s185
          %188 = vsyncadd %s183, 0
          %s189 = smul.addr %s14, 6
          %s190 = smul.addr %s189, 8
          %s191 = scalar_lea.hbm %s0, %s190
          %s192 = sshll.u32 %s191, 4
          %s193 = int_to_ptr.hbm [resolvable:$true] %s192
          %s194 = sshll.u32 %s186, 4
          %s195 = int_to_ptr.vmem [resolvable:$true] %s194
          %200 = dma.hbm_to_vmem [thread:$0]  %s193, 768, %s195, %s183, 128, 128, 8
        $region32: #{vdsr_forward.2} parent=27 // pred_fallthru
          _
      $region28: #{vdsr_forward.2} parent=5 // pred_fallthru
        _
      %p201 = scmp.le.s32.totalorder 1, %s14
      %p202 = scmp.lt.s32.totalorder %s14, 3
      %p203 = pnand %p201, %p202
      %p204 = pneg %p203
      // Predicated region
      $region33: #{vdsr_forward.2} parent=5 // pred_check
        _
      $region34: #{vdsr_forward.2} parent=5 // pred_check_branch
        %206 = sbr.rel (%p203) target = $region36
      $region35: #{vdsr_forward.2} parent=5 // pred_region
        %s207 = ssub.s32 %s14, 1
        %s208 = sand.u32 %s27, 1
        %s209 = scalar_lea.sflag [#allocation3], %s208
        %s210 = sand.u32 %s27, 1
        %s211 = smul.addr %s210, 48
        %s212 = scalar_lea.vmem [#allocation2], %s211
        // Predicated region
        $region37: #{vdsr_forward.2} parent=35 // pred_check
          %p213 = pneg %p40
        $region38: #{vdsr_forward.2} parent=35 // pred_check_branch
          %215 = sbr.rel (%p213) target = $region40
        $region39: #{vdsr_forward.2} parent=35 // pred_region
          %217 = dma.done %s209, 768
        $region40: #{vdsr_forward.2} parent=35 // pred_fallthru
          _
        // Predicated region
        $region41: #{vdsr_forward.2} parent=35 // pred_check
          %p218 = pneg %p61
        $region42: #{vdsr_forward.2} parent=35 // pred_check_branch
          %220 = sbr.rel (%p218) target = $region44
        $region43: #{vdsr_forward.2} parent=35 // pred_region
          %222 = dma.done [#allocation5], 2048
        $region44: #{vdsr_forward.2} parent=35 // pred_fallthru
          _
        // Predicated region
        $region45: #{vdsr_forward.2} parent=35 // pred_check
          %p223 = pneg %p103
        $region46: #{vdsr_forward.2} parent=35 // pred_check_branch
          %225 = sbr.rel (%p223) target = $region48
        $region47: #{vdsr_forward.2} parent=35 // pred_region
          %227 = dma.done [#allocation5], 2048
        $region48: #{vdsr_forward.2} parent=35 // pred_fallthru
          _
        %s228 = sand.u32 %s27, 1
        %s229 = scalar_lea.sflag [#allocation3], %s228
        %s230 = sand.u32 %s27, 1
        %s231 = smul.addr %s230, 48
        %s232 = scalar_lea.vmem [#allocation2], %s231
        %p233 = pneg %p40
        %p234 = pneg %p37
        %p235 = pneg %p61
        %p236 = pneg %p58
        %p237 = pneg %p82
        %p238 = pneg %p79
        %p239 = pneg %p103
        %p240 = pneg %p100
        %p241 = pneg %p129
        %p242 = pneg %p126
        %p243 = scmp.lt.s32.totalorder %s19, 1
        %s244 = scalar_select %p243, %s19, 1
        %s245 = smul.addr %s244, 16
        %s246 = smul.addr %s245, 8
        %s247 = scalar_lea.vmem %s4, %s246
        %p248 = scmp.lt.s32.totalorder %s19, 1
        %s249 = scalar_select %p248, %s19, 1
        %s250 = smul.addr %s249, 16
        %s251 = smul.addr %s250, 8
        %s252 = scalar_lea.vmem %s4, %s251
        %v253 = vld [vmem:[%s212] sm:$0xff]
        %v254 = vld [vmem:[%s212 + $0x8] sm:$0xff]
        %v255 = vld [vmem:[%s212 + $0x10] sm:$0xff]
        %v256 = vld [vmem:[%s212 + $0x18] sm:$0xff]
        %v257 = vld [vmem:[%s212 + $0x20] sm:$0xff]
        %v258 = vld [vmem:[%s212 + $0x28] sm:$0xff]
        %v259 = vld [vmem:[%s2] sm:$0xff]
        %v260 = vld [vmem:[%s2 + $0x8] sm:$0xff]
        %vm261 = vcmask 130048
        %v263 = vsel %vm261, %v253, 0
        %v266 = vsel %vm261, %v254, 0
        %v269 = vsel %vm261, %v255, 0
        %v272 = vsel %vm261, %v256, 0
        %v275 = vsel %vm261, %v257, 0
        %v278 = vsel %vm261, %v258, 0
        %280 = vmatpush.msra.mxu0 0.0
        %281 = vmatpush.msra.mxu0 0.0
        %282 = vmatpush.msra.mxu0 0.0
        %283 = vmatpush.msra.mxu0 0.0
        %284 = vmatpush.msra.mxu0 0.0
        %285 = vmatpush.msra.mxu0 0.0
        %286 = vmatpush.msra.mxu0 0.0
        %287 = vmatpush.msra.mxu0 0.0
        %288 = vmatpush.msra.mxu0 0.0
        %289 = vmatpush.msra.mxu0 0.0
        %290 = vmatpush.msra.mxu0 0.0
        %291 = vmatpush.msra.mxu0 0.0
        %292 = vmatpush.msra.mxu0 0.0
        %293 = vmatpush.msra.mxu0 0.0
        %294 = vmatpush.msra.mxu0 %v260
        %295 = vmatpush.msra.mxu0 %v259
        %296 = vmatmul.f32.gmra.mxu0 %v263
        %v297 = vpop.f32.mrf.mxu0
        %v298 = vadd.f32 0.0, %v297
        %299 = vmatmul.f32.gmra.mxu0 %v266
        %v300 = vpop.f32.mrf.mxu0
        %v301 = vadd.f32 0.0, %v300
        %302 = vmatmul.f32.gmra.mxu0 %v269
        %v303 = vpop.f32.mrf.mxu0
        %v304 = vadd.f32 0.0, %v303
        %305 = vmatmul.f32.gmra.mxu0 %v272
        %v306 = vpop.f32.mrf.mxu0
        %v307 = vadd.f32 0.0, %v306
        %308 = vmatmul.f32.gmra.mxu0 %v275
        %v309 = vpop.f32.mrf.mxu0
        %v310 = vadd.f32 0.0, %v309
        %311 = vmatmul.f32.gmra.mxu0 %v278
        %v312 = vpop.f32.mrf.mxu0
        %v313 = vadd.f32 0.0, %v312
        %314 = vdwg.mxu0
        %v315 = vld [vmem:[#allocation4] sm:$0xff]
        %v316 = vld [vmem:[#allocation4 + $0x8] sm:$0xff]
        %v317 = vld [vmem:[#allocation4 + $0x10] sm:$0xff]
        %v318 = vld [vmem:[#allocation4 + $0x18] sm:$0xff]
        %v319 = vld [vmem:[#allocation4 + $0x20] sm:$0xff]
        %v320 = vld [vmem:[#allocation4 + $0x28] sm:$0xff]
        %v321 = vld [vmem:[#allocation4 + $0x30] sm:$0xff]
        %v322 = vld [vmem:[#allocation4 + $0x38] sm:$0xff]
        %v323 = vld [vmem:[#allocation4 + $0x40] sm:$0xff]
        %v324 = vld [vmem:[#allocation4 + $0x48] sm:$0xff]
        %v325 = vld [vmem:[#allocation4 + $0x50] sm:$0xff]
        %v326 = vld [vmem:[#allocation4 + $0x58] sm:$0xff]
        %v327 = vld [vmem:[#allocation4 + $0x60] sm:$0xff]
        %v328 = vld [vmem:[#allocation4 + $0x68] sm:$0xff]
        %v329 = vld [vmem:[#allocation4 + $0x70] sm:$0xff]
        %v330 = vld [vmem:[#allocation4 + $0x78] sm:$0x7]
        %vm331 = vcmask 392192
        %v333 = vsel %vm331, %v315, 0
        %v336 = vsel %vm331, %v316, 0
        %v339 = vsel %vm331, %v317, 0
        %v342 = vsel %vm331, %v318, 0
        %v345 = vsel %vm331, %v319, 0
        %v348 = vsel %vm331, %v320, 0
        %v351 = vsel %vm331, %v321, 0
        %v354 = vsel %vm331, %v322, 0
        %v357 = vsel %vm331, %v323, 0
        %v360 = vsel %vm331, %v324, 0
        %v363 = vsel %vm331, %v325, 0
        %v366 = vsel %vm331, %v326, 0
        %v369 = vsel %vm331, %v327, 0
        %v372 = vsel %vm331, %v328, 0
        %v375 = vsel %vm331, %v329, 0
        %v378 = vsel %vm331, %v330, 0
        %380 = vmatpush.msra.mxu0 0.0
        %381 = vmatpush.msra.mxu0 0.0
        %382 = vmatpush.msra.mxu0 0.0
        %383 = vmatpush.msra.mxu0 0.0
        %384 = vmatpush.msra.mxu0 0.0
        %385 = vmatpush.msra.mxu0 0.0
        %386 = vmatpush.msra.mxu0 0.0
        %387 = vmatpush.msra.mxu0 0.0
        %388 = vmatpush.msra.mxu0 0.0
        %389 = vmatpush.msra.mxu0 0.0
        %390 = vmatpush.msra.mxu0 %v313
        %391 = vmatpush.msra.mxu0 %v310
        %392 = vmatpush.msra.mxu0 %v307
        %393 = vmatpush.msra.mxu0 %v304
        %394 = vmatpush.msra.mxu0 %v301
        %395 = vmatpush.msra.mxu0 %v298
        %396 = vmatmul.f32.gmra.mxu0 %v333
        %v397 = vpop.f32.mrf.mxu0
        %v398 = vadd.f32 0.0, %v397
        %399 = vmatmul.f32.gmra.mxu0 %v336
        %v400 = vpop.f32.mrf.mxu0
        %v401 = vadd.f32 0.0, %v400
        %402 = vmatmul.f32.gmra.mxu0 %v339
        %v403 = vpop.f32.mrf.mxu0
        %v404 = vadd.f32 0.0, %v403
        %405 = vmatmul.f32.gmra.mxu0 %v342
        %v406 = vpop.f32.mrf.mxu0
        %v407 = vadd.f32 0.0, %v406
        %408 = vmatmul.f32.gmra.mxu0 %v345
        %v409 = vpop.f32.mrf.mxu0
        %v410 = vadd.f32 0.0, %v409
        %411 = vmatmul.f32.gmra.mxu0 %v348
        %v412 = vpop.f32.mrf.mxu0
        %v413 = vadd.f32 0.0, %v412
        %414 = vmatmul.f32.gmra.mxu0 %v351
        %v415 = vpop.f32.mrf.mxu0
        %v416 = vadd.f32 0.0, %v415
        %417 = vmatmul.f32.gmra.mxu0 %v354
        %v418 = vpop.f32.mrf.mxu0
        %v419 = vadd.f32 0.0, %v418
        %420 = vmatmul.f32.gmra.mxu0 %v357
        %v421 = vpop.f32.mrf.mxu0
        %v422 = vadd.f32 0.0, %v421
        %423 = vmatmul.f32.gmra.mxu0 %v360
        %v424 = vpop.f32.mrf.mxu0
        %v425 = vadd.f32 0.0, %v424
        %426 = vmatmul.f32.gmra.mxu0 %v363
        %v427 = vpop.f32.mrf.mxu0
        %v428 = vadd.f32 0.0, %v427
        %429 = vmatmul.f32.gmra.mxu0 %v366
        %v430 = vpop.f32.mrf.mxu0
        %v431 = vadd.f32 0.0, %v430
        %432 = vmatmul.f32.gmra.mxu0 %v369
        %v433 = vpop.f32.mrf.mxu0
        %v434 = vadd.f32 0.0, %v433
        %435 = vmatmul.f32.gmra.mxu0 %v372
        %v436 = vpop.f32.mrf.mxu0
        %v437 = vadd.f32 0.0, %v436
        %438 = vmatmul.f32.gmra.mxu0 %v375
        %v439 = vpop.f32.mrf.mxu0
        %v440 = vadd.f32 0.0, %v439
        %441 = vmatmul.f32.gmra.mxu0 %v378
        %v442 = vpop.f32.mrf.mxu0
        %v443 = vadd.f32 0.0, %v442
        %444 = vdwg.mxu0
        %v445 = vld [vmem:[#allocation6] sm:$0xff]
        %v446 = vld [vmem:[#allocation6 + $0x8] sm:$0xff]
        %v447 = vld [vmem:[#allocation6 + $0x10] sm:$0xff]
        %v448 = vld [vmem:[#allocation6 + $0x18] sm:$0xff]
        %v449 = vld [vmem:[#allocation6 + $0x20] sm:$0xff]
        %v450 = vld [vmem:[#allocation6 + $0x28] sm:$0xff]
        %v451 = vld [vmem:[#allocation6 + $0x30] sm:$0xff]
        %v452 = vld [vmem:[#allocation6 + $0x38] sm:$0xff]
        %v453 = vld [vmem:[#allocation6 + $0x40] sm:$0xff]
        %v454 = vld [vmem:[#allocation6 + $0x48] sm:$0xff]
        %v455 = vld [vmem:[#allocation6 + $0x50] sm:$0xff]
        %v456 = vld [vmem:[#allocation6 + $0x58] sm:$0xff]
        %v457 = vld [vmem:[#allocation6 + $0x60] sm:$0xff]
        %v458 = vld [vmem:[#allocation6 + $0x68] sm:$0xff]
        %v459 = vld [vmem:[#allocation6 + $0x70] sm:$0xff]
        %v460 = vld [vmem:[#allocation6 + $0x78] sm:$0x7]
        %v461 = vsub.f32 %v398, %v445
        %v462 = vsub.f32 %v401, %v446
        %v463 = vsub.f32 %v404, %v447
        %v464 = vsub.f32 %v407, %v448
        %v465 = vsub.f32 %v410, %v449
        %v466 = vsub.f32 %v413, %v450
        %v467 = vsub.f32 %v416, %v451
        %v468 = vsub.f32 %v419, %v452
        %v469 = vsub.f32 %v422, %v453
        %v470 = vsub.f32 %v425, %v454
        %v471 = vsub.f32 %v428, %v455
        %v472 = vsub.f32 %v431, %v456
        %v473 = vsub.f32 %v434, %v457
        %v474 = vsub.f32 %v437, %v458
        %v475 = vsub.f32 %v440, %v459
        %v476 = vsub.f32 %v443, %v460
        %vm477 = vcmask 277504
        %478 = vst.msk [vmem:[%s252] sm:$0xff] %vm477, %v461
        %479 = vst.msk [vmem:[%s252 + $0x8] sm:$0xff] %vm477, %v462
        %480 = vst.msk [vmem:[%s252 + $0x10] sm:$0xff] %vm477, %v463
        %481 = vst.msk [vmem:[%s252 + $0x18] sm:$0xff] %vm477, %v464
        %482 = vst.msk [vmem:[%s252 + $0x20] sm:$0xff] %vm477, %v465
        %483 = vst.msk [vmem:[%s252 + $0x28] sm:$0xff] %vm477, %v466
        %484 = vst.msk [vmem:[%s252 + $0x30] sm:$0xff] %vm477, %v467
        %485 = vst.msk [vmem:[%s252 + $0x38] sm:$0xff] %vm477, %v468
        %486 = vst.msk [vmem:[%s252 + $0x40] sm:$0xff] %vm477, %v469
        %487 = vst.msk [vmem:[%s252 + $0x48] sm:$0xff] %vm477, %v470
        %488 = vst.msk [vmem:[%s252 + $0x50] sm:$0xff] %vm477, %v471
        %489 = vst.msk [vmem:[%s252 + $0x58] sm:$0xff] %vm477, %v472
        %490 = vst.msk [vmem:[%s252 + $0x60] sm:$0xff] %vm477, %v473
        %491 = vst.msk [vmem:[%s252 + $0x68] sm:$0xff] %vm477, %v474
        %492 = vst.msk [vmem:[%s252 + $0x70] sm:$0xff] %vm477, %v475
        %vm493 = vcmask 272384
        %494 = vst.msk [vmem:[%s252 + $0x78] sm:$0x7] %vm493, %v476
        %p495 = scmp.lt.s32.totalorder %s19, 1
        %s496 = scalar_select %p495, %s19, 1
        %s497 = smul.addr %s496, 16
        %s498 = smul.addr %s497, 8
        %s499 = scalar_lea.vmem %s4, %s498
        // Predicated region
        $region49: #{vdsr_forward.2} parent=35 // pred_check
          %p500 = pneg %p126
        $region50: #{vdsr_forward.2} parent=35 // pred_check_branch
          %502 = sbr.rel (%p500) target = $region52
        $region51: #{vdsr_forward.2} parent=35 // pred_region
          _
        $region52: #{vdsr_forward.2} parent=35 // pred_fallthru
          _
      $region36: #{vdsr_forward.2} parent=5 // pred_fallthru
        _
      %p503 = scmp.le.s32.totalorder 2, %s14
      // Predicated region
      $region53: #{vdsr_forward.2} parent=5 // pred_check
        %p504 = pneg %p503
      $region54: #{vdsr_forward.2} parent=5 // pred_check_branch
        %506 = sbr.rel (%p504) target = $region56
      $region55: #{vdsr_forward.2} parent=5 // pred_region
        %s507 = ssub.s32 %s14, 2
        // Predicated region
        $region57: #{vdsr_forward.2} parent=55 // pred_check
          %p508 = pneg %p132
        $region58: #{vdsr_forward.2} parent=55 // pred_check_branch
          %510 = sbr.rel (%p508) target = $region60
        $region59: #{vdsr_forward.2} parent=55 // pred_region
          %p511 = scmp.lt.s32.totalorder %s20, 1
          %s512 = scalar_select %p511, %s20, 1
          %s513 = smul.addr %s512, 16
          %s514 = smul.addr %s513, 8
          %s515 = scalar_lea.vmem %s4, %s514
        $region60: #{vdsr_forward.2} parent=55 // pred_fallthru
          _
      $region56: #{vdsr_forward.2} parent=5 // pred_fallthru
        _
    $region6: #{vdsr_forward.2} parent=1 // loop_footer
      %s18 = sadd.s32 1, %s14
    $region7: #{vdsr_forward.2} parent=1 // loop_footer_branch
      %13 = sbr.rel target = $region3
    $region8: #{vdsr_forward.2} parent=1 // loop_exit
      _
    %516 = vsyncpa [#allocation3], 1
    %s517 = scalar_lea.sflag [#allocation3], 1
    %518 = vsyncpa %s517, 1
    %519 = vsyncpa [#allocation5], 1

// kernel: vdsr_forward.3
$region0: #{vdsr_forward.3}
  #allocation0 [shape = 'u32[]', space=smem, size = 0x4, offset = 0x4, fixed_abs, tag = 'smem constant byte address 0x4 - core index']
  #allocation1 [shape = 'u32[72,128]{1,0:T(1,128)}', space=vmem, size = 0x9000, scoped, tag = 'internal scratch']
  #allocation2 [shape = 'bf16[2,16,1664]{2,1,0:T(8,128)(2,1)}', space=vmem, size = 0x1a000, scoped, tag = 'scratch operand']
  %s0 = inlined_call_operand.vmem [shape: f32[2,3,1394], index: 0, kind: input, shape index: {}]
  %s1 = inlined_call_operand.vmem [shape: bf16[3,16,144], index: 1, kind: input, shape index: {}]
  %s2 = inlined_call_operand.vmem [shape: f32[3,16,1], index: 2, kind: input, shape index: {}]
  %s3 = inlined_call_operand.vmem [shape: bf16[8,144], index: 3, kind: input, shape index: {}]
  %s4 = inlined_call_operand.vmem [shape: f32[8,1], index: 4, kind: input, shape index: {}]
  %s5 = inlined_call_operand.vmem [shape: f32[2,3,1156], index: 5, kind: output, shape index: {}]
  %s6 = sld [smem:[#allocation0]]
  $region60: #{vdsr_forward.3} parent=0
    _
  %s8 = ssub.s32 1, %s6
  %s9 = scalar_select 0, %s8, %s6
  loop: start=0, step=1, limit=4
  $region2: #{vdsr_forward.3} parent=0 // loop_pre_header
    _
  $region3: #{vdsr_forward.3} parent=0 // loop_header
    %s11 = sphi 0, %s15
    %p12 = scmp.ge.s32.totalorder %s11, 4
    %s21 = sphi 0, %s23
    %s24 = sphi 0, %s21
    %s25 = sphi 0, %s24
    %s41 = sphi 0, %s25
    %s45 = sphi 0, %s45
    %s47 = sphi 0, %s45
    %s48 = sphi 0, %s47
    %s62 = sphi 0, %s48
    %s66 = sphi 0, %s66
    %s68 = sphi 0, %s66
    %s69 = sphi 0, %s68
    %s83 = sphi 0, %s69
    %s87 = sphi 0, %s87
    %s89 = sphi 0, %s87
    %s90 = sphi 0, %s89
    %s104 = sphi 0, %s90
    %s108 = sphi 0, %s108
    %s110 = sphi 0, %s108
    %s111 = sphi 0, %s110
    %s125 = sphi 0, %s111
    %s131 = sphi 0, %s133
    %s134 = sphi 0, %s131
    %s135 = sphi 0, %s134
    %s151 = sphi 0, %s135
  $region4: #{vdsr_forward.3} parent=0 // loop_header_branch
    %14 = sbr.rel (%p12) target = $region8
  $region5: #{vdsr_forward.3} parent=0 // loop_body
    %s16 = ssub.s32 %s11, 1
    %s17 = ssub.s32 %s11, 2
    %s18 = sadd.s32 %s11, 1
    %s19 = ssub.s32 %s11, %s18
    %p20 = scmp.eq.s32.totalorder %s19, 0
    %s22 = sadd.s32 %s21, 1
    %s23 = scalar_select %p20, %s21, %s22
    %p26 = pneg %p20
    %p27 = scmp.eq.s32.totalorder %s11, 1
    %p28 = por %p26, %p27
    %p29 = scmp.ne.s32.totalorder %s21, %s24
    %p30 = scmp.eq.s32.totalorder %s11, 0
    %p31 = por %p29, %p30
    %p32 = scmp.ne.s32.totalorder %s21, %s24
    %p33 = scmp.eq.s32.totalorder %s16, 1
    %p34 = por %p32, %p33
    %p35 = scmp.ne.s32.totalorder %s24, %s25
    %p36 = scmp.eq.s32.totalorder %s16, 0
    %p37 = por %p35, %p36
    %p38 = scmp.ne.s32.totalorder %s24, %s25
    %p39 = scmp.eq.s32.totalorder %s17, 1
    %p40 = por %p38, %p39
    %p42 = scmp.ne.s32.totalorder %s25, %s41
    %p43 = scmp.eq.s32.totalorder %s17, 0
    %p44 = por %p42, %p43
    %s46 = sadd.s32 %s45, 1
    %p49 = scmp.eq.s32.totalorder %s11, 1
    %p50 = scmp.ne.s32.totalorder %s45, %s47
    %p51 = scmp.eq.s32.totalorder %s11, 0
    %p52 = por %p50, %p51
    %p53 = scmp.ne.s32.totalorder %s45, %s47
    %p54 = scmp.eq.s32.totalorder %s16, 1
    %p55 = por %p53, %p54
    %p56 = scmp.ne.s32.totalorder %s47, %s48
    %p57 = scmp.eq.s32.totalorder %s16, 0
    %p58 = por %p56, %p57
    %p59 = scmp.ne.s32.totalorder %s47, %s48
    %p60 = scmp.eq.s32.totalorder %s17, 1
    %p61 = por %p59, %p60
    %p63 = scmp.ne.s32.totalorder %s48, %s62
    %p64 = scmp.eq.s32.totalorder %s17, 0
    %p65 = por %p63, %p64
    %s67 = sadd.s32 %s66, 1
    %p70 = scmp.eq.s32.totalorder %s11, 1
    %p71 = scmp.ne.s32.totalorder %s66, %s68
    %p72 = scmp.eq.s32.totalorder %s11, 0
    %p73 = por %p71, %p72
    %p74 = scmp.ne.s32.totalorder %s66, %s68
    %p75 = scmp.eq.s32.totalorder %s16, 1
    %p76 = por %p74, %p75
    %p77 = scmp.ne.s32.totalorder %s68, %s69
    %p78 = scmp.eq.s32.totalorder %s16, 0
    %p79 = por %p77, %p78
    %p80 = scmp.ne.s32.totalorder %s68, %s69
    %p81 = scmp.eq.s32.totalorder %s17, 1
    %p82 = por %p80, %p81
    %p84 = scmp.ne.s32.totalorder %s69, %s83
    %p85 = scmp.eq.s32.totalorder %s17, 0
    %p86 = por %p84, %p85
    %s88 = sadd.s32 %s87, 1
    %p91 = scmp.eq.s32.totalorder %s11, 1
    %p92 = scmp.ne.s32.totalorder %s87, %s89
    %p93 = scmp.eq.s32.totalorder %s11, 0
    %p94 = por %p92, %p93
    %p95 = scmp.ne.s32.totalorder %s87, %s89
    %p96 = scmp.eq.s32.totalorder %s16, 1
    %p97 = por %p95, %p96
    %p98 = scmp.ne.s32.totalorder %s89, %s90
    %p99 = scmp.eq.s32.totalorder %s16, 0
    %p100 = por %p98, %p99
    %p101 = scmp.ne.s32.totalorder %s89, %s90
    %p102 = scmp.eq.s32.totalorder %s17, 1
    %p103 = por %p101, %p102
    %p105 = scmp.ne.s32.totalorder %s90, %s104
    %p106 = scmp.eq.s32.totalorder %s17, 0
    %p107 = por %p105, %p106
    %s109 = sadd.s32 %s108, 1
    %p112 = scmp.eq.s32.totalorder %s11, 1
    %p113 = scmp.ne.s32.totalorder %s108, %s110
    %p114 = scmp.eq.s32.totalorder %s11, 0
    %p115 = por %p113, %p114
    %p116 = scmp.ne.s32.totalorder %s108, %s110
    %p117 = scmp.eq.s32.totalorder %s16, 1
    %p118 = por %p116, %p117
    %p119 = scmp.ne.s32.totalorder %s110, %s111
    %p120 = scmp.eq.s32.totalorder %s16, 0
    %p121 = por %p119, %p120
    %p122 = scmp.ne.s32.totalorder %s110, %s111
    %p123 = scmp.eq.s32.totalorder %s17, 1
    %p124 = por %p122, %p123
    %p126 = scmp.ne.s32.totalorder %s111, %s125
    %p127 = scmp.eq.s32.totalorder %s17, 0
    %p128 = por %p126, %p127
    %s129 = ssub.s32 %s11, %s18
    %p130 = scmp.eq.s32.totalorder %s129, 0
    %s132 = sadd.s32 %s131, 1
    %s133 = scalar_select %p130, %s131, %s132
    %p136 = pneg %p130
    %p137 = scmp.eq.s32.totalorder %s11, 1
    %p138 = por %p136, %p137
    %p139 = scmp.ne.s32.totalorder %s131, %s134
    %p140 = scmp.eq.s32.totalorder %s11, 0
    %p141 = por %p139, %p140
    %p142 = scmp.ne.s32.totalorder %s131, %s134
    %p143 = scmp.eq.s32.totalorder %s16, 1
    %p144 = por %p142, %p143
    %p145 = scmp.ne.s32.totalorder %s134, %s135
    %p146 = scmp.eq.s32.totalorder %s16, 0
    %p147 = por %p145, %p146
    %p148 = scmp.ne.s32.totalorder %s134, %s135
    %p149 = scmp.eq.s32.totalorder %s17, 1
    %p150 = por %p148, %p149
    %p152 = scmp.ne.s32.totalorder %s135, %s151
    %p153 = scmp.eq.s32.totalorder %s17, 0
    %p154 = por %p152, %p153
    %p155 = scmp.le.s32.totalorder 1, %s11
    %p156 = scmp.lt.s32.totalorder %s11, 3
    %p157 = pnand %p155, %p156
    %p158 = pneg %p157
    // Predicated region
    $region9: #{vdsr_forward.3} parent=5 // pred_check
      _
    $region10: #{vdsr_forward.3} parent=5 // pred_check_branch
      %160 = sbr.rel (%p157) target = $region12
    $region11: #{vdsr_forward.3} parent=5 // pred_region
      %s161 = ssub.s32 %s11, 1
      // Predicated region
      $region13: #{vdsr_forward.3} parent=11 // pred_check
        %p162 = pneg %p58
      $region14: #{vdsr_forward.3} parent=11 // pred_check_branch
        %164 = sbr.rel (%p162) target = $region16
      $region15: #{vdsr_forward.3} parent=11 // pred_region
        _
      $region16: #{vdsr_forward.3} parent=11 // pred_fallthru
        _
      // Predicated region
      $region17: #{vdsr_forward.3} parent=11 // pred_check
        %p165 = pneg %p79
      $region18: #{vdsr_forward.3} parent=11 // pred_check_branch
        %167 = sbr.rel (%p165) target = $region20
      $region19: #{vdsr_forward.3} parent=11 // pred_region
        _
      $region20: #{vdsr_forward.3} parent=11 // pred_fallthru
        _
      // Predicated region
      $region21: #{vdsr_forward.3} parent=11 // pred_check
        %p168 = pneg %p100
      $region22: #{vdsr_forward.3} parent=11 // pred_check_branch
        %170 = sbr.rel (%p168) target = $region24
      $region23: #{vdsr_forward.3} parent=11 // pred_region
        _
      $region24: #{vdsr_forward.3} parent=11 // pred_fallthru
        _
      // Predicated region
      $region25: #{vdsr_forward.3} parent=11 // pred_check
        %p171 = pneg %p121
      $region26: #{vdsr_forward.3} parent=11 // pred_check_branch
        %173 = sbr.rel (%p171) target = $region28
      $region27: #{vdsr_forward.3} parent=11 // pred_region
        _
      $region28: #{vdsr_forward.3} parent=11 // pred_fallthru
        _
    $region12: #{vdsr_forward.3} parent=5 // pred_fallthru
      _
    %p174 = scmp.lt.s32.totalorder %s11, 2
    // Predicated region
    $region29: #{vdsr_forward.3} parent=5 // pred_check
      %p175 = pneg %p174
    $region30: #{vdsr_forward.3} parent=5 // pred_check_branch
      %177 = sbr.rel (%p175) target = $region32
    $region31: #{vdsr_forward.3} parent=5 // pred_region
      // Predicated region
      $region33: #{vdsr_forward.3} parent=31 // pred_check
        %p178 = pneg %p31
      $region34: #{vdsr_forward.3} parent=31 // pred_check_branch
        %180 = sbr.rel (%p178) target = $region36
      $region35: #{vdsr_forward.3} parent=31 // pred_region
        %p181 = scmp.lt.s32.totalorder %s11, 1
        %s182 = scalar_select %p181, %s11, 1
        %s183 = smul.addr %s182, 11
        %s184 = smul.addr %s183, 4
        %s185 = scalar_lea.vmem %s0, %s184
      $region36: #{vdsr_forward.3} parent=31 // pred_fallthru
        _
    $region32: #{vdsr_forward.3} parent=5 // pred_fallthru
      _
    %p186 = scmp.le.s32.totalorder 1, %s11
    %p187 = scmp.lt.s32.totalorder %s11, 3
    %p188 = pnand %p186, %p187
    %p189 = pneg %p188
    // Predicated region
    $region37: #{vdsr_forward.3} parent=5 // pred_check
      _
    $region38: #{vdsr_forward.3} parent=5 // pred_check_branch
      %191 = sbr.rel (%p188) target = $region40
    $region39: #{vdsr_forward.3} parent=5 // pred_region
      %s192 = ssub.s32 %s11, 1
      %p193 = scmp.lt.s32.totalorder %s16, 1
      %s194 = scalar_select %p193, %s16, 1
      %s195 = smul.addr %s194, 11
      %s196 = smul.addr %s195, 4
      %s197 = scalar_lea.vmem %s0, %s196
      %p198 = pneg %p37
      %p199 = pneg %p34
      %p200 = pneg %p58
      %p201 = pneg %p55
      %p202 = pneg %p79
      %p203 = pneg %p76
      %p204 = pneg %p100
      %p205 = pneg %p97
      %p206 = pneg %p121
      %p207 = pneg %p118
      %p208 = pneg %p147
      %p209 = pneg %p144
      %p210 = scmp.lt.s32.totalorder %s16, 1
      %s211 = scalar_select %p210, %s16, 1
      %s212 = smul.addr %s211, 10
      %s213 = smul.addr %s212, 4
      %s214 = scalar_lea.vmem %s5, %s213
      %p215 = scmp.lt.s32.totalorder %s16, 1
      %s216 = scalar_select %p215, %s16, 1
      %s217 = smul.addr %s216, 11
      %s218 = smul.addr %s217, 4
      %s219 = scalar_lea.vmem %s0, %s218
      %p220 = scmp.lt.s32.totalorder %s16, 1
      %s221 = scalar_select %p220, %s16, 1
      %s222 = smul.addr %s221, 10
      %s223 = smul.addr %s222, 4
      %s224 = scalar_lea.vmem %s5, %s223
      %v226 = vlaneseq
      %v227 = vand.u32 %v226, 127
      %v228 = vadd.s32 %v227, 128
      %v229 = vadd.s32 %v227, 256
      %v230 = vadd.s32 %v227, 384
      %v231 = vadd.s32 %v227, 512
      %v232 = vadd.s32 %v227, 640
      %v233 = vadd.s32 %v227, 768
      %v234 = vadd.s32 %v227, 896
      %v235 = vadd.s32 %v227, 1024
      %v236 = vadd.s32 %v227, 1152
      %vm237 = vcmp.lt.s32.totalorder %v227, 0
      %v238 = vsub.s32 0, %v227
      %v239 = vsel %vm237, %v238, %v227
      %v240 = vand.u32 %v239, 65535
      %v241 = vshrl.u32 %v239, 16
      %v243 = vmul.u32 %v240, 61681
      %v244 = vmul.u32 %v240, 61680
      %v245 = vmul.u32 %v241, 61681
      %v246 = vmul.u32 %v241, 61680
      %v247 = vshll.u32 %v244, 16
      %v248 = vshrl.u32 %v244, 16
      %v249 = vshll.u32 %v245, 16
      %v250 = vshrl.u32 %v245, 16
      %vm251 = vc.u32 %v243, %v247
      %v252 = vsel %vm251, 1, 0
      %v253 = vadd.s32 %v243, %v247
      %v254 = vadd.s32 %v246, %v252
      %vm255 = vc.u32 %v253, %v249
      %v256 = vsel %vm255, 1, 0
      %v257 = vadd.s32 %v253, %v249
      %v258 = vadd.s32 %v254, %v256
      %v259 = vadd.s32 %v258, %v248
      %v260 = vadd.s32 %v259, %v250
      %v261 = vshrl.u32 %v260, 5
      %v262 = vmul.u32 %v261, 34
      %v263 = vsub.s32 %v239, %v262
      %v264 = vsub.s32 0, %v263
      %v265 = vsel %vm237, %v264, %v263
      %vm266 = vcmp.lt.s32.totalorder %v228, 0
      %v267 = vsub.s32 0, %v228
      %v268 = vsel %vm266, %v267, %v228
      %v269 = vand.u32 %v268, 65535
      %v270 = vshrl.u32 %v268, 16
      %v272 = vmul.u32 %v269, 61681
      %v273 = vmul.u32 %v269, 61680
      %v274 = vmul.u32 %v270, 61681
      %v275 = vmul.u32 %v270, 61680
      %v276 = vshll.u32 %v273, 16
      %v277 = vshrl.u32 %v273, 16
      %v278 = vshll.u32 %v274, 16
      %v279 = vshrl.u32 %v274, 16
      %vm280 = vc.u32 %v272, %v276
      %v281 = vsel %vm280, 1, 0
      %v282 = vadd.s32 %v272, %v276
      %v283 = vadd.s32 %v275, %v281
      %vm284 = vc.u32 %v282, %v278
      %v285 = vsel %vm284, 1, 0
      %v286 = vadd.s32 %v282, %v278
      %v287 = vadd.s32 %v283, %v285
      %v288 = vadd.s32 %v287, %v277
      %v289 = vadd.s32 %v288, %v279
      %v290 = vshrl.u32 %v289, 5
      %v291 = vmul.u32 %v290, 34
      %v292 = vsub.s32 %v268, %v291
      %v293 = vsub.s32 0, %v292
      %v294 = vsel %vm266, %v293, %v292
      %vm295 = vcmp.lt.s32.totalorder %v229, 0
      %v296 = vsub.s32 0, %v229
      %v297 = vsel %vm295, %v296, %v229
      %v298 = vand.u32 %v297, 65535
      %v299 = vshrl.u32 %v297, 16
      %v301 = vmul.u32 %v298, 61681
      %v302 = vmul.u32 %v298, 61680
      %v303 = vmul.u32 %v299, 61681
      %v304 = vmul.u32 %v299, 61680
      %v305 = vshll.u32 %v302, 16
      %v306 = vshrl.u32 %v302, 16
      %v307 = vshll.u32 %v303, 16
      %v308 = vshrl.u32 %v303, 16
      %vm309 = vc.u32 %v301, %v305
      %v310 = vsel %vm309, 1, 0
      %v311 = vadd.s32 %v301, %v305
      %v312 = vadd.s32 %v304, %v310
      %vm313 = vc.u32 %v311, %v307
      %v314 = vsel %vm313, 1, 0
      %v315 = vadd.s32 %v311, %v307
      %v316 = vadd.s32 %v312, %v314
      %v317 = vadd.s32 %v316, %v306
      %v318 = vadd.s32 %v317, %v308
      %v319 = vshrl.u32 %v318, 5
      %v320 = vmul.u32 %v319, 34
      %v321 = vsub.s32 %v297, %v320
      %v322 = vsub.s32 0, %v321
      %v323 = vsel %vm295, %v322, %v321
      %vm324 = vcmp.lt.s32.totalorder %v230, 0
      %v325 = vsub.s32 0, %v230
      %v326 = vsel %vm324, %v325, %v230
      %v327 = vand.u32 %v326, 65535
      %v328 = vshrl.u32 %v326, 16
      %v330 = vmul.u32 %v327, 61681
      %v331 = vmul.u32 %v327, 61680
      %v332 = vmul.u32 %v328, 61681
      %v333 = vmul.u32 %v328, 61680
      %v334 = vshll.u32 %v331, 16
      %v335 = vshrl.u32 %v331, 16
      %v336 = vshll.u32 %v332, 16
      %v337 = vshrl.u32 %v332, 16
      %vm338 = vc.u32 %v330, %v334
      %v339 = vsel %vm338, 1, 0
      %v340 = vadd.s32 %v330, %v334
      %v341 = vadd.s32 %v333, %v339
      %vm342 = vc.u32 %v340, %v336
      %v343 = vsel %vm342, 1, 0
      %v344 = vadd.s32 %v340, %v336
      %v345 = vadd.s32 %v341, %v343
      %v346 = vadd.s32 %v345, %v335
      %v347 = vadd.s32 %v346, %v337
      %v348 = vshrl.u32 %v347, 5
      %v349 = vmul.u32 %v348, 34
      %v350 = vsub.s32 %v326, %v349
      %v351 = vsub.s32 0, %v350
      %v352 = vsel %vm324, %v351, %v350
      %vm353 = vcmp.lt.s32.totalorder %v231, 0
      %v354 = vsub.s32 0, %v231
      %v355 = vsel %vm353, %v354, %v231
      %v356 = vand.u32 %v355, 65535
      %v357 = vshrl.u32 %v355, 16
      %v359 = vmul.u32 %v356, 61681
      %v360 = vmul.u32 %v356, 61680
      %v361 = vmul.u32 %v357, 61681
      %v362 = vmul.u32 %v357, 61680
      %v363 = vshll.u32 %v360, 16
      %v364 = vshrl.u32 %v360, 16
      %v365 = vshll.u32 %v361, 16
      %v366 = vshrl.u32 %v361, 16
      %vm367 = vc.u32 %v359, %v363
      %v368 = vsel %vm367, 1, 0
      %v369 = vadd.s32 %v359, %v363
      %v370 = vadd.s32 %v362, %v368
      %vm371 = vc.u32 %v369, %v365
      %v372 = vsel %vm371, 1, 0
      %v373 = vadd.s32 %v369, %v365
      %v374 = vadd.s32 %v370, %v372
      %v375 = vadd.s32 %v374, %v364
      %v376 = vadd.s32 %v375, %v366
      %v377 = vshrl.u32 %v376, 5
      %v378 = vmul.u32 %v377, 34
      %v379 = vsub.s32 %v355, %v378
      %v380 = vsub.s32 0, %v379
      %v381 = vsel %vm353, %v380, %v379
      %vm382 = vcmp.lt.s32.totalorder %v232, 0
      %v383 = vsub.s32 0, %v232
      %v384 = vsel %vm382, %v383, %v232
      %v385 = vand.u32 %v384, 65535
      %v386 = vshrl.u32 %v384, 16
      %v388 = vmul.u32 %v385, 61681
      %v389 = vmul.u32 %v385, 61680
      %v390 = vmul.u32 %v386, 61681
      %v391 = vmul.u32 %v386, 61680
      %v392 = vshll.u32 %v389, 16
      %v393 = vshrl.u32 %v389, 16
      %v394 = vshll.u32 %v390, 16
      %v395 = vshrl.u32 %v390, 16
      %vm396 = vc.u32 %v388, %v392
      %v397 = vsel %vm396, 1, 0
      %v398 = vadd.s32 %v388, %v392
      %v399 = vadd.s32 %v391, %v397
      %vm400 = vc.u32 %v398, %v394
      %v401 = vsel %vm400, 1, 0
      %v402 = vadd.s32 %v398, %v394
      %v403 = vadd.s32 %v399, %v401
      %v404 = vadd.s32 %v403, %v393
      %v405 = vadd.s32 %v404, %v395
      %v406 = vshrl.u32 %v405, 5
      %v407 = vmul.u32 %v406, 34
      %v408 = vsub.s32 %v384, %v407
      %v409 = vsub.s32 0, %v408
      %v410 = vsel %vm382, %v409, %v408
      %vm411 = vcmp.lt.s32.totalorder %v233, 0
      %v412 = vsub.s32 0, %v233
      %v413 = vsel %vm411, %v412, %v233
      %v414 = vand.u32 %v413, 65535
      %v415 = vshrl.u32 %v413, 16
      %v417 = vmul.u32 %v414, 61681
      %v418 = vmul.u32 %v414, 61680
      %v419 = vmul.u32 %v415, 61681
      %v420 = vmul.u32 %v415, 61680
      %v421 = vshll.u32 %v418, 16
      %v422 = vshrl.u32 %v418, 16
      %v423 = vshll.u32 %v419, 16
      %v424 = vshrl.u32 %v419, 16
      %vm425 = vc.u32 %v417, %v421
      %v426 = vsel %vm425, 1, 0
      %v427 = vadd.s32 %v417, %v421
      %v428 = vadd.s32 %v420, %v426
      %vm429 = vc.u32 %v427, %v423
      %v430 = vsel %vm429, 1, 0
      %v431 = vadd.s32 %v427, %v423
      %v432 = vadd.s32 %v428, %v430
      %v433 = vadd.s32 %v432, %v422
      %v434 = vadd.s32 %v433, %v424
      %v435 = vshrl.u32 %v434, 5
      %v436 = vmul.u32 %v435, 34
      %v437 = vsub.s32 %v413, %v436
      %v438 = vsub.s32 0, %v437
      %v439 = vsel %vm411, %v438, %v437
      %vm440 = vcmp.lt.s32.totalorder %v234, 0
      %v441 = vsub.s32 0, %v234
      %v442 = vsel %vm440, %v441, %v234
      %v443 = vand.u32 %v442, 65535
      %v444 = vshrl.u32 %v442, 16
      %v446 = vmul.u32 %v443, 61681
      %v447 = vmul.u32 %v443, 61680
      %v448 = vmul.u32 %v444, 61681
      %v449 = vmul.u32 %v444, 61680
      %v450 = vshll.u32 %v447, 16
      %v451 = vshrl.u32 %v447, 16
      %v452 = vshll.u32 %v448, 16
      %v453 = vshrl.u32 %v448, 16
      %vm454 = vc.u32 %v446, %v450
      %v455 = vsel %vm454, 1, 0
      %v456 = vadd.s32 %v446, %v450
      %v457 = vadd.s32 %v449, %v455
      %vm458 = vc.u32 %v456, %v452
      %v459 = vsel %vm458, 1, 0
      %v460 = vadd.s32 %v456, %v452
      %v461 = vadd.s32 %v457, %v459
      %v462 = vadd.s32 %v461, %v451
      %v463 = vadd.s32 %v462, %v453
      %v464 = vshrl.u32 %v463, 5
      %v465 = vmul.u32 %v464, 34
      %v466 = vsub.s32 %v442, %v465
      %v467 = vsub.s32 0, %v466
      %v468 = vsel %vm440, %v467, %v466
      %vm469 = vcmp.lt.s32.totalorder %v235, 0
      %v470 = vsub.s32 0, %v235
      %v471 = vsel %vm469, %v470, %v235
      %v472 = vand.u32 %v471, 65535
      %v473 = vshrl.u32 %v471, 16
      %v475 = vmul.u32 %v472, 61681
      %v476 = vmul.u32 %v472, 61680
      %v477 = vmul.u32 %v473, 61681
      %v478 = vmul.u32 %v473, 61680
      %v479 = vshll.u32 %v476, 16
      %v480 = vshrl.u32 %v476, 16
      %v481 = vshll.u32 %v477, 16
      %v482 = vshrl.u32 %v477, 16
      %vm483 = vc.u32 %v475, %v479
      %v484 = vsel %vm483, 1, 0
      %v485 = vadd.s32 %v475, %v479
      %v486 = vadd.s32 %v478, %v484
      %vm487 = vc.u32 %v485, %v481
      %v488 = vsel %vm487, 1, 0
      %v489 = vadd.s32 %v485, %v481
      %v490 = vadd.s32 %v486, %v488
      %v491 = vadd.s32 %v490, %v480
      %v492 = vadd.s32 %v491, %v482
      %v493 = vshrl.u32 %v492, 5
      %v494 = vmul.u32 %v493, 34
      %v495 = vsub.s32 %v471, %v494
      %v496 = vsub.s32 0, %v495
      %v497 = vsel %vm469, %v496, %v495
      %vm498 = vcmp.lt.s32.totalorder %v236, 0
      %v499 = vsub.s32 0, %v236
      %v500 = vsel %vm498, %v499, %v236
      %v501 = vand.u32 %v500, 65535
      %v502 = vshrl.u32 %v500, 16
      %v504 = vmul.u32 %v501, 61681
      %v505 = vmul.u32 %v501, 61680
      %v506 = vmul.u32 %v502, 61681
      %v507 = vmul.u32 %v502, 61680
      %v508 = vshll.u32 %v505, 16
      %v509 = vshrl.u32 %v505, 16
      %v510 = vshll.u32 %v506, 16
      %v511 = vshrl.u32 %v506, 16
      %vm512 = vc.u32 %v504, %v508
      %v513 = vsel %vm512, 1, 0
      %v514 = vadd.s32 %v504, %v508
      %v515 = vadd.s32 %v507, %v513
      %vm516 = vc.u32 %v514, %v510
      %v517 = vsel %vm516, 1, 0
      %v518 = vadd.s32 %v514, %v510
      %v519 = vadd.s32 %v515, %v517
      %v520 = vadd.s32 %v519, %v509
      %v521 = vadd.s32 %v520, %v511
      %v522 = vshrl.u32 %v521, 5
      %v523 = vmul.u32 %v522, 34
      %v524 = vsub.s32 %v500, %v523
      %v525 = vsub.s32 0, %v524
      %v526 = vsel %vm498, %v525, %v524
      %vm527 = vcmp.ge.s32.totalorder %v227, 34
      %vm528 = vcmp.ge.s32.totalorder %v228, 34
      %vm529 = vcmp.ge.s32.totalorder %v229, 34
      %vm530 = vcmp.ge.s32.totalorder %v230, 34
      %vm531 = vcmp.ge.s32.totalorder %v231, 34
      %vm532 = vcmp.ge.s32.totalorder %v232, 34
      %vm533 = vcmp.ge.s32.totalorder %v233, 34
      %vm534 = vcmp.ge.s32.totalorder %v234, 34
      %vm535 = vcmp.ge.s32.totalorder %v235, 34
      %vm536 = vcmp.ge.s32.totalorder %v236, 34
      %vm537 = vcmp.lt.s32.totalorder %v227, 1122
      %vm538 = vcmp.lt.s32.totalorder %v228, 1122
      %vm539 = vcmp.lt.s32.totalorder %v229, 1122
      %vm540 = vcmp.lt.s32.totalorder %v230, 1122
      %vm541 = vcmp.lt.s32.totalorder %v231, 1122
      %vm542 = vcmp.lt.s32.totalorder %v232, 1122
      %vm543 = vcmp.lt.s32.totalorder %v233, 1122
      %vm544 = vcmp.lt.s32.totalorder %v234, 1122
      %vm545 = vcmp.lt.s32.totalorder %v235, 1122
      %vm546 = vcmp.lt.s32.totalorder %v236, 1122
      %vm547 = vmand %vm527, %vm537
      %vm548 = vmand %vm528, %vm538
      %vm549 = vmand %vm529, %vm539
      %vm550 = vmand %vm530, %vm540
      %vm551 = vmand %vm531, %vm541
      %vm552 = vmand %vm532, %vm542
      %vm553 = vmand %vm533, %vm543
      %vm554 = vmand %vm534, %vm544
      %vm555 = vmand %vm535, %vm545
      %vm556 = vmand %vm536, %vm546
      %vm557 = vcmp.ge.s32.totalorder %v265, 1
      %vm558 = vcmp.ge.s32.totalorder %v294, 1
      %vm559 = vcmp.ge.s32.totalorder %v323, 1
      %vm560 = vcmp.ge.s32.totalorder %v352, 1
      %vm561 = vcmp.ge.s32.totalorder %v381, 1
      %vm562 = vcmp.ge.s32.totalorder %v410, 1
      %vm563 = vcmp.ge.s32.totalorder %v439, 1
      %vm564 = vcmp.ge.s32.totalorder %v468, 1
      %vm565 = vcmp.ge.s32.totalorder %v497, 1
      %vm566 = vcmp.ge.s32.totalorder %v526, 1
      %vm567 = vcmp.le.s32.totalorder %v265, 32
      %vm568 = vcmp.le.s32.totalorder %v294, 32
      %vm569 = vcmp.le.s32.totalorder %v323, 32
      %vm570 = vcmp.le.s32.totalorder %v352, 32
      %vm571 = vcmp.le.s32.totalorder %v381, 32
      %vm572 = vcmp.le.s32.totalorder %v410, 32
      %vm573 = vcmp.le.s32.totalorder %v439, 32
      %vm574 = vcmp.le.s32.totalorder %v468, 32
      %vm575 = vcmp.le.s32.totalorder %v497, 32
      %vm576 = vcmp.le.s32.totalorder %v526, 32
      %vm577 = vmand %vm557, %vm567
      %vm578 = vmand %vm558, %vm568
      %vm579 = vmand %vm559, %vm569
      %vm580 = vmand %vm560, %vm570
      %vm581 = vmand %vm561, %vm571
      %vm582 = vmand %vm562, %vm572
      %vm583 = vmand %vm563, %vm573
      %vm584 = vmand %vm564, %vm574
      %vm585 = vmand %vm565, %vm575
      %vm586 = vmand %vm566, %vm576
      %vm587 = vmand %vm547, %vm577
      %vm588 = vmand %vm548, %vm578
      %vm589 = vmand %vm549, %vm579
      %vm590 = vmand %vm550, %vm580
      %vm591 = vmand %vm551, %vm581
      %vm592 = vmand %vm552, %vm582
      %vm593 = vmand %vm553, %vm583
      %vm594 = vmand %vm554, %vm584
      %vm595 = vmand %vm555, %vm585
      %vm596 = vmand %vm556, %vm586
      %v597 = vld [vmem:[%s219] sm:$0x77]
      %v598 = vld [vmem:[%s219 + $0x8] sm:$0x77]
      %v599 = vld [vmem:[%s219 + $0x10] sm:$0x77]
      %v600 = vld [vmem:[%s219 + $0x18] sm:$0x77]
      %v601 = vld [vmem:[%s219 + $0x20] sm:$0x77]
      %v602 = vld [vmem:[%s219 + $0x28] sm:$0x7]
      %609 = vst [vmem:[#allocation1] ss:$2 sm:$0xff] %v597
      %s610 = scalar_lea.vmem [#allocation1], 16
      %611 = vst [vmem:[%s610] ss:$2 sm:$0xff] %v598
      %s612 = scalar_lea.vmem [#allocation1], 32
      %613 = vst [vmem:[%s612] ss:$2 sm:$0xff] %v599
      %s614 = scalar_lea.vmem [#allocation1], 48
      %615 = vst [vmem:[%s614] ss:$2 sm:$0xff] %v600
      %v616 = vld.sshfl [vmem:[#allocation1] sm:$0xff pattern:$0x75316420]
      %v617 = vld.sshfl [vmem:[#allocation1 + $0x8] sm:$0xff pattern:$0x75316420]
      %v618 = vld.sshfl [vmem:[#allocation1 + $0x10] sm:$0xff pattern:$0x75316420]
      %v619 = vld.sshfl [vmem:[#allocation1 + $0x18] sm:$0xff pattern:$0x75316420]
      %v620 = vld.sshfl [vmem:[#allocation1 + $0x20] sm:$0xff pattern:$0x75316420]
      %v621 = vld.sshfl [vmem:[#allocation1 + $0x28] sm:$0xff pattern:$0x75316420]
      %v622 = vld.sshfl [vmem:[#allocation1 + $0x30] sm:$0xff pattern:$0x75316420]
      %v623 = vld.sshfl [vmem:[#allocation1 + $0x38] sm:$0xff pattern:$0x75316420]
      %624 = vst [vmem:[#allocation1] ss:$2 sm:$0xff] %v601
      %625 = vst [vmem:[%s610] ss:$2 sm:$0xff] %v602
      %v626 = vld.sshfl [vmem:[#allocation1] sm:$0xff pattern:$0x75316420]
      %v627 = vld.sshfl [vmem:[#allocation1 + $0x8] sm:$0xff pattern:$0x75316420]
      %v628 = vld.sshfl [vmem:[#allocation1 + $0x10] sm:$0xff pattern:$0x75316420]
      %v640 = vpack.c.bf16 %v617, %v616
      %v641 = vpack.c.bf16 %v619, %v618
      %v642 = vpack.c.bf16 %v621, %v620
      %v643 = vpack.c.bf16 %v623, %v622
      %v644 = vpack.c.bf16 %v627, %v626
      %v645 = vpack.c.bf16 %v628, %v628
      %652 = vrot.lane.b32.xlu0 %v640, 60
      %v653 = vpop.permute.xlu0 %652
      %654 = vrot.lane.b32.xlu0 %v641, 60
      %v655 = vpop.permute.xlu0 %654
      %656 = vrot.lane.b32.xlu0 %v642, 60
      %v657 = vpop.permute.xlu0 %656
      %658 = vrot.lane.b32.xlu0 %v643, 60
      %v659 = vpop.permute.xlu0 %658
      %660 = vrot.lane.b32.xlu0 %v644, 60
      %v661 = vpop.permute.xlu0 %660
      %662 = vrot.lane.b32.xlu0 %v645, 60
      %v663 = vpop.permute.xlu0 %662
      %v664 = vrot.slane %v653, 4
      %v665 = vrot.slane %v655, 4
      %v666 = vrot.slane %v657, 4
      %v667 = vrot.slane %v659, 4
      %v668 = vrot.slane %v661, 4
      %v669 = vrot.slane %v663, 4
      %vm670 = vcmask 1043456
      %v671 = vsel %vm670, %v664, %v665
      %vm672 = vcmask 490496
      %v673 = vsel %vm672, %v653, %v671
      %v674 = vsel %vm670, %v665, %v666
      %v675 = vsel %vm672, %v655, %v674
      %v676 = vsel %vm670, %v666, %v667
      %v677 = vsel %vm672, %v657, %v676
      %v678 = vsel %vm670, %v667, %v668
      %v679 = vsel %vm672, %v659, %v678
      %v680 = vsel %vm670, %v668, %v669
      %v681 = vsel %vm672, %v661, %v680
      %vm687 = vcmask 1041408
      %vm688 = vsmask.f32 1280
      %vm689 = vmand %vm687, %vm688
      %vm690 = vcmask 1045508
      %vm691 = vsmask.f32 5376
      %vm692 = vmand %vm690, %vm691
      %vm693 = vmor %vm692, %vm689
      %v694 = vld [vmem:[#allocation2 + $0x4] sm:$0x33]
      %v695 = vsel %vm693, %v673, %v694
      %696 = vst [vmem:[#allocation2 + $0x4] sm:$0x33] %v695
      %v697 = vld [vmem:[#allocation2 + $0xc] sm:$0x33]
      %v698 = vsel %vm693, %v675, %v697
      %699 = vst [vmem:[#allocation2 + $0xc] sm:$0x33] %v698
      %v700 = vld [vmem:[#allocation2 + $0x14] sm:$0x33]
      %v701 = vsel %vm693, %v677, %v700
      %702 = vst [vmem:[#allocation2 + $0x14] sm:$0x33] %v701
      %v703 = vld [vmem:[#allocation2 + $0x1c] sm:$0x33]
      %v704 = vsel %vm693, %v679, %v703
      %705 = vst [vmem:[#allocation2 + $0x1c] sm:$0x33] %v704
      %v706 = vld [vmem:[#allocation2 + $0x24] sm:$0x33]
      %v707 = vsel %vm693, %v681, %v706
      %708 = vst [vmem:[#allocation2 + $0x24] sm:$0x33] %v707
      %vm709 = vcmask 1043457
      %vm710 = vsmask.f32 7942
      %vm711 = vmand %vm709, %vm710
      %vm712 = vcmask 1047557
      %vm713 = vsmask.f32 7958
      %vm714 = vmand %vm712, %vm713
      %vm715 = vmor %vm714, %vm711
      %v716 = vld [vmem:[#allocation2 + $0x4] sm:$0xee]
      %v717 = vsel %vm715, 0, %v716
      %718 = vst [vmem:[#allocation2 + $0x4] sm:$0xee] %v717
      %v719 = vld [vmem:[#allocation2 + $0xc] sm:$0xee]
      %v720 = vsel %vm715, 0, %v719
      %721 = vst [vmem:[#allocation2 + $0xc] sm:$0xee] %v720
      %v722 = vld [vmem:[#allocation2 + $0x14] sm:$0xee]
      %v723 = vsel %vm715, 0, %v722
      %724 = vst [vmem:[#allocation2 + $0x14] sm:$0xee] %v723
      %v725 = vld [vmem:[#allocation2 + $0x1c] sm:$0xee]
      %v726 = vsel %vm715, 0, %v725
      %727 = vst [vmem:[#allocation2 + $0x1c] sm:$0xee] %v726
      %v728 = vld [vmem:[#allocation2 + $0x24] sm:$0xee]
      %v729 = vsel %vm715, 0, %v728
      %730 = vst [vmem:[#allocation2 + $0x24] sm:$0xee] %v729
      %731 = vst [vmem:[#allocation2 + $0x38] sm:$0xff] 0
      %732 = vst [vmem:[#allocation2 + $0x40] sm:$0xff] 0
      %733 = vst [vmem:[#allocation2 + $0x48] sm:$0xff] 0
      %734 = vst [vmem:[#allocation2 + $0x50] sm:$0xff] 0
      %735 = vst [vmem:[#allocation2 + $0x58] sm:$0xff] 0
      loop: start=0, step=1, limit=3
      $region41: #{vdsr_forward.3} parent=39 // loop_pre_header
        _
      $region42: #{vdsr_forward.3} parent=39 // loop_header
        %s737 = sphi 0, %s741
        %p738 = scmp.ge.s32.totalorder %s737, 3
      $region43: #{vdsr_forward.3} parent=39 // loop_header_branch
        %740 = sbr.rel (%p738) target = $region47
      $region44: #{vdsr_forward.3} parent=39 // loop_body
        %p742 = scmp.lt.s32.totalorder %s737, 0
        %s743 = ssub.s32 0, %s737
        %s744 = scalar_select %p742, %s743, %s737
        %s745 = sand.u32 %s744, 1
        %s746 = ssub.s32 0, %s745
        %s747 = scalar_select %p742, %s746, %s745
        %s748 = ssub.s32 1, %s747
        %s749 = smul.u32 %s737, 4
        %s750 = smul.addr %s749, 4
        %s751 = scalar_lea.vmem %s1, %s750
        %v752 = vld [vmem:[%s751] sm:$0xff]
        %v753 = vld [vmem:[%s751 + $0x8] sm:$0xff]
        %s754 = smul.u32 %s747, 26
        %s755 = smul.addr %s754, 4
        %s756 = scalar_lea.vmem [#allocation2], %s755
        %v757 = vld [vmem:[%s756] sm:$0xff]
        %v758 = vld [vmem:[%s756 + $0x8] sm:$0xff]
        %v759 = vld [vmem:[%s756 + $0x10] sm:$0xff]
        %v760 = vld [vmem:[%s756 + $0x18] sm:$0xff]
        %v761 = vld [vmem:[%s756 + $0x20] sm:$0xff]
        %v762 = vld [vmem:[%s756 + $0x28] sm:$0xf]
        %v763 = vld [vmem:[%s756 + $0x34] sm:$0xff]
        %v764 = vld [vmem:[%s756 + $0x3c] sm:$0xff]
        %v765 = vld [vmem:[%s756 + $0x44] sm:$0xff]
        %v766 = vld [vmem:[%s756 + $0x4c] sm:$0xff]
        %v767 = vld [vmem:[%s756 + $0x54] sm:$0xff]
        %v768 = vld [vmem:[%s756 + $0x5c] sm:$0xf]
        %v769 = vld [vmem:[%s756 + $0x4] sm:$0xff]
        %v770 = vld [vmem:[%s756 + $0xc] sm:$0xff]
        %v771 = vld [vmem:[%s756 + $0x14] sm:$0xff]
        %v772 = vld [vmem:[%s756 + $0x1c] sm:$0xff]
        %v773 = vld [vmem:[%s756 + $0x24] sm:$0xff]
        %v774 = vld [vmem:[%s756 + $0x38] sm:$0xff]
        %v775 = vld [vmem:[%s756 + $0x40] sm:$0xff]
        %v776 = vld [vmem:[%s756 + $0x48] sm:$0xff]
        %v777 = vld [vmem:[%s756 + $0x50] sm:$0xff]
        %v778 = vld [vmem:[%s756 + $0x58] sm:$0xff]
        %v779 = vld [vmem:[%s756 + $0x2c] sm:$0xf]
        %v780 = vld [vmem:[%s756 + $0x60] sm:$0xf]
        %v793 = vunpack.c.l.b16 %v757
        %v794 = vunpack.c.h.b16 %v757
        %v795 = vunpack.c.l.b16 %v758
        %v796 = vunpack.c.h.b16 %v758
        %v797 = vunpack.c.l.b16 %v759
        %v798 = vunpack.c.h.b16 %v759
        %v799 = vunpack.c.l.b16 %v760
        %v800 = vunpack.c.h.b16 %v760
        %v801 = vunpack.c.l.b16 %v761
        %v802 = vunpack.c.h.b16 %v761
        %v803 = vunpack.c.l.b16 %v762
        %v804 = vunpack.c.l.b16 %v763
        %v805 = vunpack.c.h.b16 %v763
        %v806 = vunpack.c.l.b16 %v764
        %v807 = vunpack.c.h.b16 %v764
        %v808 = vunpack.c.l.b16 %v765
        %v809 = vunpack.c.h.b16 %v765
        %v810 = vunpack.c.l.b16 %v766
        %v811 = vunpack.c.h.b16 %v766
        %v812 = vunpack.c.l.b16 %v767
        %v813 = vunpack.c.h.b16 %v767
        %v814 = vunpack.c.l.b16 %v768
        %v815 = vpack.c.b16 %v804, %v793
        %v816 = vpack.c.b16 %v805, %v794
        %v817 = vpack.c.b16 %v806, %v795
        %v818 = vpack.c.b16 %v807, %v796
        %v819 = vpack.c.b16 %v808, %v797
        %v820 = vpack.c.b16 %v809, %v798
        %v821 = vpack.c.b16 %v810, %v799
        %v822 = vpack.c.b16 %v811, %v800
        %v823 = vpack.c.b16 %v812, %v801
        %v824 = vpack.c.b16 %v813, %v802
        %v825 = vpack.c.b16 %v814, %v803
        %826 = vrot.lane.b32.xlu0 %v815, 127
        %v827 = vpop.permute.xlu0 %826
        %828 = vrot.lane.b32.xlu0 %v816, 127
        %v829 = vpop.permute.xlu0 %828
        %830 = vrot.lane.b32.xlu0 %v817, 127
        %v831 = vpop.permute.xlu0 %830
        %832 = vrot.lane.b32.xlu0 %v818, 127
        %v833 = vpop.permute.xlu0 %832
        %834 = vrot.lane.b32.xlu0 %v819, 127
        %v835 = vpop.permute.xlu0 %834
        %836 = vrot.lane.b32.xlu0 %v820, 127
        %v837 = vpop.permute.xlu0 %836
        %838 = vrot.lane.b32.xlu0 %v821, 127
        %v839 = vpop.permute.xlu0 %838
        %840 = vrot.lane.b32.xlu0 %v822, 127
        %v841 = vpop.permute.xlu0 %840
        %842 = vrot.lane.b32.xlu0 %v823, 127
        %v843 = vpop.permute.xlu0 %842
        %844 = vrot.lane.b32.xlu0 %v824, 127
        %v845 = vpop.permute.xlu0 %844
        %846 = vrot.lane.b32.xlu0 %v825, 127
        %v847 = vpop.permute.xlu0 %846
        %vm848 = vcmask 1039360
        %v849 = vsel %vm848, %v827, %v829
        %v850 = vsel %vm848, %v829, %v831
        %v851 = vsel %vm848, %v831, %v833
        %v852 = vsel %vm848, %v833, %v835
        %v853 = vsel %vm848, %v835, %v837
        %v854 = vsel %vm848, %v837, %v839
        %v855 = vsel %vm848, %v839, %v841
        %v856 = vsel %vm848, %v841, %v843
        %v857 = vsel %vm848, %v843, %v845
        %v858 = vsel %vm848, %v845, %v847
        %859 = vrot.lane.b32.xlu0 %v815, 126
        %v860 = vpop.permute.xlu0 %859
        %861 = vrot.lane.b32.xlu0 %v816, 126
        %v862 = vpop.permute.xlu0 %861
        %863 = vrot.lane.b32.xlu0 %v817, 126
        %v864 = vpop.permute.xlu0 %863
        %865 = vrot.lane.b32.xlu0 %v818, 126
        %v866 = vpop.permute.xlu0 %865
        %867 = vrot.lane.b32.xlu0 %v819, 126
        %v868 = vpop.permute.xlu0 %867
        %869 = vrot.lane.b32.xlu0 %v820, 126
        %v870 = vpop.permute.xlu0 %869
        %871 = vrot.lane.b32.xlu0 %v821, 126
        %v872 = vpop.permute.xlu0 %871
        %873 = vrot.lane.b32.xlu0 %v822, 126
        %v874 = vpop.permute.xlu0 %873
        %875 = vrot.lane.b32.xlu0 %v823, 126
        %v876 = vpop.permute.xlu0 %875
        %877 = vrot.lane.b32.xlu0 %v824, 126
        %v878 = vpop.permute.xlu0 %877
        %879 = vrot.lane.b32.xlu0 %v825, 126
        %v880 = vpop.permute.xlu0 %879
        %vm881 = vcmask 1031168
        %v882 = vsel %vm881, %v860, %v862
        %v883 = vsel %vm881, %v862, %v864
        %v884 = vsel %vm881, %v864, %v866
        %v885 = vsel %vm881, %v866, %v868
        %v886 = vsel %vm881, %v868, %v870
        %v887 = vsel %vm881, %v870, %v872
        %v888 = vsel %vm881, %v872, %v874
        %v889 = vsel %vm881, %v874, %v876
        %v890 = vsel %vm881, %v876, %v878
        %v891 = vsel %vm881, %v878, %v880
        %892 = vrot.lane.b32.xlu0 %v815, 94
        %v893 = vpop.permute.xlu0 %892
        %894 = vrot.lane.b32.xlu0 %v816, 94
        %v895 = vpop.permute.xlu0 %894
        %896 = vrot.lane.b32.xlu0 %v817, 94
        %v897 = vpop.permute.xlu0 %896
        %898 = vrot.lane.b32.xlu0 %v818, 94
        %v899 = vpop.permute.xlu0 %898
        %900 = vrot.lane.b32.xlu0 %v819, 94
        %v901 = vpop.permute.xlu0 %900
        %902 = vrot.lane.b32.xlu0 %v820, 94
        %v903 = vpop.permute.xlu0 %902
        %904 = vrot.lane.b32.xlu0 %v821, 94
        %v905 = vpop.permute.xlu0 %904
        %906 = vrot.lane.b32.xlu0 %v822, 94
        %v907 = vpop.permute.xlu0 %906
        %908 = vrot.lane.b32.xlu0 %v823, 94
        %v909 = vpop.permute.xlu0 %908
        %910 = vrot.lane.b32.xlu0 %v824, 94
        %v911 = vpop.permute.xlu0 %910
        %912 = vrot.lane.b32.xlu0 %v825, 94
        %v913 = vpop.permute.xlu0 %912
        %vm914 = vcmask 769024
        %v915 = vsel %vm914, %v893, %v895
        %v916 = vsel %vm914, %v895, %v897
        %v917 = vsel %vm914, %v897, %v899
        %v918 = vsel %vm914, %v899, %v901
        %v919 = vsel %vm914, %v901, %v903
        %v920 = vsel %vm914, %v903, %v905
        %v921 = vsel %vm914, %v905, %v907
        %v922 = vsel %vm914, %v907, %v909
        %v923 = vsel %vm914, %v909, %v911
        %v924 = vsel %vm914, %v911, %v913
        %v935 = vunpack.c.l.b16 %v769
        %v936 = vunpack.c.h.b16 %v769
        %v937 = vunpack.c.l.b16 %v770
        %v938 = vunpack.c.h.b16 %v770
        %v939 = vunpack.c.l.b16 %v771
        %v940 = vunpack.c.h.b16 %v771
        %v941 = vunpack.c.l.b16 %v772
        %v942 = vunpack.c.h.b16 %v772
        %v943 = vunpack.c.l.b16 %v773
        %v944 = vunpack.c.h.b16 %v773
        %v945 = vunpack.c.l.b16 %v774
        %v946 = vunpack.c.h.b16 %v774
        %v947 = vunpack.c.l.b16 %v775
        %v948 = vunpack.c.h.b16 %v775
        %v949 = vunpack.c.l.b16 %v776
        %v950 = vunpack.c.h.b16 %v776
        %v951 = vunpack.c.l.b16 %v777
        %v952 = vunpack.c.h.b16 %v777
        %v953 = vunpack.c.l.b16 %v778
        %v954 = vunpack.c.h.b16 %v778
        %v955 = vpack.c.b16 %v945, %v935
        %v956 = vpack.c.b16 %v946, %v936
        %v957 = vpack.c.b16 %v947, %v937
        %v958 = vpack.c.b16 %v948, %v938
        %v959 = vpack.c.b16 %v949, %v939
        %v960 = vpack.c.b16 %v950, %v940
        %v961 = vpack.c.b16 %v951, %v941
        %v962 = vpack.c.b16 %v952, %v942
        %v963 = vpack.c.b16 %v953, %v943
        %v964 = vpack.c.b16 %v954, %v944
        %965 = vrot.lane.b32.xlu0 %v955, 93
        %v966 = vpop.permute.xlu0 %965
        %967 = vrot.lane.b32.xlu0 %v956, 93
        %v968 = vpop.permute.xlu0 %967
        %969 = vrot.lane.b32.xlu0 %v957, 93
        %v970 = vpop.permute.xlu0 %969
        %971 = vrot.lane.b32.xlu0 %v958, 93
        %v972 = vpop.permute.xlu0 %971
        %973 = vrot.lane.b32.xlu0 %v959, 93
        %v974 = vpop.permute.xlu0 %973
        %975 = vrot.lane.b32.xlu0 %v960, 93
        %v976 = vpop.permute.xlu0 %975
        %977 = vrot.lane.b32.xlu0 %v961, 93
        %v978 = vpop.permute.xlu0 %977
        %979 = vrot.lane.b32.xlu0 %v962, 93
        %v980 = vpop.permute.xlu0 %979
        %981 = vrot.lane.b32.xlu0 %v963, 93
        %v982 = vpop.permute.xlu0 %981
        %983 = vrot.lane.b32.xlu0 %v964, 93
        %v984 = vpop.permute.xlu0 %983
        %vm985 = vcmask 760832
        %v986 = vsel %vm985, %v966, %v968
        %v987 = vsel %vm985, %v968, %v970
        %v988 = vsel %vm985, %v970, %v972
        %v989 = vsel %vm985, %v972, %v974
        %v990 = vsel %vm985, %v974, %v976
        %v991 = vsel %vm985, %v976, %v978
        %v992 = vsel %vm985, %v978, %v980
        %v993 = vsel %vm985, %v980, %v982
        %v994 = vsel %vm985, %v982, %v984
        %v997 = vunpack.c.l.b16 %v779
        %v998 = vunpack.c.l.b16 %v780
        %v999 = vpack.c.b16 %v998, %v997
        %1000 = vrot.lane.b32.xlu0 %v955, 92
        %v1001 = vpop.permute.xlu0 %1000
        %1002 = vrot.lane.b32.xlu0 %v956, 92
        %v1003 = vpop.permute.xlu0 %1002
        %1004 = vrot.lane.b32.xlu0 %v957, 92
        %v1005 = vpop.permute.xlu0 %1004
        %1006 = vrot.lane.b32.xlu0 %v958, 92
        %v1007 = vpop.permute.xlu0 %1006
        %1008 = vrot.lane.b32.xlu0 %v959, 92
        %v1009 = vpop.permute.xlu0 %1008
        %1010 = vrot.lane.b32.xlu0 %v960, 92
        %v1011 = vpop.permute.xlu0 %1010
        %1012 = vrot.lane.b32.xlu0 %v961, 92
        %v1013 = vpop.permute.xlu0 %1012
        %1014 = vrot.lane.b32.xlu0 %v962, 92
        %v1015 = vpop.permute.xlu0 %1014
        %1016 = vrot.lane.b32.xlu0 %v963, 92
        %v1017 = vpop.permute.xlu0 %1016
        %1018 = vrot.lane.b32.xlu0 %v964, 92
        %v1019 = vpop.permute.xlu0 %1018
        %1020 = vrot.lane.b32.xlu0 %v999, 92
        %v1021 = vpop.permute.xlu0 %1020
        %vm1022 = vcmask 752640
        %v1023 = vsel %vm1022, %v1001, %v1003
        %v1024 = vsel %vm1022, %v1003, %v1005
        %v1025 = vsel %vm1022, %v1005, %v1007
        %v1026 = vsel %vm1022, %v1007, %v1009
        %v1027 = vsel %vm1022, %v1009, %v1011
        %v1028 = vsel %vm1022, %v1011, %v1013
        %v1029 = vsel %vm1022, %v1013, %v1015
        %v1030 = vsel %vm1022, %v1015, %v1017
        %v1031 = vsel %vm1022, %v1017, %v1019
        %v1032 = vsel %vm1022, %v1019, %v1021
        %1033 = vrot.lane.b32.xlu0 %v955, 60
        %v1034 = vpop.permute.xlu0 %1033
        %1035 = vrot.lane.b32.xlu0 %v956, 60
        %v1036 = vpop.permute.xlu0 %1035
        %1037 = vrot.lane.b32.xlu0 %v957, 60
        %v1038 = vpop.permute.xlu0 %1037
        %1039 = vrot.lane.b32.xlu0 %v958, 60
        %v1040 = vpop.permute.xlu0 %1039
        %1041 = vrot.lane.b32.xlu0 %v959, 60
        %v1042 = vpop.permute.xlu0 %1041
        %1043 = vrot.lane.b32.xlu0 %v960, 60
        %v1044 = vpop.permute.xlu0 %1043
        %1045 = vrot.lane.b32.xlu0 %v961, 60
        %v1046 = vpop.permute.xlu0 %1045
        %1047 = vrot.lane.b32.xlu0 %v962, 60
        %v1048 = vpop.permute.xlu0 %1047
        %1049 = vrot.lane.b32.xlu0 %v963, 60
        %v1050 = vpop.permute.xlu0 %1049
        %1051 = vrot.lane.b32.xlu0 %v964, 60
        %v1052 = vpop.permute.xlu0 %1051
        %1053 = vrot.lane.b32.xlu0 %v999, 60
        %v1054 = vpop.permute.xlu0 %1053
        %v1055 = vsel %vm672, %v1034, %v1036
        %v1056 = vsel %vm672, %v1036, %v1038
        %v1057 = vsel %vm672, %v1038, %v1040
        %v1058 = vsel %vm672, %v1040, %v1042
        %v1059 = vsel %vm672, %v1042, %v1044
        %v1060 = vsel %vm672, %v1044, %v1046
        %v1061 = vsel %vm672, %v1046, %v1048
        %v1062 = vsel %vm672, %v1048, %v1050
        %v1063 = vsel %vm672, %v1050, %v1052
        %v1064 = vsel %vm672, %v1052, %v1054
        %1065 = vrot.lane.b32.xlu0 %v955, 59
        %v1066 = vpop.permute.xlu0 %1065
        %1067 = vrot.lane.b32.xlu0 %v956, 59
        %v1068 = vpop.permute.xlu0 %1067
        %1069 = vrot.lane.b32.xlu0 %v957, 59
        %v1070 = vpop.permute.xlu0 %1069
        %1071 = vrot.lane.b32.xlu0 %v958, 59
        %v1072 = vpop.permute.xlu0 %1071
        %1073 = vrot.lane.b32.xlu0 %v959, 59
        %v1074 = vpop.permute.xlu0 %1073
        %1075 = vrot.lane.b32.xlu0 %v960, 59
        %v1076 = vpop.permute.xlu0 %1075
        %1077 = vrot.lane.b32.xlu0 %v961, 59
        %v1078 = vpop.permute.xlu0 %1077
        %1079 = vrot.lane.b32.xlu0 %v962, 59
        %v1080 = vpop.permute.xlu0 %1079
        %1081 = vrot.lane.b32.xlu0 %v963, 59
        %v1082 = vpop.permute.xlu0 %1081
        %1083 = vrot.lane.b32.xlu0 %v964, 59
        %v1084 = vpop.permute.xlu0 %1083
        %1085 = vrot.lane.b32.xlu0 %v999, 59
        %v1086 = vpop.permute.xlu0 %1085
        %vm1087 = vcmask 482304
        %v1088 = vsel %vm1087, %v1066, %v1068
        %v1089 = vsel %vm1087, %v1068, %v1070
        %v1090 = vsel %vm1087, %v1070, %v1072
        %v1091 = vsel %vm1087, %v1072, %v1074
        %v1092 = vsel %vm1087, %v1074, %v1076
        %v1093 = vsel %vm1087, %v1076, %v1078
        %v1094 = vsel %vm1087, %v1078, %v1080
        %v1095 = vsel %vm1087, %v1080, %v1082
        %v1096 = vsel %vm1087, %v1082, %v1084
        %v1097 = vsel %vm1087, %v1084, %v1086
        %1098 = vrot.lane.b32.xlu0 %v955, 58
        %v1099 = vpop.permute.xlu0 %1098
        %1100 = vrot.lane.b32.xlu0 %v956, 58
        %v1101 = vpop.permute.xlu0 %1100
        %1102 = vrot.lane.b32.xlu0 %v957, 58
        %v1103 = vpop.permute.xlu0 %1102
        %1104 = vrot.lane.b32.xlu0 %v958, 58
        %v1105 = vpop.permute.xlu0 %1104
        %1106 = vrot.lane.b32.xlu0 %v959, 58
        %v1107 = vpop.permute.xlu0 %1106
        %1108 = vrot.lane.b32.xlu0 %v960, 58
        %v1109 = vpop.permute.xlu0 %1108
        %1110 = vrot.lane.b32.xlu0 %v961, 58
        %v1111 = vpop.permute.xlu0 %1110
        %1112 = vrot.lane.b32.xlu0 %v962, 58
        %v1113 = vpop.permute.xlu0 %1112
        %1114 = vrot.lane.b32.xlu0 %v963, 58
        %v1115 = vpop.permute.xlu0 %1114
        %1116 = vrot.lane.b32.xlu0 %v964, 58
        %v1117 = vpop.permute.xlu0 %1116
        %1118 = vrot.lane.b32.xlu0 %v999, 58
        %v1119 = vpop.permute.xlu0 %1118
        %vm1120 = vcmask 474112
        %v1121 = vsel %vm1120, %v1099, %v1101
        %v1122 = vsel %vm1120, %v1101, %v1103
        %v1123 = vsel %vm1120, %v1103, %v1105
        %v1124 = vsel %vm1120, %v1105, %v1107
        %v1125 = vsel %vm1120, %v1107, %v1109
        %v1126 = vsel %vm1120, %v1109, %v1111
        %v1127 = vsel %vm1120, %v1111, %v1113
        %v1128 = vsel %vm1120, %v1113, %v1115
        %v1129 = vsel %vm1120, %v1115, %v1117
        %v1130 = vsel %vm1120, %v1117, %v1119
        %s1131 = smul.u32 %s737, 16
        %s1132 = scalar_lea.vmem %s2, %s1131
        %v1133 = vld [vmem:[%s1132] sm:$0xff]
        %v1134 = vld [vmem:[%s1132 + $0x8] sm:$0xff]
        %1136 = vset.pattern.permute.xlu0 0
        %1137 = vperm.xlu0 %1136, %v1133
        %v1138 = vpop.permute.xlu0 %1137
        %1141 = vset.pattern.permute.xlu0 0
        %1142 = vperm.xlu0 %1141, %v1134
        %v1143 = vpop.permute.xlu0 %1142
        %v1147 = vunpack.c.l.b16 %v752
        %v1148 = vunpack.c.h.b16 %v752
        %v1149 = vunpack.c.l.b16 %v753
        %v1150 = vunpack.c.h.b16 %v753
        %v1151 = vpack.c.b16 %v1149, %v1147
        %v1152 = vpack.c.b16 %v1150, %v1148
        %1154 = vrot.lane.b32.xlu0 %v815, 35
        %v1155 = vpop.permute.xlu0 %1154
        %1156 = vrot.lane.b32.xlu0 %v816, 35
        %v1157 = vpop.permute.xlu0 %1156
        %1158 = vrot.lane.b32.xlu0 %v817, 35
        %v1159 = vpop.permute.xlu0 %1158
        %1160 = vrot.lane.b32.xlu0 %v818, 35
        %v1161 = vpop.permute.xlu0 %1160
        %1162 = vrot.lane.b32.xlu0 %v819, 35
        %v1163 = vpop.permute.xlu0 %1162
        %1164 = vrot.lane.b32.xlu0 %v820, 35
        %v1165 = vpop.permute.xlu0 %1164
        %1166 = vrot.lane.b32.xlu0 %v821, 35
        %v1167 = vpop.permute.xlu0 %1166
        %1168 = vrot.lane.b32.xlu0 %v822, 35
        %v1169 = vpop.permute.xlu0 %1168
        %1170 = vrot.lane.b32.xlu0 %v823, 35
        %v1171 = vpop.permute.xlu0 %1170
        %1172 = vrot.lane.b32.xlu0 %v824, 35
        %v1173 = vpop.permute.xlu0 %1172
        %1174 = vrot.lane.b32.xlu0 %v825, 35
        %v1175 = vpop.permute.xlu0 %1174
        %1176 = vrot.lane.b32.xlu0 %v849, 35
        %v1177 = vpop.permute.xlu0 %1176
        %1178 = vrot.lane.b32.xlu0 %v850, 35
        %v1179 = vpop.permute.xlu0 %1178
        %1180 = vrot.lane.b32.xlu0 %v851, 35
        %v1181 = vpop.permute.xlu0 %1180
        %1182 = vrot.lane.b32.xlu0 %v852, 35
        %v1183 = vpop.permute.xlu0 %1182
        %1184 = vrot.lane.b32.xlu0 %v853, 35
        %v1185 = vpop.permute.xlu0 %1184
        %1186 = vrot.lane.b32.xlu0 %v854, 35
        %v1187 = vpop.permute.xlu0 %1186
        %1188 = vrot.lane.b32.xlu0 %v855, 35
        %v1189 = vpop.permute.xlu0 %1188
        %1190 = vrot.lane.b32.xlu0 %v856, 35
        %v1191 = vpop.permute.xlu0 %1190
        %1192 = vrot.lane.b32.xlu0 %v857, 35
        %v1193 = vpop.permute.xlu0 %1192
        %1194 = vrot.lane.b32.xlu0 %v858, 35
        %v1195 = vpop.permute.xlu0 %1194
        %1196 = vrot.lane.b32.xlu0 %v847, 35
        %v1197 = vpop.permute.xlu0 %1196
        %1198 = vrot.lane.b32.xlu0 %v882, 35
        %v1199 = vpop.permute.xlu0 %1198
        %1200 = vrot.lane.b32.xlu0 %v883, 35
        %v1201 = vpop.permute.xlu0 %1200
        %1202 = vrot.lane.b32.xlu0 %v884, 35
        %v1203 = vpop.permute.xlu0 %1202
        %1204 = vrot.lane.b32.xlu0 %v885, 35
        %v1205 = vpop.permute.xlu0 %1204
        %1206 = vrot.lane.b32.xlu0 %v886, 35
        %v1207 = vpop.permute.xlu0 %1206
        %1208 = vrot.lane.b32.xlu0 %v887, 35
        %v1209 = vpop.permute.xlu0 %1208
        %1210 = vrot.lane.b32.xlu0 %v888, 35
        %v1211 = vpop.permute.xlu0 %1210
        %1212 = vrot.lane.b32.xlu0 %v889, 35
        %v1213 = vpop.permute.xlu0 %1212
        %1214 = vrot.lane.b32.xlu0 %v890, 35
        %v1215 = vpop.permute.xlu0 %1214
        %1216 = vrot.lane.b32.xlu0 %v891, 35
        %v1217 = vpop.permute.xlu0 %1216
        %1218 = vrot.lane.b32.xlu0 %v880, 35
        %v1219 = vpop.permute.xlu0 %1218
        %1220 = vrot.lane.b32.xlu0 %v915, 35
        %v1221 = vpop.permute.xlu0 %1220
        %1222 = vrot.lane.b32.xlu0 %v916, 35
        %v1223 = vpop.permute.xlu0 %1222
        %1224 = vrot.lane.b32.xlu0 %v917, 35
        %v1225 = vpop.permute.xlu0 %1224
        %1226 = vrot.lane.b32.xlu0 %v918, 35
        %v1227 = vpop.permute.xlu0 %1226
        %1228 = vrot.lane.b32.xlu0 %v919, 35
        %v1229 = vpop.permute.xlu0 %1228
        %1230 = vrot.lane.b32.xlu0 %v920, 35
        %v1231 = vpop.permute.xlu0 %1230
        %1232 = vrot.lane.b32.xlu0 %v921, 35
        %v1233 = vpop.permute.xlu0 %1232
        %1234 = vrot.lane.b32.xlu0 %v922, 35
        %v1235 = vpop.permute.xlu0 %1234
        %1236 = vrot.lane.b32.xlu0 %v923, 35
        %v1237 = vpop.permute.xlu0 %1236
        %1238 = vrot.lane.b32.xlu0 %v924, 35
        %v1239 = vpop.permute.xlu0 %1238
        %1240 = vrot.lane.b32.xlu0 %v913, 35
        %v1241 = vpop.permute.xlu0 %1240
        %1242 = vrot.lane.b32.xlu0 %v966, 35
        %v1243 = vpop.permute.xlu0 %1242
        %1244 = vrot.lane.b32.xlu0 %v986, 35
        %v1245 = vpop.permute.xlu0 %1244
        %1246 = vrot.lane.b32.xlu0 %v987, 35
        %v1247 = vpop.permute.xlu0 %1246
        %1248 = vrot.lane.b32.xlu0 %v988, 35
        %v1249 = vpop.permute.xlu0 %1248
        %1250 = vrot.lane.b32.xlu0 %v989, 35
        %v1251 = vpop.permute.xlu0 %1250
        %1252 = vrot.lane.b32.xlu0 %v990, 35
        %v1253 = vpop.permute.xlu0 %1252
        %1254 = vrot.lane.b32.xlu0 %v991, 35
        %v1255 = vpop.permute.xlu0 %1254
        %1256 = vrot.lane.b32.xlu0 %v992, 35
        %v1257 = vpop.permute.xlu0 %1256
        %1258 = vrot.lane.b32.xlu0 %v993, 35
        %v1259 = vpop.permute.xlu0 %1258
        %1260 = vrot.lane.b32.xlu0 %v994, 35
        %v1261 = vpop.permute.xlu0 %1260
        %1262 = vrot.lane.b32.xlu0 %v984, 35
        %v1263 = vpop.permute.xlu0 %1262
        %1264 = vrot.lane.b32.xlu0 %v1001, 35
        %v1265 = vpop.permute.xlu0 %1264
        %1266 = vrot.lane.b32.xlu0 %v1023, 35
        %v1267 = vpop.permute.xlu0 %1266
        %1268 = vrot.lane.b32.xlu0 %v1024, 35
        %v1269 = vpop.permute.xlu0 %1268
        %1270 = vrot.lane.b32.xlu0 %v1025, 35
        %v1271 = vpop.permute.xlu0 %1270
        %1272 = vrot.lane.b32.xlu0 %v1026, 35
        %v1273 = vpop.permute.xlu0 %1272
        %1274 = vrot.lane.b32.xlu0 %v1027, 35
        %v1275 = vpop.permute.xlu0 %1274
        %1276 = vrot.lane.b32.xlu0 %v1028, 35
        %v1277 = vpop.permute.xlu0 %1276
        %1278 = vrot.lane.b32.xlu0 %v1029, 35
        %v1279 = vpop.permute.xlu0 %1278
        %1280 = vrot.lane.b32.xlu0 %v1030, 35
        %v1281 = vpop.permute.xlu0 %1280
        %1282 = vrot.lane.b32.xlu0 %v1031, 35
        %v1283 = vpop.permute.xlu0 %1282
        %1284 = vrot.lane.b32.xlu0 %v1032, 35
        %v1285 = vpop.permute.xlu0 %1284
        %1286 = vrot.lane.b32.xlu0 %v1034, 35
        %v1287 = vpop.permute.xlu0 %1286
        %1288 = vrot.lane.b32.xlu0 %v1055, 35
        %v1289 = vpop.permute.xlu0 %1288
        %1290 = vrot.lane.b32.xlu0 %v1056, 35
        %v1291 = vpop.permute.xlu0 %1290
        %1292 = vrot.lane.b32.xlu0 %v1057, 35
        %v1293 = vpop.permute.xlu0 %1292
        %1294 = vrot.lane.b32.xlu0 %v1058, 35
        %v1295 = vpop.permute.xlu0 %1294
        %1296 = vrot.lane.b32.xlu0 %v1059, 35
        %v1297 = vpop.permute.xlu0 %1296
        %1298 = vrot.lane.b32.xlu0 %v1060, 35
        %v1299 = vpop.permute.xlu0 %1298
        %1300 = vrot.lane.b32.xlu0 %v1061, 35
        %v1301 = vpop.permute.xlu0 %1300
        %1302 = vrot.lane.b32.xlu0 %v1062, 35
        %v1303 = vpop.permute.xlu0 %1302
        %1304 = vrot.lane.b32.xlu0 %v1063, 35
        %v1305 = vpop.permute.xlu0 %1304
        %1306 = vrot.lane.b32.xlu0 %v1064, 35
        %v1307 = vpop.permute.xlu0 %1306
        %1308 = vrot.lane.b32.xlu0 %v1066, 35
        %v1309 = vpop.permute.xlu0 %1308
        %1310 = vrot.lane.b32.xlu0 %v1088, 35
        %v1311 = vpop.permute.xlu0 %1310
        %1312 = vrot.lane.b32.xlu0 %v1089, 35
        %v1313 = vpop.permute.xlu0 %1312
        %1314 = vrot.lane.b32.xlu0 %v1090, 35
        %v1315 = vpop.permute.xlu0 %1314
        %1316 = vrot.lane.b32.xlu0 %v1091, 35
        %v1317 = vpop.permute.xlu0 %1316
        %1318 = vrot.lane.b32.xlu0 %v1092, 35
        %v1319 = vpop.permute.xlu0 %1318
        %1320 = vrot.lane.b32.xlu0 %v1093, 35
        %v1321 = vpop.permute.xlu0 %1320
        %1322 = vrot.lane.b32.xlu0 %v1094, 35
        %v1323 = vpop.permute.xlu0 %1322
        %1324 = vrot.lane.b32.xlu0 %v1095, 35
        %v1325 = vpop.permute.xlu0 %1324
        %1326 = vrot.lane.b32.xlu0 %v1096, 35
        %v1327 = vpop.permute.xlu0 %1326
        %1328 = vrot.lane.b32.xlu0 %v1097, 35
        %v1329 = vpop.permute.xlu0 %1328
        %1330 = vrot.lane.b32.xlu0 %v1099, 35
        %v1331 = vpop.permute.xlu0 %1330
        %1332 = vrot.lane.b32.xlu0 %v1121, 35
        %v1333 = vpop.permute.xlu0 %1332
        %1334 = vrot.lane.b32.xlu0 %v1122, 35
        %v1335 = vpop.permute.xlu0 %1334
        %1336 = vrot.lane.b32.xlu0 %v1123, 35
        %v1337 = vpop.permute.xlu0 %1336
        %1338 = vrot.lane.b32.xlu0 %v1124, 35
        %v1339 = vpop.permute.xlu0 %1338
        %1340 = vrot.lane.b32.xlu0 %v1125, 35
        %v1341 = vpop.permute.xlu0 %1340
        %1342 = vrot.lane.b32.xlu0 %v1126, 35
        %v1343 = vpop.permute.xlu0 %1342
        %1344 = vrot.lane.b32.xlu0 %v1127, 35
        %v1345 = vpop.permute.xlu0 %1344
        %1346 = vrot.lane.b32.xlu0 %v1128, 35
        %v1347 = vpop.permute.xlu0 %1346
        %1348 = vrot.lane.b32.xlu0 %v1129, 35
        %v1349 = vpop.permute.xlu0 %1348
        %1350 = vrot.lane.b32.xlu0 %v1130, 35
        %v1351 = vpop.permute.xlu0 %1350
        %vm1352 = vcmask 285696
        %v1353 = vsel %vm1352, %v1155, %v1157
        %v1354 = vsel %vm1352, %v1157, %v1159
        %v1355 = vsel %vm1352, %v1159, %v1161
        %v1356 = vsel %vm1352, %v1161, %v1163
        %v1357 = vsel %vm1352, %v1163, %v1165
        %v1358 = vsel %vm1352, %v1165, %v1167
        %v1359 = vsel %vm1352, %v1167, %v1169
        %v1360 = vsel %vm1352, %v1169, %v1171
        %v1361 = vsel %vm1352, %v1171, %v1173
        %v1362 = vsel %vm1352, %v1173, %v1175
        %v1363 = vsel %vm1352, %v1177, %v1179
        %v1364 = vsel %vm1352, %v1179, %v1181
        %v1365 = vsel %vm1352, %v1181, %v1183
        %v1366 = vsel %vm1352, %v1183, %v1185
        %v1367 = vsel %vm1352, %v1185, %v1187
        %v1368 = vsel %vm1352, %v1187, %v1189
        %v1369 = vsel %vm1352, %v1189, %v1191
        %v1370 = vsel %vm1352, %v1191, %v1193
        %v1371 = vsel %vm1352, %v1193, %v1195
        %v1372 = vsel %vm1352, %v1195, %v1197
        %v1373 = vsel %vm1352, %v1199, %v1201
        %v1374 = vsel %vm1352, %v1201, %v1203
        %v1375 = vsel %vm1352, %v1203, %v1205
        %v1376 = vsel %vm1352, %v1205, %v1207
        %v1377 = vsel %vm1352, %v1207, %v1209
        %v1378 = vsel %vm1352, %v1209, %v1211
        %v1379 = vsel %vm1352, %v1211, %v1213
        %v1380 = vsel %vm1352, %v1213, %v1215
        %v1381 = vsel %vm1352, %v1215, %v1217
        %v1382 = vsel %vm1352, %v1217, %v1219
        %v1383 = vsel %vm1352, %v1221, %v1223
        %v1384 = vsel %vm1352, %v1223, %v1225
        %v1385 = vsel %vm1352, %v1225, %v1227
        %v1386 = vsel %vm1352, %v1227, %v1229
        %v1387 = vsel %vm1352, %v1229, %v1231
        %v1388 = vsel %vm1352, %v1231, %v1233
        %v1389 = vsel %vm1352, %v1233, %v1235
        %v1390 = vsel %vm1352, %v1235, %v1237
        %v1391 = vsel %vm1352, %v1237, %v1239
        %v1392 = vsel %vm1352, %v1239, %v1241
        %v1393 = vsel %vm1352, %v1243, %v1245
        %v1394 = vsel %vm1352, %v1245, %v1247
        %v1395 = vsel %vm1352, %v1247, %v1249
        %v1396 = vsel %vm1352, %v1249, %v1251
        %v1397 = vsel %vm1352, %v1251, %v1253
        %v1398 = vsel %vm1352, %v1253, %v1255
        %v1399 = vsel %vm1352, %v1255, %v1257
        %v1400 = vsel %vm1352, %v1257, %v1259
        %v1401 = vsel %vm1352, %v1259, %v1261
        %v1402 = vsel %vm1352, %v1261, %v1263
        %v1403 = vsel %vm1352, %v1265, %v1267
        %v1404 = vsel %vm1352, %v1267, %v1269
        %v1405 = vsel %vm1352, %v1269, %v1271
        %v1406 = vsel %vm1352, %v1271, %v1273
        %v1407 = vsel %vm1352, %v1273, %v1275
        %v1408 = vsel %vm1352, %v1275, %v1277
        %v1409 = vsel %vm1352, %v1277, %v1279
        %v1410 = vsel %vm1352, %v1279, %v1281
        %v1411 = vsel %vm1352, %v1281, %v1283
        %v1412 = vsel %vm1352, %v1283, %v1285
        %v1413 = vsel %vm1352, %v1287, %v1289
        %v1414 = vsel %vm1352, %v1289, %v1291
        %v1415 = vsel %vm1352, %v1291, %v1293
        %v1416 = vsel %vm1352, %v1293, %v1295
        %v1417 = vsel %vm1352, %v1295, %v1297
        %v1418 = vsel %vm1352, %v1297, %v1299
        %v1419 = vsel %vm1352, %v1299, %v1301
        %v1420 = vsel %vm1352, %v1301, %v1303
        %v1421 = vsel %vm1352, %v1303, %v1305
        %v1422 = vsel %vm1352, %v1305, %v1307
        %v1423 = vsel %vm1352, %v1309, %v1311
        %v1424 = vsel %vm1352, %v1311, %v1313
        %v1425 = vsel %vm1352, %v1313, %v1315
        %v1426 = vsel %vm1352, %v1315, %v1317
        %v1427 = vsel %vm1352, %v1317, %v1319
        %v1428 = vsel %vm1352, %v1319, %v1321
        %v1429 = vsel %vm1352, %v1321, %v1323
        %v1430 = vsel %vm1352, %v1323, %v1325
        %v1431 = vsel %vm1352, %v1325, %v1327
        %v1432 = vsel %vm1352, %v1327, %v1329
        %v1433 = vsel %vm1352, %v1331, %v1333
        %v1434 = vsel %vm1352, %v1333, %v1335
        %v1435 = vsel %vm1352, %v1335, %v1337
        %v1436 = vsel %vm1352, %v1337, %v1339
        %v1437 = vsel %vm1352, %v1339, %v1341
        %v1438 = vsel %vm1352, %v1341, %v1343
        %v1439 = vsel %vm1352, %v1343, %v1345
        %v1440 = vsel %vm1352, %v1345, %v1347
        %v1441 = vsel %vm1352, %v1347, %v1349
        %v1442 = vsel %vm1352, %v1349, %v1351
        %vm1533 = vcmask 130048
        %v1535 = vsel %vm1533, %v1152, 0
        %1537 = vmatpush.bf16.msra.mxu0 %v1423
        %1538 = vmatpush.bf16.msra.mxu0 %v1413
        %1539 = vmatpush.bf16.msra.mxu0 %v1403
        %1540 = vmatpush.bf16.msra.mxu0 %v1393
        %1541 = vmatpush.bf16.msra.mxu0 %v1383
        %1542 = vmatpush.bf16.msra.mxu0 %v1373
        %1543 = vmatpush.bf16.msra.mxu0 %v1363
        %1544 = vmatpush.bf16.msra.mxu0 %v1353
        %1545 = vmatmul.bf16.gmra.mxu0 %v1151
        %v1546 = vpop.f32.mrf.mxu0
        %v1547 = vadd.f32 %v1138, %v1546
        %v1548 = vpop.f32.mrf.mxu0
        %v1549 = vadd.f32 %v1143, %v1548
        %1550 = vdwg.mxu0
        %1551 = vmatpush.bf16.msra.mxu0 0
        %1552 = vmatpush.bf16.msra.mxu0 0
        %1553 = vmatpush.bf16.msra.mxu0 0
        %1554 = vmatpush.bf16.msra.mxu0 0
        %1555 = vmatpush.bf16.msra.mxu0 0
        %1556 = vmatpush.bf16.msra.mxu0 0
        %1557 = vmatpush.bf16.msra.mxu0 0
        %1558 = vmatpush.bf16.msra.mxu0 %v1433
        %1559 = vmatmul.bf16.gmra.mxu0 %v1535
        %v1560 = vpop.f32.mrf.mxu0
        %v1561 = vadd.f32 %v1547, %v1560
        %v1562 = vpop.f32.mrf.mxu0
        %v1563 = vadd.f32 %v1549, %v1562
        %1564 = vdwg.mxu0
        %1565 = vmatpush.bf16.msra.mxu0 %v1424
        %1566 = vmatpush.bf16.msra.mxu0 %v1414
        %1567 = vmatpush.bf16.msra.mxu0 %v1404
        %1568 = vmatpush.bf16.msra.mxu0 %v1394
        %1569 = vmatpush.bf16.msra.mxu0 %v1384
        %1570 = vmatpush.bf16.msra.mxu0 %v1374
        %1571 = vmatpush.bf16.msra.mxu0 %v1364
        %1572 = vmatpush.bf16.msra.mxu0 %v1354
        %1573 = vmatmul.bf16.gmra.mxu0 %v1151
        %v1574 = vpop.f32.mrf.mxu0
        %v1575 = vadd.f32 %v1138, %v1574
        %v1576 = vpop.f32.mrf.mxu0
        %v1577 = vadd.f32 %v1143, %v1576
        %1578 = vdwg.mxu0
        %1579 = vmatpush.bf16.msra.mxu0 0
        %1580 = vmatpush.bf16.msra.mxu0 0
        %1581 = vmatpush.bf16.msra.mxu0 0
        %1582 = vmatpush.bf16.msra.mxu0 0
        %1583 = vmatpush.bf16.msra.mxu0 0
        %1584 = vmatpush.bf16.msra.mxu0 0
        %1585 = vmatpush.bf16.msra.mxu0 0
        %1586 = vmatpush.bf16.msra.mxu0 %v1434
        %1587 = vmatmul.bf16.gmra.mxu0 %v1535
        %v1588 = vpop.f32.mrf.mxu0
        %v1589 = vadd.f32 %v1575, %v1588
        %v1590 = vpop.f32.mrf.mxu0
        %v1591 = vadd.f32 %v1577, %v1590
        %1592 = vdwg.mxu0
        %1593 = vmatpush.bf16.msra.mxu0 %v1425
        %1594 = vmatpush.bf16.msra.mxu0 %v1415
        %1595 = vmatpush.bf16.msra.mxu0 %v1405
        %1596 = vmatpush.bf16.msra.mxu0 %v1395
        %1597 = vmatpush.bf16.msra.mxu0 %v1385
        %1598 = vmatpush.bf16.msra.mxu0 %v1375
        %1599 = vmatpush.bf16.msra.mxu0 %v1365
        %1600 = vmatpush.bf16.msra.mxu0 %v1355
        %1601 = vmatmul.bf16.gmra.mxu0 %v1151
        %v1602 = vpop.f32.mrf.mxu0
        %v1603 = vadd.f32 %v1138, %v1602
        %v1604 = vpop.f32.mrf.mxu0
        %v1605 = vadd.f32 %v1143, %v1604
        %1606 = vdwg.mxu0
        %1607 = vmatpush.bf16.msra.mxu0 0
        %1608 = vmatpush.bf16.msra.mxu0 0
        %1609 = vmatpush.bf16.msra.mxu0 0
        %1610 = vmatpush.bf16.msra.mxu0 0
        %1611 = vmatpush.bf16.msra.mxu0 0
        %1612 = vmatpush.bf16.msra.mxu0 0
        %1613 = vmatpush.bf16.msra.mxu0 0
        %1614 = vmatpush.bf16.msra.mxu0 %v1435
        %1615 = vmatmul.bf16.gmra.mxu0 %v1535
        %v1616 = vpop.f32.mrf.mxu0
        %v1617 = vadd.f32 %v1603, %v1616
        %v1618 = vpop.f32.mrf.mxu0
        %v1619 = vadd.f32 %v1605, %v1618
        %1620 = vdwg.mxu0
        %1621 = vmatpush.bf16.msra.mxu0 %v1426
        %1622 = vmatpush.bf16.msra.mxu0 %v1416
        %1623 = vmatpush.bf16.msra.mxu0 %v1406
        %1624 = vmatpush.bf16.msra.mxu0 %v1396
        %1625 = vmatpush.bf16.msra.mxu0 %v1386
        %1626 = vmatpush.bf16.msra.mxu0 %v1376
        %1627 = vmatpush.bf16.msra.mxu0 %v1366
        %1628 = vmatpush.bf16.msra.mxu0 %v1356
        %1629 = vmatmul.bf16.gmra.mxu0 %v1151
        %v1630 = vpop.f32.mrf.mxu0
        %v1631 = vadd.f32 %v1138, %v1630
        %v1632 = vpop.f32.mrf.mxu0
        %v1633 = vadd.f32 %v1143, %v1632
        %1634 = vdwg.mxu0
        %1635 = vmatpush.bf16.msra.mxu0 0
        %1636 = vmatpush.bf16.msra.mxu0 0
        %1637 = vmatpush.bf16.msra.mxu0 0
        %1638 = vmatpush.bf16.msra.mxu0 0
        %1639 = vmatpush.bf16.msra.mxu0 0
        %1640 = vmatpush.bf16.msra.mxu0 0
        %1641 = vmatpush.bf16.msra.mxu0 0
        %1642 = vmatpush.bf16.msra.mxu0 %v1436
        %1643 = vmatmul.bf16.gmra.mxu0 %v1535
        %v1644 = vpop.f32.mrf.mxu0
        %v1645 = vadd.f32 %v1631, %v1644
        %v1646 = vpop.f32.mrf.mxu0
        %v1647 = vadd.f32 %v1633, %v1646
        %1648 = vdwg.mxu0
        %1649 = vmatpush.bf16.msra.mxu0 %v1427
        %1650 = vmatpush.bf16.msra.mxu0 %v1417
        %1651 = vmatpush.bf16.msra.mxu0 %v1407
        %1652 = vmatpush.bf16.msra.mxu0 %v1397
        %1653 = vmatpush.bf16.msra.mxu0 %v1387
        %1654 = vmatpush.bf16.msra.mxu0 %v1377
        %1655 = vmatpush.bf16.msra.mxu0 %v1367
        %1656 = vmatpush.bf16.msra.mxu0 %v1357
        %1657 = vmatmul.bf16.gmra.mxu0 %v1151
        %v1658 = vpop.f32.mrf.mxu0
        %v1659 = vadd.f32 %v1138, %v1658
        %v1660 = vpop.f32.mrf.mxu0
        %v1661 = vadd.f32 %v1143, %v1660
        %1662 = vdwg.mxu0
        %1663 = vmatpush.bf16.msra.mxu0 0
        %1664 = vmatpush.bf16.msra.mxu0 0
        %1665 = vmatpush.bf16.msra.mxu0 0
        %1666 = vmatpush.bf16.msra.mxu0 0
        %1667 = vmatpush.bf16.msra.mxu0 0
        %1668 = vmatpush.bf16.msra.mxu0 0
        %1669 = vmatpush.bf16.msra.mxu0 0
        %1670 = vmatpush.bf16.msra.mxu0 %v1437
        %1671 = vmatmul.bf16.gmra.mxu0 %v1535
        %v1672 = vpop.f32.mrf.mxu0
        %v1673 = vadd.f32 %v1659, %v1672
        %v1674 = vpop.f32.mrf.mxu0
        %v1675 = vadd.f32 %v1661, %v1674
        %1676 = vdwg.mxu0
        %1677 = vmatpush.bf16.msra.mxu0 %v1428
        %1678 = vmatpush.bf16.msra.mxu0 %v1418
        %1679 = vmatpush.bf16.msra.mxu0 %v1408
        %1680 = vmatpush.bf16.msra.mxu0 %v1398
        %1681 = vmatpush.bf16.msra.mxu0 %v1388
        %1682 = vmatpush.bf16.msra.mxu0 %v1378
        %1683 = vmatpush.bf16.msra.mxu0 %v1368
        %1684 = vmatpush.bf16.msra.mxu0 %v1358
        %1685 = vmatmul.bf16.gmra.mxu0 %v1151
        %v1686 = vpop.f32.mrf.mxu0
        %v1687 = vadd.f32 %v1138, %v1686
        %v1688 = vpop.f32.mrf.mxu0
        %v1689 = vadd.f32 %v1143, %v1688
        %1690 = vdwg.mxu0
        %1691 = vmatpush.bf16.msra.mxu0 0
        %1692 = vmatpush.bf16.msra.mxu0 0
        %1693 = vmatpush.bf16.msra.mxu0 0
        %1694 = vmatpush.bf16.msra.mxu0 0
        %1695 = vmatpush.bf16.msra.mxu0 0
        %1696 = vmatpush.bf16.msra.mxu0 0
        %1697 = vmatpush.bf16.msra.mxu0 0
        %1698 = vmatpush.bf16.msra.mxu0 %v1438
        %1699 = vmatmul.bf16.gmra.mxu0 %v1535
        %v1700 = vpop.f32.mrf.mxu0
        %v1701 = vadd.f32 %v1687, %v1700
        %v1702 = vpop.f32.mrf.mxu0
        %v1703 = vadd.f32 %v1689, %v1702
        %1704 = vdwg.mxu0
        %1705 = vmatpush.bf16.msra.mxu0 %v1429
        %1706 = vmatpush.bf16.msra.mxu0 %v1419
        %1707 = vmatpush.bf16.msra.mxu0 %v1409
        %1708 = vmatpush.bf16.msra.mxu0 %v1399
        %1709 = vmatpush.bf16.msra.mxu0 %v1389
        %1710 = vmatpush.bf16.msra.mxu0 %v1379
        %1711 = vmatpush.bf16.msra.mxu0 %v1369
        %1712 = vmatpush.bf16.msra.mxu0 %v1359
        %1713 = vmatmul.bf16.gmra.mxu0 %v1151
        %v1714 = vpop.f32.mrf.mxu0
        %v1715 = vadd.f32 %v1138, %v1714
        %v1716 = vpop.f32.mrf.mxu0
        %v1717 = vadd.f32 %v1143, %v1716
        %1718 = vdwg.mxu0
        %1719 = vmatpush.bf16.msra.mxu0 0
        %1720 = vmatpush.bf16.msra.mxu0 0
        %1721 = vmatpush.bf16.msra.mxu0 0
        %1722 = vmatpush.bf16.msra.mxu0 0
        %1723 = vmatpush.bf16.msra.mxu0 0
        %1724 = vmatpush.bf16.msra.mxu0 0
        %1725 = vmatpush.bf16.msra.mxu0 0
        %1726 = vmatpush.bf16.msra.mxu0 %v1439
        %1727 = vmatmul.bf16.gmra.mxu0 %v1535
        %v1728 = vpop.f32.mrf.mxu0
        %v1729 = vadd.f32 %v1715, %v1728
        %v1730 = vpop.f32.mrf.mxu0
        %v1731 = vadd.f32 %v1717, %v1730
        %1732 = vdwg.mxu0
        %1733 = vmatpush.bf16.msra.mxu0 %v1430
        %1734 = vmatpush.bf16.msra.mxu0 %v1420
        %1735 = vmatpush.bf16.msra.mxu0 %v1410
        %1736 = vmatpush.bf16.msra.mxu0 %v1400
        %1737 = vmatpush.bf16.msra.mxu0 %v1390
        %1738 = vmatpush.bf16.msra.mxu0 %v1380
        %1739 = vmatpush.bf16.msra.mxu0 %v1370
        %1740 = vmatpush.bf16.msra.mxu0 %v1360
        %1741 = vmatmul.bf16.gmra.mxu0 %v1151
        %v1742 = vpop.f32.mrf.mxu0
        %v1743 = vadd.f32 %v1138, %v1742
        %v1744 = vpop.f32.mrf.mxu0
        %v1745 = vadd.f32 %v1143, %v1744
        %1746 = vdwg.mxu0
        %1747 = vmatpush.bf16.msra.mxu0 0
        %1748 = vmatpush.bf16.msra.mxu0 0
        %1749 = vmatpush.bf16.msra.mxu0 0
        %1750 = vmatpush.bf16.msra.mxu0 0
        %1751 = vmatpush.bf16.msra.mxu0 0
        %1752 = vmatpush.bf16.msra.mxu0 0
        %1753 = vmatpush.bf16.msra.mxu0 0
        %1754 = vmatpush.bf16.msra.mxu0 %v1440
        %1755 = vmatmul.bf16.gmra.mxu0 %v1535
        %v1756 = vpop.f32.mrf.mxu0
        %v1757 = vadd.f32 %v1743, %v1756
        %v1758 = vpop.f32.mrf.mxu0
        %v1759 = vadd.f32 %v1745, %v1758
        %1760 = vdwg.mxu0
        %1761 = vmatpush.bf16.msra.mxu0 %v1431
        %1762 = vmatpush.bf16.msra.mxu0 %v1421
        %1763 = vmatpush.bf16.msra.mxu0 %v1411
        %1764 = vmatpush.bf16.msra.mxu0 %v1401
        %1765 = vmatpush.bf16.msra.mxu0 %v1391
        %1766 = vmatpush.bf16.msra.mxu0 %v1381
        %1767 = vmatpush.bf16.msra.mxu0 %v1371
        %1768 = vmatpush.bf16.msra.mxu0 %v1361
        %1769 = vmatmul.bf16.gmra.mxu0 %v1151
        %v1770 = vpop.f32.mrf.mxu0
        %v1771 = vadd.f32 %v1138, %v1770
        %v1772 = vpop.f32.mrf.mxu0
        %v1773 = vadd.f32 %v1143, %v1772
        %1774 = vdwg.mxu0
        %1775 = vmatpush.bf16.msra.mxu0 0
        %1776 = vmatpush.bf16.msra.mxu0 0
        %1777 = vmatpush.bf16.msra.mxu0 0
        %1778 = vmatpush.bf16.msra.mxu0 0
        %1779 = vmatpush.bf16.msra.mxu0 0
        %1780 = vmatpush.bf16.msra.mxu0 0
        %1781 = vmatpush.bf16.msra.mxu0 0
        %1782 = vmatpush.bf16.msra.mxu0 %v1441
        %1783 = vmatmul.bf16.gmra.mxu0 %v1535
        %v1784 = vpop.f32.mrf.mxu0
        %v1785 = vadd.f32 %v1771, %v1784
        %v1786 = vpop.f32.mrf.mxu0
        %v1787 = vadd.f32 %v1773, %v1786
        %1788 = vdwg.mxu0
        %1789 = vmatpush.bf16.msra.mxu0 %v1432
        %1790 = vmatpush.bf16.msra.mxu0 %v1422
        %1791 = vmatpush.bf16.msra.mxu0 %v1412
        %1792 = vmatpush.bf16.msra.mxu0 %v1402
        %1793 = vmatpush.bf16.msra.mxu0 %v1392
        %1794 = vmatpush.bf16.msra.mxu0 %v1382
        %1795 = vmatpush.bf16.msra.mxu0 %v1372
        %1796 = vmatpush.bf16.msra.mxu0 %v1362
        %1797 = vmatmul.bf16.gmra.mxu0 %v1151
        %v1798 = vpop.f32.mrf.mxu0
        %v1799 = vadd.f32 %v1138, %v1798
        %v1800 = vpop.f32.mrf.mxu0
        %v1801 = vadd.f32 %v1143, %v1800
        %1802 = vdwg.mxu0
        %1803 = vmatpush.bf16.msra.mxu0 0
        %1804 = vmatpush.bf16.msra.mxu0 0
        %1805 = vmatpush.bf16.msra.mxu0 0
        %1806 = vmatpush.bf16.msra.mxu0 0
        %1807 = vmatpush.bf16.msra.mxu0 0
        %1808 = vmatpush.bf16.msra.mxu0 0
        %1809 = vmatpush.bf16.msra.mxu0 0
        %1810 = vmatpush.bf16.msra.mxu0 %v1442
        %1811 = vmatmul.bf16.gmra.mxu0 %v1535
        %v1812 = vpop.f32.mrf.mxu0
        %v1813 = vadd.f32 %v1799, %v1812
        %v1814 = vpop.f32.mrf.mxu0
        %v1815 = vadd.f32 %v1801, %v1814
        %1816 = vdwg.mxu0
        %v1817 = vmax.f32 %v1561, 0.0
        %v1818 = vmax.f32 %v1589, 0.0
        %v1819 = vmax.f32 %v1617, 0.0
        %v1820 = vmax.f32 %v1645, 0.0
        %v1821 = vmax.f32 %v1673, 0.0
        %v1822 = vmax.f32 %v1701, 0.0
        %v1823 = vmax.f32 %v1729, 0.0
        %v1824 = vmax.f32 %v1757, 0.0
        %v1825 = vmax.f32 %v1785, 0.0
        %v1826 = vmax.f32 %v1813, 0.0
        %v1827 = vmax.f32 %v1563, 0.0
        %v1828 = vmax.f32 %v1591, 0.0
        %v1829 = vmax.f32 %v1619, 0.0
        %v1830 = vmax.f32 %v1647, 0.0
        %v1831 = vmax.f32 %v1675, 0.0
        %v1832 = vmax.f32 %v1703, 0.0
        %v1833 = vmax.f32 %v1731, 0.0
        %v1834 = vmax.f32 %v1759, 0.0
        %v1835 = vmax.f32 %v1787, 0.0
        %v1836 = vmax.f32 %v1815, 0.0
        %v1837 = vsel %vm587, 1, 0
        %v1838 = vsel %vm588, 1, 0
        %v1839 = vsel %vm589, 1, 0
        %v1840 = vsel %vm590, 1, 0
        %v1841 = vsel %vm591, 1, 0
        %v1842 = vsel %vm592, 1, 0
        %v1843 = vsel %vm593, 1, 0
        %v1844 = vsel %vm594, 1, 0
        %v1845 = vsel %vm595, 1, 0
        %v1846 = vsel %vm596, 1, 0
        %vm1847 = vcmp.eq.s32.totalorder %v1837, 1
        %vm1848 = vcmp.eq.s32.totalorder %v1838, 1
        %vm1849 = vcmp.eq.s32.totalorder %v1839, 1
        %vm1850 = vcmp.eq.s32.totalorder %v1840, 1
        %vm1851 = vcmp.eq.s32.totalorder %v1841, 1
        %vm1852 = vcmp.eq.s32.totalorder %v1842, 1
        %vm1853 = vcmp.eq.s32.totalorder %v1843, 1
        %vm1854 = vcmp.eq.s32.totalorder %v1844, 1
        %vm1855 = vcmp.eq.s32.totalorder %v1845, 1
        %vm1856 = vcmp.eq.s32.totalorder %v1846, 1
        %v1857 = vsel %vm1847, %v1817, 0.0
        %v1858 = vsel %vm1848, %v1818, 0.0
        %v1859 = vsel %vm1849, %v1819, 0.0
        %v1860 = vsel %vm1850, %v1820, 0.0
        %v1861 = vsel %vm1851, %v1821, 0.0
        %v1862 = vsel %vm1852, %v1822, 0.0
        %v1863 = vsel %vm1853, %v1823, 0.0
        %v1864 = vsel %vm1854, %v1824, 0.0
        %v1865 = vsel %vm1855, %v1825, 0.0
        %v1866 = vsel %vm1856, %v1826, 0.0
        %v1867 = vsel %vm1847, %v1827, 0.0
        %v1868 = vsel %vm1848, %v1828, 0.0
        %v1869 = vsel %vm1849, %v1829, 0.0
        %v1870 = vsel %vm1850, %v1830, 0.0
        %v1871 = vsel %vm1851, %v1831, 0.0
        %v1872 = vsel %vm1852, %v1832, 0.0
        %v1873 = vsel %vm1853, %v1833, 0.0
        %v1874 = vsel %vm1854, %v1834, 0.0
        %v1875 = vsel %vm1855, %v1835, 0.0
        %v1876 = vsel %vm1856, %v1836, 0.0
        %v1877 = vpack.c.bf16 %v1858, %v1857
        %v1878 = vpack.c.bf16 %v1860, %v1859
        %v1879 = vpack.c.bf16 %v1862, %v1861
        %v1880 = vpack.c.bf16 %v1864, %v1863
        %v1881 = vpack.c.bf16 %v1866, %v1865
        %v1882 = vpack.c.bf16 %v1868, %v1867
        %v1883 = vpack.c.bf16 %v1870, %v1869
        %v1884 = vpack.c.bf16 %v1872, %v1871
        %v1885 = vpack.c.bf16 %v1874, %v1873
        %v1886 = vpack.c.bf16 %v1876, %v1875
        %s1887 = smul.u32 %s748, 26
        %s1888 = smul.addr %s1887, 4
        %s1889 = scalar_lea.vmem [#allocation2], %s1888
        %1890 = vst [vmem:[%s1889 + $0x4] sm:$0xff] %v1877
        %1891 = vst [vmem:[%s1889 + $0xc] sm:$0xff] %v1878
        %1892 = vst [vmem:[%s1889 + $0x14] sm:$0xff] %v1879
        %1893 = vst [vmem:[%s1889 + $0x1c] sm:$0xff] %v1880
        %1894 = vst [vmem:[%s1889 + $0x24] sm:$0xff] %v1881
        %1895 = vst [vmem:[%s1889 + $0x38] sm:$0xff] %v1882
        %1896 = vst [vmem:[%s1889 + $0x40] sm:$0xff] %v1883
        %1897 = vst [vmem:[%s1889 + $0x48] sm:$0xff] %v1884
        %1898 = vst [vmem:[%s1889 + $0x50] sm:$0xff] %v1885
        %1899 = vst [vmem:[%s1889 + $0x58] sm:$0xff] %v1886
      $region45: #{vdsr_forward.3} parent=39 // loop_footer
        %s741 = sadd.s32 1, %s737
      $region46: #{vdsr_forward.3} parent=39 // loop_footer_branch
        %736 = sbr.rel target = $region42
      $region47: #{vdsr_forward.3} parent=39 // loop_exit
        _
      %v1900 = vld [vmem:[%s3] sm:$0xff]
      %s1901 = scalar_lea.vmem [#allocation2], 104
      %v1902 = vld [vmem:[%s1901] sm:$0xff]
      %v1903 = vld [vmem:[%s1901 + $0x8] sm:$0xff]
      %v1904 = vld [vmem:[%s1901 + $0x10] sm:$0xff]
      %v1905 = vld [vmem:[%s1901 + $0x18] sm:$0xff]
      %v1906 = vld [vmem:[%s1901 + $0x20] sm:$0xff]
      %v1907 = vld [vmem:[%s1901 + $0x28] sm:$0xf]
      %v1908 = vld [vmem:[%s1901 + $0x34] sm:$0xff]
      %v1909 = vld [vmem:[%s1901 + $0x3c] sm:$0xff]
      %v1910 = vld [vmem:[%s1901 + $0x44] sm:$0xff]
      %v1911 = vld [vmem:[%s1901 + $0x4c] sm:$0xff]
      %v1912 = vld [vmem:[%s1901 + $0x54] sm:$0xff]
      %v1913 = vld [vmem:[%s1901 + $0x5c] sm:$0xf]
      %v1914 = vld [vmem:[%s1901 + $0x4] sm:$0xff]
      %v1915 = vld [vmem:[%s1901 + $0xc] sm:$0xff]
      %v1916 = vld [vmem:[%s1901 + $0x14] sm:$0xff]
      %v1917 = vld [vmem:[%s1901 + $0x1c] sm:$0xff]
      %v1918 = vld [vmem:[%s1901 + $0x24] sm:$0xff]
      %v1919 = vld [vmem:[%s1901 + $0x38] sm:$0xff]
      %v1920 = vld [vmem:[%s1901 + $0x40] sm:$0xff]
      %v1921 = vld [vmem:[%s1901 + $0x48] sm:$0xff]
      %v1922 = vld [vmem:[%s1901 + $0x50] sm:$0xff]
      %v1923 = vld [vmem:[%s1901 + $0x58] sm:$0xff]
      %v1924 = vld [vmem:[%s1901 + $0x2c] sm:$0xf]
      %v1925 = vld [vmem:[%s1901 + $0x60] sm:$0xf]
      %v1938 = vunpack.c.l.b16 %v1902
      %v1939 = vunpack.c.h.b16 %v1902
      %v1940 = vunpack.c.l.b16 %v1903
      %v1941 = vunpack.c.h.b16 %v1903
      %v1942 = vunpack.c.l.b16 %v1904
      %v1943 = vunpack.c.h.b16 %v1904
      %v1944 = vunpack.c.l.b16 %v1905
      %v1945 = vunpack.c.h.b16 %v1905
      %v1946 = vunpack.c.l.b16 %v1906
      %v1947 = vunpack.c.h.b16 %v1906
      %v1948 = vunpack.c.l.b16 %v1907
      %v1949 = vunpack.c.l.b16 %v1908
      %v1950 = vunpack.c.h.b16 %v1908
      %v1951 = vunpack.c.l.b16 %v1909
      %v1952 = vunpack.c.h.b16 %v1909
      %v1953 = vunpack.c.l.b16 %v1910
      %v1954 = vunpack.c.h.b16 %v1910
      %v1955 = vunpack.c.l.b16 %v1911
      %v1956 = vunpack.c.h.b16 %v1911
      %v1957 = vunpack.c.l.b16 %v1912
      %v1958 = vunpack.c.h.b16 %v1912
      %v1959 = vunpack.c.l.b16 %v1913
      %v1960 = vpack.c.b16 %v1949, %v1938
      %v1961 = vpack.c.b16 %v1950, %v1939
      %v1962 = vpack.c.b16 %v1951, %v1940
      %v1963 = vpack.c.b16 %v1952, %v1941
      %v1964 = vpack.c.b16 %v1953, %v1942
      %v1965 = vpack.c.b16 %v1954, %v1943
      %v1966 = vpack.c.b16 %v1955, %v1944
      %v1967 = vpack.c.b16 %v1956, %v1945
      %v1968 = vpack.c.b16 %v1957, %v1946
      %v1969 = vpack.c.b16 %v1958, %v1947
      %v1970 = vpack.c.b16 %v1959, %v1948
      %1971 = vrot.lane.b32.xlu0 %v1960, 127
      %v1972 = vpop.permute.xlu0 %1971
      %1973 = vrot.lane.b32.xlu0 %v1961, 127
      %v1974 = vpop.permute.xlu0 %1973
      %1975 = vrot.lane.b32.xlu0 %v1962, 127
      %v1976 = vpop.permute.xlu0 %1975
      %1977 = vrot.lane.b32.xlu0 %v1963, 127
      %v1978 = vpop.permute.xlu0 %1977
      %1979 = vrot.lane.b32.xlu0 %v1964, 127
      %v1980 = vpop.permute.xlu0 %1979
      %1981 = vrot.lane.b32.xlu0 %v1965, 127
      %v1982 = vpop.permute.xlu0 %1981
      %1983 = vrot.lane.b32.xlu0 %v1966, 127
      %v1984 = vpop.permute.xlu0 %1983
      %1985 = vrot.lane.b32.xlu0 %v1967, 127
      %v1986 = vpop.permute.xlu0 %1985
      %1987 = vrot.lane.b32.xlu0 %v1968, 127
      %v1988 = vpop.permute.xlu0 %1987
      %1989 = vrot.lane.b32.xlu0 %v1969, 127
      %v1990 = vpop.permute.xlu0 %1989
      %1991 = vrot.lane.b32.xlu0 %v1970, 127
      %v1992 = vpop.permute.xlu0 %1991
      %vm1993 = vcmask 1039360
      %v1994 = vsel %vm1993, %v1972, %v1974
      %v1995 = vsel %vm1993, %v1974, %v1976
      %v1996 = vsel %vm1993, %v1976, %v1978
      %v1997 = vsel %vm1993, %v1978, %v1980
      %v1998 = vsel %vm1993, %v1980, %v1982
      %v1999 = vsel %vm1993, %v1982, %v1984
      %v2000 = vsel %vm1993, %v1984, %v1986
      %v2001 = vsel %vm1993, %v1986, %v1988
      %v2002 = vsel %vm1993, %v1988, %v1990
      %v2003 = vsel %vm1993, %v1990, %v1992
      %2004 = vrot.lane.b32.xlu0 %v1960, 126
      %v2005 = vpop.permute.xlu0 %2004
      %2006 = vrot.lane.b32.xlu0 %v1961, 126
      %v2007 = vpop.permute.xlu0 %2006
      %2008 = vrot.lane.b32.xlu0 %v1962, 126
      %v2009 = vpop.permute.xlu0 %2008
      %2010 = vrot.lane.b32.xlu0 %v1963, 126
      %v2011 = vpop.permute.xlu0 %2010
      %2012 = vrot.lane.b32.xlu0 %v1964, 126
      %v2013 = vpop.permute.xlu0 %2012
      %2014 = vrot.lane.b32.xlu0 %v1965, 126
      %v2015 = vpop.permute.xlu0 %2014
      %2016 = vrot.lane.b32.xlu0 %v1966, 126
      %v2017 = vpop.permute.xlu0 %2016
      %2018 = vrot.lane.b32.xlu0 %v1967, 126
      %v2019 = vpop.permute.xlu0 %2018
      %2020 = vrot.lane.b32.xlu0 %v1968, 126
      %v2021 = vpop.permute.xlu0 %2020
      %2022 = vrot.lane.b32.xlu0 %v1969, 126
      %v2023 = vpop.permute.xlu0 %2022
      %2024 = vrot.lane.b32.xlu0 %v1970, 126
      %v2025 = vpop.permute.xlu0 %2024
      %vm2026 = vcmask 1031168
      %v2027 = vsel %vm2026, %v2005, %v2007
      %v2028 = vsel %vm2026, %v2007, %v2009
      %v2029 = vsel %vm2026, %v2009, %v2011
      %v2030 = vsel %vm2026, %v2011, %v2013
      %v2031 = vsel %vm2026, %v2013, %v2015
      %v2032 = vsel %vm2026, %v2015, %v2017
      %v2033 = vsel %vm2026, %v2017, %v2019
      %v2034 = vsel %vm2026, %v2019, %v2021
      %v2035 = vsel %vm2026, %v2021, %v2023
      %v2036 = vsel %vm2026, %v2023, %v2025
      %2037 = vrot.lane.b32.xlu0 %v1960, 94
      %v2038 = vpop.permute.xlu0 %2037
      %2039 = vrot.lane.b32.xlu0 %v1961, 94
      %v2040 = vpop.permute.xlu0 %2039
      %2041 = vrot.lane.b32.xlu0 %v1962, 94
      %v2042 = vpop.permute.xlu0 %2041
      %2043 = vrot.lane.b32.xlu0 %v1963, 94
      %v2044 = vpop.permute.xlu0 %2043
      %2045 = vrot.lane.b32.xlu0 %v1964, 94
      %v2046 = vpop.permute.xlu0 %2045
      %2047 = vrot.lane.b32.xlu0 %v1965, 94
      %v2048 = vpop.permute.xlu0 %2047
      %2049 = vrot.lane.b32.xlu0 %v1966, 94
      %v2050 = vpop.permute.xlu0 %2049
      %2051 = vrot.lane.b32.xlu0 %v1967, 94
      %v2052 = vpop.permute.xlu0 %2051
      %2053 = vrot.lane.b32.xlu0 %v1968, 94
      %v2054 = vpop.permute.xlu0 %2053
      %2055 = vrot.lane.b32.xlu0 %v1969, 94
      %v2056 = vpop.permute.xlu0 %2055
      %2057 = vrot.lane.b32.xlu0 %v1970, 94
      %v2058 = vpop.permute.xlu0 %2057
      %vm2059 = vcmask 769024
      %v2060 = vsel %vm2059, %v2038, %v2040
      %v2061 = vsel %vm2059, %v2040, %v2042
      %v2062 = vsel %vm2059, %v2042, %v2044
      %v2063 = vsel %vm2059, %v2044, %v2046
      %v2064 = vsel %vm2059, %v2046, %v2048
      %v2065 = vsel %vm2059, %v2048, %v2050
      %v2066 = vsel %vm2059, %v2050, %v2052
      %v2067 = vsel %vm2059, %v2052, %v2054
      %v2068 = vsel %vm2059, %v2054, %v2056
      %v2069 = vsel %vm2059, %v2056, %v2058
      %v2080 = vunpack.c.l.b16 %v1914
      %v2081 = vunpack.c.h.b16 %v1914
      %v2082 = vunpack.c.l.b16 %v1915
      %v2083 = vunpack.c.h.b16 %v1915
      %v2084 = vunpack.c.l.b16 %v1916
      %v2085 = vunpack.c.h.b16 %v1916
      %v2086 = vunpack.c.l.b16 %v1917
      %v2087 = vunpack.c.h.b16 %v1917
      %v2088 = vunpack.c.l.b16 %v1918
      %v2089 = vunpack.c.h.b16 %v1918
      %v2090 = vunpack.c.l.b16 %v1919
      %v2091 = vunpack.c.h.b16 %v1919
      %v2092 = vunpack.c.l.b16 %v1920
      %v2093 = vunpack.c.h.b16 %v1920
      %v2094 = vunpack.c.l.b16 %v1921
      %v2095 = vunpack.c.h.b16 %v1921
      %v2096 = vunpack.c.l.b16 %v1922
      %v2097 = vunpack.c.h.b16 %v1922
      %v2098 = vunpack.c.l.b16 %v1923
      %v2099 = vunpack.c.h.b16 %v1923
      %v2100 = vpack.c.b16 %v2090, %v2080
      %v2101 = vpack.c.b16 %v2091, %v2081
      %v2102 = vpack.c.b16 %v2092, %v2082
      %v2103 = vpack.c.b16 %v2093, %v2083
      %v2104 = vpack.c.b16 %v2094, %v2084
      %v2105 = vpack.c.b16 %v2095, %v2085
      %v2106 = vpack.c.b16 %v2096, %v2086
      %v2107 = vpack.c.b16 %v2097, %v2087
      %v2108 = vpack.c.b16 %v2098, %v2088
      %v2109 = vpack.c.b16 %v2099, %v2089
      %2110 = vrot.lane.b32.xlu0 %v2100, 93
      %v2111 = vpop.permute.xlu0 %2110
      %2112 = vrot.lane.b32.xlu0 %v2101, 93
      %v2113 = vpop.permute.xlu0 %2112
      %2114 = vrot.lane.b32.xlu0 %v2102, 93
      %v2115 = vpop.permute.xlu0 %2114
      %2116 = vrot.lane.b32.xlu0 %v2103, 93
      %v2117 = vpop.permute.xlu0 %2116
      %2118 = vrot.lane.b32.xlu0 %v2104, 93
      %v2119 = vpop.permute.xlu0 %2118
      %2120 = vrot.lane.b32.xlu0 %v2105, 93
      %v2121 = vpop.permute.xlu0 %2120
      %2122 = vrot.lane.b32.xlu0 %v2106, 93
      %v2123 = vpop.permute.xlu0 %2122
      %2124 = vrot.lane.b32.xlu0 %v2107, 93
      %v2125 = vpop.permute.xlu0 %2124
      %2126 = vrot.lane.b32.xlu0 %v2108, 93
      %v2127 = vpop.permute.xlu0 %2126
      %2128 = vrot.lane.b32.xlu0 %v2109, 93
      %v2129 = vpop.permute.xlu0 %2128
      %vm2130 = vcmask 760832
      %v2131 = vsel %vm2130, %v2111, %v2113
      %v2132 = vsel %vm2130, %v2113, %v2115
      %v2133 = vsel %vm2130, %v2115, %v2117
      %v2134 = vsel %vm2130, %v2117, %v2119
      %v2135 = vsel %vm2130, %v2119, %v2121
      %v2136 = vsel %vm2130, %v2121, %v2123
      %v2137 = vsel %vm2130, %v2123, %v2125
      %v2138 = vsel %vm2130, %v2125, %v2127
      %v2139 = vsel %vm2130, %v2127, %v2129
      %v2142 = vunpack.c.l.b16 %v1924
      %v2143 = vunpack.c.l.b16 %v1925
      %v2144 = vpack.c.b16 %v2143, %v2142
      %2145 = vrot.lane.b32.xlu0 %v2100, 92
      %v2146 = vpop.permute.xlu0 %2145
      %2147 = vrot.lane.b32.xlu0 %v2101, 92
      %v2148 = vpop.permute.xlu0 %2147
      %2149 = vrot.lane.b32.xlu0 %v2102, 92
      %v2150 = vpop.permute.xlu0 %2149
      %2151 = vrot.lane.b32.xlu0 %v2103, 92
      %v2152 = vpop.permute.xlu0 %2151
      %2153 = vrot.lane.b32.xlu0 %v2104, 92
      %v2154 = vpop.permute.xlu0 %2153
      %2155 = vrot.lane.b32.xlu0 %v2105, 92
      %v2156 = vpop.permute.xlu0 %2155
      %2157 = vrot.lane.b32.xlu0 %v2106, 92
      %v2158 = vpop.permute.xlu0 %2157
      %2159 = vrot.lane.b32.xlu0 %v2107, 92
      %v2160 = vpop.permute.xlu0 %2159
      %2161 = vrot.lane.b32.xlu0 %v2108, 92
      %v2162 = vpop.permute.xlu0 %2161
      %2163 = vrot.lane.b32.xlu0 %v2109, 92
      %v2164 = vpop.permute.xlu0 %2163
      %2165 = vrot.lane.b32.xlu0 %v2144, 92
      %v2166 = vpop.permute.xlu0 %2165
      %vm2167 = vcmask 752640
      %v2168 = vsel %vm2167, %v2146, %v2148
      %v2169 = vsel %vm2167, %v2148, %v2150
      %v2170 = vsel %vm2167, %v2150, %v2152
      %v2171 = vsel %vm2167, %v2152, %v2154
      %v2172 = vsel %vm2167, %v2154, %v2156
      %v2173 = vsel %vm2167, %v2156, %v2158
      %v2174 = vsel %vm2167, %v2158, %v2160
      %v2175 = vsel %vm2167, %v2160, %v2162
      %v2176 = vsel %vm2167, %v2162, %v2164
      %v2177 = vsel %vm2167, %v2164, %v2166
      %2178 = vrot.lane.b32.xlu0 %v2100, 60
      %v2179 = vpop.permute.xlu0 %2178
      %2180 = vrot.lane.b32.xlu0 %v2101, 60
      %v2181 = vpop.permute.xlu0 %2180
      %2182 = vrot.lane.b32.xlu0 %v2102, 60
      %v2183 = vpop.permute.xlu0 %2182
      %2184 = vrot.lane.b32.xlu0 %v2103, 60
      %v2185 = vpop.permute.xlu0 %2184
      %2186 = vrot.lane.b32.xlu0 %v2104, 60
      %v2187 = vpop.permute.xlu0 %2186
      %2188 = vrot.lane.b32.xlu0 %v2105, 60
      %v2189 = vpop.permute.xlu0 %2188
      %2190 = vrot.lane.b32.xlu0 %v2106, 60
      %v2191 = vpop.permute.xlu0 %2190
      %2192 = vrot.lane.b32.xlu0 %v2107, 60
      %v2193 = vpop.permute.xlu0 %2192
      %2194 = vrot.lane.b32.xlu0 %v2108, 60
      %v2195 = vpop.permute.xlu0 %2194
      %2196 = vrot.lane.b32.xlu0 %v2109, 60
      %v2197 = vpop.permute.xlu0 %2196
      %2198 = vrot.lane.b32.xlu0 %v2144, 60
      %v2199 = vpop.permute.xlu0 %2198
      %v2200 = vsel %vm672, %v2179, %v2181
      %v2201 = vsel %vm672, %v2181, %v2183
      %v2202 = vsel %vm672, %v2183, %v2185
      %v2203 = vsel %vm672, %v2185, %v2187
      %v2204 = vsel %vm672, %v2187, %v2189
      %v2205 = vsel %vm672, %v2189, %v2191
      %v2206 = vsel %vm672, %v2191, %v2193
      %v2207 = vsel %vm672, %v2193, %v2195
      %v2208 = vsel %vm672, %v2195, %v2197
      %v2209 = vsel %vm672, %v2197, %v2199
      %2210 = vrot.lane.b32.xlu0 %v2100, 59
      %v2211 = vpop.permute.xlu0 %2210
      %2212 = vrot.lane.b32.xlu0 %v2101, 59
      %v2213 = vpop.permute.xlu0 %2212
      %2214 = vrot.lane.b32.xlu0 %v2102, 59
      %v2215 = vpop.permute.xlu0 %2214
      %2216 = vrot.lane.b32.xlu0 %v2103, 59
      %v2217 = vpop.permute.xlu0 %2216
      %2218 = vrot.lane.b32.xlu0 %v2104, 59
      %v2219 = vpop.permute.xlu0 %2218
      %2220 = vrot.lane.b32.xlu0 %v2105, 59
      %v2221 = vpop.permute.xlu0 %2220
      %2222 = vrot.lane.b32.xlu0 %v2106, 59
      %v2223 = vpop.permute.xlu0 %2222
      %2224 = vrot.lane.b32.xlu0 %v2107, 59
      %v2225 = vpop.permute.xlu0 %2224
      %2226 = vrot.lane.b32.xlu0 %v2108, 59
      %v2227 = vpop.permute.xlu0 %2226
      %2228 = vrot.lane.b32.xlu0 %v2109, 59
      %v2229 = vpop.permute.xlu0 %2228
      %2230 = vrot.lane.b32.xlu0 %v2144, 59
      %v2231 = vpop.permute.xlu0 %2230
      %vm2232 = vcmask 482304
      %v2233 = vsel %vm2232, %v2211, %v2213
      %v2234 = vsel %vm2232, %v2213, %v2215
      %v2235 = vsel %vm2232, %v2215, %v2217
      %v2236 = vsel %vm2232, %v2217, %v2219
      %v2237 = vsel %vm2232, %v2219, %v2221
      %v2238 = vsel %vm2232, %v2221, %v2223
      %v2239 = vsel %vm2232, %v2223, %v2225
      %v2240 = vsel %vm2232, %v2225, %v2227
      %v2241 = vsel %vm2232, %v2227, %v2229
      %v2242 = vsel %vm2232, %v2229, %v2231
      %2243 = vrot.lane.b32.xlu0 %v2100, 58
      %v2244 = vpop.permute.xlu0 %2243
      %2245 = vrot.lane.b32.xlu0 %v2101, 58
      %v2246 = vpop.permute.xlu0 %2245
      %2247 = vrot.lane.b32.xlu0 %v2102, 58
      %v2248 = vpop.permute.xlu0 %2247
      %2249 = vrot.lane.b32.xlu0 %v2103, 58
      %v2250 = vpop.permute.xlu0 %2249
      %2251 = vrot.lane.b32.xlu0 %v2104, 58
      %v2252 = vpop.permute.xlu0 %2251
      %2253 = vrot.lane.b32.xlu0 %v2105, 58
      %v2254 = vpop.permute.xlu0 %2253
      %2255 = vrot.lane.b32.xlu0 %v2106, 58
      %v2256 = vpop.permute.xlu0 %2255
      %2257 = vrot.lane.b32.xlu0 %v2107, 58
      %v2258 = vpop.permute.xlu0 %2257
      %2259 = vrot.lane.b32.xlu0 %v2108, 58
      %v2260 = vpop.permute.xlu0 %2259
      %2261 = vrot.lane.b32.xlu0 %v2109, 58
      %v2262 = vpop.permute.xlu0 %2261
      %2263 = vrot.lane.b32.xlu0 %v2144, 58
      %v2264 = vpop.permute.xlu0 %2263
      %vm2265 = vcmask 474112
      %v2266 = vsel %vm2265, %v2244, %v2246
      %v2267 = vsel %vm2265, %v2246, %v2248
      %v2268 = vsel %vm2265, %v2248, %v2250
      %v2269 = vsel %vm2265, %v2250, %v2252
      %v2270 = vsel %vm2265, %v2252, %v2254
      %v2271 = vsel %vm2265, %v2254, %v2256
      %v2272 = vsel %vm2265, %v2256, %v2258
      %v2273 = vsel %vm2265, %v2258, %v2260
      %v2274 = vsel %vm2265, %v2260, %v2262
      %v2275 = vsel %vm2265, %v2262, %v2264
      %v2276 = vld [vmem:[%s4] sm:$0xff]
      %2278 = vset.pattern.permute.xlu0 0
      %2279 = vperm.xlu0 %2278, %v2276
      %v2280 = vpop.permute.xlu0 %2279
      %v2283 = vunpack.c.l.b16 %v1900
      %v2284 = vunpack.c.h.b16 %v1900
      %v2285 = vpack.c.b16 %v2283, %v2283
      %v2286 = vpack.c.b16 %v2284, %v2284
      %2288 = vrot.lane.b32.xlu0 %v1960, 35
      %v2289 = vpop.permute.xlu0 %2288
      %2290 = vrot.lane.b32.xlu0 %v1961, 35
      %v2291 = vpop.permute.xlu0 %2290
      %2292 = vrot.lane.b32.xlu0 %v1962, 35
      %v2293 = vpop.permute.xlu0 %2292
      %2294 = vrot.lane.b32.xlu0 %v1963, 35
      %v2295 = vpop.permute.xlu0 %2294
      %2296 = vrot.lane.b32.xlu0 %v1964, 35
      %v2297 = vpop.permute.xlu0 %2296
      %2298 = vrot.lane.b32.xlu0 %v1965, 35
      %v2299 = vpop.permute.xlu0 %2298
      %2300 = vrot.lane.b32.xlu0 %v1966, 35
      %v2301 = vpop.permute.xlu0 %2300
      %2302 = vrot.lane.b32.xlu0 %v1967, 35
      %v2303 = vpop.permute.xlu0 %2302
      %2304 = vrot.lane.b32.xlu0 %v1968, 35
      %v2305 = vpop.permute.xlu0 %2304
      %2306 = vrot.lane.b32.xlu0 %v1969, 35
      %v2307 = vpop.permute.xlu0 %2306
      %2308 = vrot.lane.b32.xlu0 %v1970, 35
      %v2309 = vpop.permute.xlu0 %2308
      %2310 = vrot.lane.b32.xlu0 %v1994, 35
      %v2311 = vpop.permute.xlu0 %2310
      %2312 = vrot.lane.b32.xlu0 %v1995, 35
      %v2313 = vpop.permute.xlu0 %2312
      %2314 = vrot.lane.b32.xlu0 %v1996, 35
      %v2315 = vpop.permute.xlu0 %2314
      %2316 = vrot.lane.b32.xlu0 %v1997, 35
      %v2317 = vpop.permute.xlu0 %2316
      %2318 = vrot.lane.b32.xlu0 %v1998, 35
      %v2319 = vpop.permute.xlu0 %2318
      %2320 = vrot.lane.b32.xlu0 %v1999, 35
      %v2321 = vpop.permute.xlu0 %2320
      %2322 = vrot.lane.b32.xlu0 %v2000, 35
      %v2323 = vpop.permute.xlu0 %2322
      %2324 = vrot.lane.b32.xlu0 %v2001, 35
      %v2325 = vpop.permute.xlu0 %2324
      %2326 = vrot.lane.b32.xlu0 %v2002, 35
      %v2327 = vpop.permute.xlu0 %2326
      %2328 = vrot.lane.b32.xlu0 %v2003, 35
      %v2329 = vpop.permute.xlu0 %2328
      %2330 = vrot.lane.b32.xlu0 %v1992, 35
      %v2331 = vpop.permute.xlu0 %2330
      %2332 = vrot.lane.b32.xlu0 %v2027, 35
      %v2333 = vpop.permute.xlu0 %2332
      %2334 = vrot.lane.b32.xlu0 %v2028, 35
      %v2335 = vpop.permute.xlu0 %2334
      %2336 = vrot.lane.b32.xlu0 %v2029, 35
      %v2337 = vpop.permute.xlu0 %2336
      %2338 = vrot.lane.b32.xlu0 %v2030, 35
      %v2339 = vpop.permute.xlu0 %2338
      %2340 = vrot.lane.b32.xlu0 %v2031, 35
      %v2341 = vpop.permute.xlu0 %2340
      %2342 = vrot.lane.b32.xlu0 %v2032, 35
      %v2343 = vpop.permute.xlu0 %2342
      %2344 = vrot.lane.b32.xlu0 %v2033, 35
      %v2345 = vpop.permute.xlu0 %2344
      %2346 = vrot.lane.b32.xlu0 %v2034, 35
      %v2347 = vpop.permute.xlu0 %2346
      %2348 = vrot.lane.b32.xlu0 %v2035, 35
      %v2349 = vpop.permute.xlu0 %2348
      %2350 = vrot.lane.b32.xlu0 %v2036, 35
      %v2351 = vpop.permute.xlu0 %2350
      %2352 = vrot.lane.b32.xlu0 %v2025, 35
      %v2353 = vpop.permute.xlu0 %2352
      %2354 = vrot.lane.b32.xlu0 %v2060, 35
      %v2355 = vpop.permute.xlu0 %2354
      %2356 = vrot.lane.b32.xlu0 %v2061, 35
      %v2357 = vpop.permute.xlu0 %2356
      %2358 = vrot.lane.b32.xlu0 %v2062, 35
      %v2359 = vpop.permute.xlu0 %2358
      %2360 = vrot.lane.b32.xlu0 %v2063, 35
      %v2361 = vpop.permute.xlu0 %2360
      %2362 = vrot.lane.b32.xlu0 %v2064, 35
      %v2363 = vpop.permute.xlu0 %2362
      %2364 = vrot.lane.b32.xlu0 %v2065, 35
      %v2365 = vpop.permute.xlu0 %2364
      %2366 = vrot.lane.b32.xlu0 %v2066, 35
      %v2367 = vpop.permute.xlu0 %2366
      %2368 = vrot.lane.b32.xlu0 %v2067, 35
      %v2369 = vpop.permute.xlu0 %2368
      %2370 = vrot.lane.b32.xlu0 %v2068, 35
      %v2371 = vpop.permute.xlu0 %2370
      %2372 = vrot.lane.b32.xlu0 %v2069, 35
      %v2373 = vpop.permute.xlu0 %2372
      %2374 = vrot.lane.b32.xlu0 %v2058, 35
      %v2375 = vpop.permute.xlu0 %2374
      %2376 = vrot.lane.b32.xlu0 %v2111, 35
      %v2377 = vpop.permute.xlu0 %2376
      %2378 = vrot.lane.b32.xlu0 %v2131, 35
      %v2379 = vpop.permute.xlu0 %2378
      %2380 = vrot.lane.b32.xlu0 %v2132, 35
      %v2381 = vpop.permute.xlu0 %2380
      %2382 = vrot.lane.b32.xlu0 %v2133, 35
      %v2383 = vpop.permute.xlu0 %2382
      %2384 = vrot.lane.b32.xlu0 %v2134, 35
      %v2385 = vpop.permute.xlu0 %2384
      %2386 = vrot.lane.b32.xlu0 %v2135, 35
      %v2387 = vpop.permute.xlu0 %2386
      %2388 = vrot.lane.b32.xlu0 %v2136, 35
      %v2389 = vpop.permute.xlu0 %2388
      %2390 = vrot.lane.b32.xlu0 %v2137, 35
      %v2391 = vpop.permute.xlu0 %2390
      %2392 = vrot.lane.b32.xlu0 %v2138, 35
      %v2393 = vpop.permute.xlu0 %2392
      %2394 = vrot.lane.b32.xlu0 %v2139, 35
      %v2395 = vpop.permute.xlu0 %2394
      %2396 = vrot.lane.b32.xlu0 %v2129, 35
      %v2397 = vpop.permute.xlu0 %2396
      %2398 = vrot.lane.b32.xlu0 %v2146, 35
      %v2399 = vpop.permute.xlu0 %2398
      %2400 = vrot.lane.b32.xlu0 %v2168, 35
      %v2401 = vpop.permute.xlu0 %2400
      %2402 = vrot.lane.b32.xlu0 %v2169, 35
      %v2403 = vpop.permute.xlu0 %2402
      %2404 = vrot.lane.b32.xlu0 %v2170, 35
      %v2405 = vpop.permute.xlu0 %2404
      %2406 = vrot.lane.b32.xlu0 %v2171, 35
      %v2407 = vpop.permute.xlu0 %2406
      %2408 = vrot.lane.b32.xlu0 %v2172, 35
      %v2409 = vpop.permute.xlu0 %2408
      %2410 = vrot.lane.b32.xlu0 %v2173, 35
      %v2411 = vpop.permute.xlu0 %2410
      %2412 = vrot.lane.b32.xlu0 %v2174, 35
      %v2413 = vpop.permute.xlu0 %2412
      %2414 = vrot.lane.b32.xlu0 %v2175, 35
      %v2415 = vpop.permute.xlu0 %2414
      %2416 = vrot.lane.b32.xlu0 %v2176, 35
      %v2417 = vpop.permute.xlu0 %2416
      %2418 = vrot.lane.b32.xlu0 %v2177, 35
      %v2419 = vpop.permute.xlu0 %2418
      %2420 = vrot.lane.b32.xlu0 %v2179, 35
      %v2421 = vpop.permute.xlu0 %2420
      %2422 = vrot.lane.b32.xlu0 %v2200, 35
      %v2423 = vpop.permute.xlu0 %2422
      %2424 = vrot.lane.b32.xlu0 %v2201, 35
      %v2425 = vpop.permute.xlu0 %2424
      %2426 = vrot.lane.b32.xlu0 %v2202, 35
      %v2427 = vpop.permute.xlu0 %2426
      %2428 = vrot.lane.b32.xlu0 %v2203, 35
      %v2429 = vpop.permute.xlu0 %2428
      %2430 = vrot.lane.b32.xlu0 %v2204, 35
      %v2431 = vpop.permute.xlu0 %2430
      %2432 = vrot.lane.b32.xlu0 %v2205, 35
      %v2433 = vpop.permute.xlu0 %2432
      %2434 = vrot.lane.b32.xlu0 %v2206, 35
      %v2435 = vpop.permute.xlu0 %2434
      %2436 = vrot.lane.b32.xlu0 %v2207, 35
      %v2437 = vpop.permute.xlu0 %2436
      %2438 = vrot.lane.b32.xlu0 %v2208, 35
      %v2439 = vpop.permute.xlu0 %2438
      %2440 = vrot.lane.b32.xlu0 %v2209, 35
      %v2441 = vpop.permute.xlu0 %2440
      %2442 = vrot.lane.b32.xlu0 %v2211, 35
      %v2443 = vpop.permute.xlu0 %2442
      %2444 = vrot.lane.b32.xlu0 %v2233, 35
      %v2445 = vpop.permute.xlu0 %2444
      %2446 = vrot.lane.b32.xlu0 %v2234, 35
      %v2447 = vpop.permute.xlu0 %2446
      %2448 = vrot.lane.b32.xlu0 %v2235, 35
      %v2449 = vpop.permute.xlu0 %2448
      %2450 = vrot.lane.b32.xlu0 %v2236, 35
      %v2451 = vpop.permute.xlu0 %2450
      %2452 = vrot.lane.b32.xlu0 %v2237, 35
      %v2453 = vpop.permute.xlu0 %2452
      %2454 = vrot.lane.b32.xlu0 %v2238, 35
      %v2455 = vpop.permute.xlu0 %2454
      %2456 = vrot.lane.b32.xlu0 %v2239, 35
      %v2457 = vpop.permute.xlu0 %2456
      %2458 = vrot.lane.b32.xlu0 %v2240, 35
      %v2459 = vpop.permute.xlu0 %2458
      %2460 = vrot.lane.b32.xlu0 %v2241, 35
      %v2461 = vpop.permute.xlu0 %2460
      %2462 = vrot.lane.b32.xlu0 %v2242, 35
      %v2463 = vpop.permute.xlu0 %2462
      %2464 = vrot.lane.b32.xlu0 %v2244, 35
      %v2465 = vpop.permute.xlu0 %2464
      %2466 = vrot.lane.b32.xlu0 %v2266, 35
      %v2467 = vpop.permute.xlu0 %2466
      %2468 = vrot.lane.b32.xlu0 %v2267, 35
      %v2469 = vpop.permute.xlu0 %2468
      %2470 = vrot.lane.b32.xlu0 %v2268, 35
      %v2471 = vpop.permute.xlu0 %2470
      %2472 = vrot.lane.b32.xlu0 %v2269, 35
      %v2473 = vpop.permute.xlu0 %2472
      %2474 = vrot.lane.b32.xlu0 %v2270, 35
      %v2475 = vpop.permute.xlu0 %2474
      %2476 = vrot.lane.b32.xlu0 %v2271, 35
      %v2477 = vpop.permute.xlu0 %2476
      %2478 = vrot.lane.b32.xlu0 %v2272, 35
      %v2479 = vpop.permute.xlu0 %2478
      %2480 = vrot.lane.b32.xlu0 %v2273, 35
      %v2481 = vpop.permute.xlu0 %2480
      %2482 = vrot.lane.b32.xlu0 %v2274, 35
      %v2483 = vpop.permute.xlu0 %2482
      %2484 = vrot.lane.b32.xlu0 %v2275, 35
      %v2485 = vpop.permute.xlu0 %2484
      %vm2486 = vcmask 285696
      %v2487 = vsel %vm2486, %v2289, %v2291
      %v2488 = vsel %vm2486, %v2291, %v2293
      %v2489 = vsel %vm2486, %v2293, %v2295
      %v2490 = vsel %vm2486, %v2295, %v2297
      %v2491 = vsel %vm2486, %v2297, %v2299
      %v2492 = vsel %vm2486, %v2299, %v2301
      %v2493 = vsel %vm2486, %v2301, %v2303
      %v2494 = vsel %vm2486, %v2303, %v2305
      %v2495 = vsel %vm2486, %v2305, %v2307
      %v2496 = vsel %vm2486, %v2307, %v2309
      %v2497 = vsel %vm2486, %v2311, %v2313
      %v2498 = vsel %vm2486, %v2313, %v2315
      %v2499 = vsel %vm2486, %v2315, %v2317
      %v2500 = vsel %vm2486, %v2317, %v2319
      %v2501 = vsel %vm2486, %v2319, %v2321
      %v2502 = vsel %vm2486, %v2321, %v2323
      %v2503 = vsel %vm2486, %v2323, %v2325
      %v2504 = vsel %vm2486, %v2325, %v2327
      %v2505 = vsel %vm2486, %v2327, %v2329
      %v2506 = vsel %vm2486, %v2329, %v2331
      %v2507 = vsel %vm2486, %v2333, %v2335
      %v2508 = vsel %vm2486, %v2335, %v2337
      %v2509 = vsel %vm2486, %v2337, %v2339
      %v2510 = vsel %vm2486, %v2339, %v2341
      %v2511 = vsel %vm2486, %v2341, %v2343
      %v2512 = vsel %vm2486, %v2343, %v2345
      %v2513 = vsel %vm2486, %v2345, %v2347
      %v2514 = vsel %vm2486, %v2347, %v2349
      %v2515 = vsel %vm2486, %v2349, %v2351
      %v2516 = vsel %vm2486, %v2351, %v2353
      %v2517 = vsel %vm2486, %v2355, %v2357
      %v2518 = vsel %vm2486, %v2357, %v2359
      %v2519 = vsel %vm2486, %v2359, %v2361
      %v2520 = vsel %vm2486, %v2361, %v2363
      %v2521 = vsel %vm2486, %v2363, %v2365
      %v2522 = vsel %vm2486, %v2365, %v2367
      %v2523 = vsel %vm2486, %v2367, %v2369
      %v2524 = vsel %vm2486, %v2369, %v2371
      %v2525 = vsel %vm2486, %v2371, %v2373
      %v2526 = vsel %vm2486, %v2373, %v2375
      %v2527 = vsel %vm2486, %v2377, %v2379
      %v2528 = vsel %vm2486, %v2379, %v2381
      %v2529 = vsel %vm2486, %v2381, %v2383
      %v2530 = vsel %vm2486, %v2383, %v2385
      %v2531 = vsel %vm2486, %v2385, %v2387
      %v2532 = vsel %vm2486, %v2387, %v2389
      %v2533 = vsel %vm2486, %v2389, %v2391
      %v2534 = vsel %vm2486, %v2391, %v2393
      %v2535 = vsel %vm2486, %v2393, %v2395
      %v2536 = vsel %vm2486, %v2395, %v2397
      %v2537 = vsel %vm2486, %v2399, %v2401
      %v2538 = vsel %vm2486, %v2401, %v2403
      %v2539 = vsel %vm2486, %v2403, %v2405
      %v2540 = vsel %vm2486, %v2405, %v2407
      %v2541 = vsel %vm2486, %v2407, %v2409
      %v2542 = vsel %vm2486, %v2409, %v2411
      %v2543 = vsel %vm2486, %v2411, %v2413
      %v2544 = vsel %vm2486, %v2413, %v2415
      %v2545 = vsel %vm2486, %v2415, %v2417
      %v2546 = vsel %vm2486, %v2417, %v2419
      %v2547 = vsel %vm2486, %v2421, %v2423
      %v2548 = vsel %vm2486, %v2423, %v2425
      %v2549 = vsel %vm2486, %v2425, %v2427
      %v2550 = vsel %vm2486, %v2427, %v2429
      %v2551 = vsel %vm2486, %v2429, %v2431
      %v2552 = vsel %vm2486, %v2431, %v2433
      %v2553 = vsel %vm2486, %v2433, %v2435
      %v2554 = vsel %vm2486, %v2435, %v2437
      %v2555 = vsel %vm2486, %v2437, %v2439
      %v2556 = vsel %vm2486, %v2439, %v2441
      %v2557 = vsel %vm2486, %v2443, %v2445
      %v2558 = vsel %vm2486, %v2445, %v2447
      %v2559 = vsel %vm2486, %v2447, %v2449
      %v2560 = vsel %vm2486, %v2449, %v2451
      %v2561 = vsel %vm2486, %v2451, %v2453
      %v2562 = vsel %vm2486, %v2453, %v2455
      %v2563 = vsel %vm2486, %v2455, %v2457
      %v2564 = vsel %vm2486, %v2457, %v2459
      %v2565 = vsel %vm2486, %v2459, %v2461
      %v2566 = vsel %vm2486, %v2461, %v2463
      %v2567 = vsel %vm2486, %v2465, %v2467
      %v2568 = vsel %vm2486, %v2467, %v2469
      %v2569 = vsel %vm2486, %v2469, %v2471
      %v2570 = vsel %vm2486, %v2471, %v2473
      %v2571 = vsel %vm2486, %v2473, %v2475
      %v2572 = vsel %vm2486, %v2475, %v2477
      %v2573 = vsel %vm2486, %v2477, %v2479
      %v2574 = vsel %vm2486, %v2479, %v2481
      %v2575 = vsel %vm2486, %v2481, %v2483
      %v2576 = vsel %vm2486, %v2483, %v2485
      %vm2667 = vcmask 130048
      %v2669 = vsel %vm2667, %v2286, 0
      %2671 = vmatpush.bf16.msra.mxu0 %v2557
      %2672 = vmatpush.bf16.msra.mxu0 %v2547
      %2673 = vmatpush.bf16.msra.mxu0 %v2537
      %2674 = vmatpush.bf16.msra.mxu0 %v2527
      %2675 = vmatpush.bf16.msra.mxu0 %v2517
      %2676 = vmatpush.bf16.msra.mxu0 %v2507
      %2677 = vmatpush.bf16.msra.mxu0 %v2497
      %2678 = vmatpush.bf16.msra.mxu0 %v2487
      %2679 = vmatmul.bf16.gmra.mxu0 %v2285
      %v2680 = vpop.f32.mrf.mxu0
      %v2681 = vadd.f32 %v2280, %v2680
      %v2682 = vpop.f32.mrf.mxu0
      %2683 = vdwg.mxu0
      %2684 = vmatpush.bf16.msra.mxu0 0
      %2685 = vmatpush.bf16.msra.mxu0 0
      %2686 = vmatpush.bf16.msra.mxu0 0
      %2687 = vmatpush.bf16.msra.mxu0 0
      %2688 = vmatpush.bf16.msra.mxu0 0
      %2689 = vmatpush.bf16.msra.mxu0 0
      %2690 = vmatpush.bf16.msra.mxu0 0
      %2691 = vmatpush.bf16.msra.mxu0 %v2567
      %2692 = vmatmul.bf16.gmra.mxu0 %v2669
      %v2693 = vpop.f32.mrf.mxu0
      %v2694 = vadd.f32 %v2681, %v2693
      %v2695 = vpop.f32.mrf.mxu0
      %2696 = vdwg.mxu0
      %2697 = vmatpush.bf16.msra.mxu0 %v2558
      %2698 = vmatpush.bf16.msra.mxu0 %v2548
      %2699 = vmatpush.bf16.msra.mxu0 %v2538
      %2700 = vmatpush.bf16.msra.mxu0 %v2528
      %2701 = vmatpush.bf16.msra.mxu0 %v2518
      %2702 = vmatpush.bf16.msra.mxu0 %v2508
      %2703 = vmatpush.bf16.msra.mxu0 %v2498
      %2704 = vmatpush.bf16.msra.mxu0 %v2488
      %2705 = vmatmul.bf16.gmra.mxu0 %v2285
      %v2706 = vpop.f32.mrf.mxu0
      %v2707 = vadd.f32 %v2280, %v2706
      %v2708 = vpop.f32.mrf.mxu0
      %2709 = vdwg.mxu0
      %2710 = vmatpush.bf16.msra.mxu0 0
      %2711 = vmatpush.bf16.msra.mxu0 0
      %2712 = vmatpush.bf16.msra.mxu0 0
      %2713 = vmatpush.bf16.msra.mxu0 0
      %2714 = vmatpush.bf16.msra.mxu0 0
      %2715 = vmatpush.bf16.msra.mxu0 0
      %2716 = vmatpush.bf16.msra.mxu0 0
      %2717 = vmatpush.bf16.msra.mxu0 %v2568
      %2718 = vmatmul.bf16.gmra.mxu0 %v2669
      %v2719 = vpop.f32.mrf.mxu0
      %v2720 = vadd.f32 %v2707, %v2719
      %v2721 = vpop.f32.mrf.mxu0
      %2722 = vdwg.mxu0
      %2723 = vmatpush.bf16.msra.mxu0 %v2559
      %2724 = vmatpush.bf16.msra.mxu0 %v2549
      %2725 = vmatpush.bf16.msra.mxu0 %v2539
      %2726 = vmatpush.bf16.msra.mxu0 %v2529
      %2727 = vmatpush.bf16.msra.mxu0 %v2519
      %2728 = vmatpush.bf16.msra.mxu0 %v2509
      %2729 = vmatpush.bf16.msra.mxu0 %v2499
      %2730 = vmatpush.bf16.msra.mxu0 %v2489
      %2731 = vmatmul.bf16.gmra.mxu0 %v2285
      %v2732 = vpop.f32.mrf.mxu0
      %v2733 = vadd.f32 %v2280, %v2732
      %v2734 = vpop.f32.mrf.mxu0
      %2735 = vdwg.mxu0
      %2736 = vmatpush.bf16.msra.mxu0 0
      %2737 = vmatpush.bf16.msra.mxu0 0
      %2738 = vmatpush.bf16.msra.mxu0 0
      %2739 = vmatpush.bf16.msra.mxu0 0
      %2740 = vmatpush.bf16.msra.mxu0 0
      %2741 = vmatpush.bf16.msra.mxu0 0
      %2742 = vmatpush.bf16.msra.mxu0 0
      %2743 = vmatpush.bf16.msra.mxu0 %v2569
      %2744 = vmatmul.bf16.gmra.mxu0 %v2669
      %v2745 = vpop.f32.mrf.mxu0
      %v2746 = vadd.f32 %v2733, %v2745
      %v2747 = vpop.f32.mrf.mxu0
      %2748 = vdwg.mxu0
      %2749 = vmatpush.bf16.msra.mxu0 %v2560
      %2750 = vmatpush.bf16.msra.mxu0 %v2550
      %2751 = vmatpush.bf16.msra.mxu0 %v2540
      %2752 = vmatpush.bf16.msra.mxu0 %v2530
      %2753 = vmatpush.bf16.msra.mxu0 %v2520
      %2754 = vmatpush.bf16.msra.mxu0 %v2510
      %2755 = vmatpush.bf16.msra.mxu0 %v2500
      %2756 = vmatpush.bf16.msra.mxu0 %v2490
      %2757 = vmatmul.bf16.gmra.mxu0 %v2285
      %v2758 = vpop.f32.mrf.mxu0
      %v2759 = vadd.f32 %v2280, %v2758
      %v2760 = vpop.f32.mrf.mxu0
      %2761 = vdwg.mxu0
      %2762 = vmatpush.bf16.msra.mxu0 0
      %2763 = vmatpush.bf16.msra.mxu0 0
      %2764 = vmatpush.bf16.msra.mxu0 0
      %2765 = vmatpush.bf16.msra.mxu0 0
      %2766 = vmatpush.bf16.msra.mxu0 0
      %2767 = vmatpush.bf16.msra.mxu0 0
      %2768 = vmatpush.bf16.msra.mxu0 0
      %2769 = vmatpush.bf16.msra.mxu0 %v2570
      %2770 = vmatmul.bf16.gmra.mxu0 %v2669
      %v2771 = vpop.f32.mrf.mxu0
      %v2772 = vadd.f32 %v2759, %v2771
      %v2773 = vpop.f32.mrf.mxu0
      %2774 = vdwg.mxu0
      %2775 = vmatpush.bf16.msra.mxu0 %v2561
      %2776 = vmatpush.bf16.msra.mxu0 %v2551
      %2777 = vmatpush.bf16.msra.mxu0 %v2541
      %2778 = vmatpush.bf16.msra.mxu0 %v2531
      %2779 = vmatpush.bf16.msra.mxu0 %v2521
      %2780 = vmatpush.bf16.msra.mxu0 %v2511
      %2781 = vmatpush.bf16.msra.mxu0 %v2501
      %2782 = vmatpush.bf16.msra.mxu0 %v2491
      %2783 = vmatmul.bf16.gmra.mxu0 %v2285
      %v2784 = vpop.f32.mrf.mxu0
      %v2785 = vadd.f32 %v2280, %v2784
      %v2786 = vpop.f32.mrf.mxu0
      %2787 = vdwg.mxu0
      %2788 = vmatpush.bf16.msra.mxu0 0
      %2789 = vmatpush.bf16.msra.mxu0 0
      %2790 = vmatpush.bf16.msra.mxu0 0
      %2791 = vmatpush.bf16.msra.mxu0 0
      %2792 = vmatpush.bf16.msra.mxu0 0
      %2793 = vmatpush.bf16.msra.mxu0 0
      %2794 = vmatpush.bf16.msra.mxu0 0
      %2795 = vmatpush.bf16.msra.mxu0 %v2571
      %2796 = vmatmul.bf16.gmra.mxu0 %v2669
      %v2797 = vpop.f32.mrf.mxu0
      %v2798 = vadd.f32 %v2785, %v2797
      %v2799 = vpop.f32.mrf.mxu0
      %2800 = vdwg.mxu0
      %2801 = vmatpush.bf16.msra.mxu0 %v2562
      %2802 = vmatpush.bf16.msra.mxu0 %v2552
      %2803 = vmatpush.bf16.msra.mxu0 %v2542
      %2804 = vmatpush.bf16.msra.mxu0 %v2532
      %2805 = vmatpush.bf16.msra.mxu0 %v2522
      %2806 = vmatpush.bf16.msra.mxu0 %v2512
      %2807 = vmatpush.bf16.msra.mxu0 %v2502
      %2808 = vmatpush.bf16.msra.mxu0 %v2492
      %2809 = vmatmul.bf16.gmra.mxu0 %v2285
      %v2810 = vpop.f32.mrf.mxu0
      %v2811 = vadd.f32 %v2280, %v2810
      %v2812 = vpop.f32.mrf.mxu0
      %2813 = vdwg.mxu0
      %2814 = vmatpush.bf16.msra.mxu0 0
      %2815 = vmatpush.bf16.msra.mxu0 0
      %2816 = vmatpush.bf16.msra.mxu0 0
      %2817 = vmatpush.bf16.msra.mxu0 0
      %2818 = vmatpush.bf16.msra.mxu0 0
      %2819 = vmatpush.bf16.msra.mxu0 0
      %2820 = vmatpush.bf16.msra.mxu0 0
      %2821 = vmatpush.bf16.msra.mxu0 %v2572
      %2822 = vmatmul.bf16.gmra.mxu0 %v2669
      %v2823 = vpop.f32.mrf.mxu0
      %v2824 = vadd.f32 %v2811, %v2823
      %v2825 = vpop.f32.mrf.mxu0
      %2826 = vdwg.mxu0
      %2827 = vmatpush.bf16.msra.mxu0 %v2563
      %2828 = vmatpush.bf16.msra.mxu0 %v2553
      %2829 = vmatpush.bf16.msra.mxu0 %v2543
      %2830 = vmatpush.bf16.msra.mxu0 %v2533
      %2831 = vmatpush.bf16.msra.mxu0 %v2523
      %2832 = vmatpush.bf16.msra.mxu0 %v2513
      %2833 = vmatpush.bf16.msra.mxu0 %v2503
      %2834 = vmatpush.bf16.msra.mxu0 %v2493
      %2835 = vmatmul.bf16.gmra.mxu0 %v2285
      %v2836 = vpop.f32.mrf.mxu0
      %v2837 = vadd.f32 %v2280, %v2836
      %v2838 = vpop.f32.mrf.mxu0
      %2839 = vdwg.mxu0
      %2840 = vmatpush.bf16.msra.mxu0 0
      %2841 = vmatpush.bf16.msra.mxu0 0
      %2842 = vmatpush.bf16.msra.mxu0 0
      %2843 = vmatpush.bf16.msra.mxu0 0
      %2844 = vmatpush.bf16.msra.mxu0 0
      %2845 = vmatpush.bf16.msra.mxu0 0
      %2846 = vmatpush.bf16.msra.mxu0 0
      %2847 = vmatpush.bf16.msra.mxu0 %v2573
      %2848 = vmatmul.bf16.gmra.mxu0 %v2669
      %v2849 = vpop.f32.mrf.mxu0
      %v2850 = vadd.f32 %v2837, %v2849
      %v2851 = vpop.f32.mrf.mxu0
      %2852 = vdwg.mxu0
      %2853 = vmatpush.bf16.msra.mxu0 %v2564
      %2854 = vmatpush.bf16.msra.mxu0 %v2554
      %2855 = vmatpush.bf16.msra.mxu0 %v2544
      %2856 = vmatpush.bf16.msra.mxu0 %v2534
      %2857 = vmatpush.bf16.msra.mxu0 %v2524
      %2858 = vmatpush.bf16.msra.mxu0 %v2514
      %2859 = vmatpush.bf16.msra.mxu0 %v2504
      %2860 = vmatpush.bf16.msra.mxu0 %v2494
      %2861 = vmatmul.bf16.gmra.mxu0 %v2285
      %v2862 = vpop.f32.mrf.mxu0
      %v2863 = vadd.f32 %v2280, %v2862
      %v2864 = vpop.f32.mrf.mxu0
      %2865 = vdwg.mxu0
      %2866 = vmatpush.bf16.msra.mxu0 0
      %2867 = vmatpush.bf16.msra.mxu0 0
      %2868 = vmatpush.bf16.msra.mxu0 0
      %2869 = vmatpush.bf16.msra.mxu0 0
      %2870 = vmatpush.bf16.msra.mxu0 0
      %2871 = vmatpush.bf16.msra.mxu0 0
      %2872 = vmatpush.bf16.msra.mxu0 0
      %2873 = vmatpush.bf16.msra.mxu0 %v2574
      %2874 = vmatmul.bf16.gmra.mxu0 %v2669
      %v2875 = vpop.f32.mrf.mxu0
      %v2876 = vadd.f32 %v2863, %v2875
      %v2877 = vpop.f32.mrf.mxu0
      %2878 = vdwg.mxu0
      %2879 = vmatpush.bf16.msra.mxu0 %v2565
      %2880 = vmatpush.bf16.msra.mxu0 %v2555
      %2881 = vmatpush.bf16.msra.mxu0 %v2545
      %2882 = vmatpush.bf16.msra.mxu0 %v2535
      %2883 = vmatpush.bf16.msra.mxu0 %v2525
      %2884 = vmatpush.bf16.msra.mxu0 %v2515
      %2885 = vmatpush.bf16.msra.mxu0 %v2505
      %2886 = vmatpush.bf16.msra.mxu0 %v2495
      %2887 = vmatmul.bf16.gmra.mxu0 %v2285
      %v2888 = vpop.f32.mrf.mxu0
      %v2889 = vadd.f32 %v2280, %v2888
      %v2890 = vpop.f32.mrf.mxu0
      %2891 = vdwg.mxu0
      %2892 = vmatpush.bf16.msra.mxu0 0
      %2893 = vmatpush.bf16.msra.mxu0 0
      %2894 = vmatpush.bf16.msra.mxu0 0
      %2895 = vmatpush.bf16.msra.mxu0 0
      %2896 = vmatpush.bf16.msra.mxu0 0
      %2897 = vmatpush.bf16.msra.mxu0 0
      %2898 = vmatpush.bf16.msra.mxu0 0
      %2899 = vmatpush.bf16.msra.mxu0 %v2575
      %2900 = vmatmul.bf16.gmra.mxu0 %v2669
      %v2901 = vpop.f32.mrf.mxu0
      %v2902 = vadd.f32 %v2889, %v2901
      %v2903 = vpop.f32.mrf.mxu0
      %2904 = vdwg.mxu0
      %2905 = vmatpush.bf16.msra.mxu0 %v2566
      %2906 = vmatpush.bf16.msra.mxu0 %v2556
      %2907 = vmatpush.bf16.msra.mxu0 %v2546
      %2908 = vmatpush.bf16.msra.mxu0 %v2536
      %2909 = vmatpush.bf16.msra.mxu0 %v2526
      %2910 = vmatpush.bf16.msra.mxu0 %v2516
      %2911 = vmatpush.bf16.msra.mxu0 %v2506
      %2912 = vmatpush.bf16.msra.mxu0 %v2496
      %2913 = vmatmul.bf16.gmra.mxu0 %v2285
      %v2914 = vpop.f32.mrf.mxu0
      %v2915 = vadd.f32 %v2280, %v2914
      %v2916 = vpop.f32.mrf.mxu0
      %2917 = vdwg.mxu0
      %2918 = vmatpush.bf16.msra.mxu0 0
      %2919 = vmatpush.bf16.msra.mxu0 0
      %2920 = vmatpush.bf16.msra.mxu0 0
      %2921 = vmatpush.bf16.msra.mxu0 0
      %2922 = vmatpush.bf16.msra.mxu0 0
      %2923 = vmatpush.bf16.msra.mxu0 0
      %2924 = vmatpush.bf16.msra.mxu0 0
      %2925 = vmatpush.bf16.msra.mxu0 %v2576
      %2926 = vmatmul.bf16.gmra.mxu0 %v2669
      %v2927 = vpop.f32.mrf.mxu0
      %v2928 = vadd.f32 %v2915, %v2927
      %v2929 = vpop.f32.mrf.mxu0
      %2930 = vdwg.mxu0
      %v2931 = vld [vmem:[%s219] sm:$0x77]
      %v2932 = vld [vmem:[%s219 + $0x8] sm:$0x77]
      %v2933 = vld [vmem:[%s219 + $0x10] sm:$0x77]
      %v2934 = vld [vmem:[%s219 + $0x18] sm:$0x77]
      %v2935 = vld [vmem:[%s219 + $0x20] sm:$0x77]
      %v2936 = vld [vmem:[%s219 + $0x28] sm:$0x7]
      %2943 = vst [vmem:[#allocation1] ss:$2 sm:$0xff] %v2931
      %s2944 = scalar_lea.vmem [#allocation1], 16
      %2945 = vst [vmem:[%s2944] ss:$2 sm:$0xff] %v2932
      %s2946 = scalar_lea.vmem [#allocation1], 32
      %2947 = vst [vmem:[%s2946] ss:$2 sm:$0xff] %v2933
      %s2948 = scalar_lea.vmem [#allocation1], 48
      %2949 = vst [vmem:[%s2948] ss:$2 sm:$0xff] %v2934
      %v2950 = vld.sshfl [vmem:[#allocation1] sm:$0xff pattern:$0x75316420]
      %v2951 = vld.sshfl [vmem:[#allocation1 + $0x8] sm:$0xff pattern:$0x75316420]
      %v2952 = vld.sshfl [vmem:[#allocation1 + $0x10] sm:$0xff pattern:$0x75316420]
      %v2953 = vld.sshfl [vmem:[#allocation1 + $0x18] sm:$0xff pattern:$0x75316420]
      %v2954 = vld.sshfl [vmem:[#allocation1 + $0x20] sm:$0xff pattern:$0x75316420]
      %v2955 = vld.sshfl [vmem:[#allocation1 + $0x28] sm:$0xff pattern:$0x75316420]
      %v2956 = vld.sshfl [vmem:[#allocation1 + $0x30] sm:$0xff pattern:$0x75316420]
      %v2957 = vld.sshfl [vmem:[#allocation1 + $0x38] sm:$0xff pattern:$0x75316420]
      %2958 = vst [vmem:[#allocation1] ss:$2 sm:$0xff] %v2935
      %2959 = vst [vmem:[%s2944] ss:$2 sm:$0xff] %v2936
      %v2960 = vld.sshfl [vmem:[#allocation1] sm:$0xff pattern:$0x75316420]
      %v2961 = vld.sshfl [vmem:[#allocation1 + $0x8] sm:$0xff pattern:$0x75316420]
      %v2962 = vld.sshfl [vmem:[#allocation1 + $0x10] sm:$0xff pattern:$0x75316420]
      %2963 = vrot.lane.b32.xlu0 %v2950, 60
      %v2964 = vpop.permute.xlu0 %2963
      %2965 = vrot.lane.b32.xlu0 %v2951, 60
      %v2966 = vpop.permute.xlu0 %2965
      %2967 = vrot.lane.b32.xlu0 %v2952, 60
      %v2968 = vpop.permute.xlu0 %2967
      %2969 = vrot.lane.b32.xlu0 %v2953, 60
      %v2970 = vpop.permute.xlu0 %2969
      %2971 = vrot.lane.b32.xlu0 %v2954, 60
      %v2972 = vpop.permute.xlu0 %2971
      %2973 = vrot.lane.b32.xlu0 %v2955, 60
      %v2974 = vpop.permute.xlu0 %2973
      %2975 = vrot.lane.b32.xlu0 %v2956, 60
      %v2976 = vpop.permute.xlu0 %2975
      %2977 = vrot.lane.b32.xlu0 %v2957, 60
      %v2978 = vpop.permute.xlu0 %2977
      %2979 = vrot.lane.b32.xlu0 %v2960, 60
      %v2980 = vpop.permute.xlu0 %2979
      %2981 = vrot.lane.b32.xlu0 %v2961, 60
      %v2982 = vpop.permute.xlu0 %2981
      %2983 = vrot.lane.b32.xlu0 %v2962, 60
      %v2984 = vpop.permute.xlu0 %2983
      %vm2985 = vcmask 490496
      %v2986 = vsel %vm2985, %v2964, %v2966
      %v2987 = vsel %vm2985, %v2966, %v2968
      %v2988 = vsel %vm2985, %v2968, %v2970
      %v2989 = vsel %vm2985, %v2970, %v2972
      %v2990 = vsel %vm2985, %v2972, %v2974
      %v2991 = vsel %vm2985, %v2974, %v2976
      %v2992 = vsel %vm2985, %v2976, %v2978
      %v2993 = vsel %vm2985, %v2978, %v2980
      %v2994 = vsel %vm2985, %v2980, %v2982
      %v2995 = vsel %vm2985, %v2982, %v2984
      %v3006 = vadd.f32 %v2694, %v2986
      %v3007 = vadd.f32 %v2720, %v2987
      %v3008 = vadd.f32 %v2746, %v2988
      %v3009 = vadd.f32 %v2772, %v2989
      %v3010 = vadd.f32 %v2798, %v2990
      %v3011 = vadd.f32 %v2824, %v2991
      %v3012 = vadd.f32 %v2850, %v2992
      %v3013 = vadd.f32 %v2876, %v2993
      %v3014 = vadd.f32 %v2902, %v2994
      %v3015 = vadd.f32 %v2928, %v2995
      %v3016 = vsel %vm587, 1, 0
      %v3017 = vsel %vm588, 1, 0
      %v3018 = vsel %vm589, 1, 0
      %v3019 = vsel %vm590, 1, 0
      %v3020 = vsel %vm591, 1, 0
      %v3021 = vsel %vm592, 1, 0
      %v3022 = vsel %vm593, 1, 0
      %v3023 = vsel %vm594, 1, 0
      %v3024 = vsel %vm595, 1, 0
      %v3025 = vsel %vm596, 1, 0
      %vm3026 = vcmp.eq.s32.totalorder %v3016, 1
      %vm3027 = vcmp.eq.s32.totalorder %v3017, 1
      %vm3028 = vcmp.eq.s32.totalorder %v3018, 1
      %vm3029 = vcmp.eq.s32.totalorder %v3019, 1
      %vm3030 = vcmp.eq.s32.totalorder %v3020, 1
      %vm3031 = vcmp.eq.s32.totalorder %v3021, 1
      %vm3032 = vcmp.eq.s32.totalorder %v3022, 1
      %vm3033 = vcmp.eq.s32.totalorder %v3023, 1
      %vm3034 = vcmp.eq.s32.totalorder %v3024, 1
      %vm3035 = vcmp.eq.s32.totalorder %v3025, 1
      %v3036 = vsel %vm3026, %v3006, 0.0
      %v3037 = vsel %vm3027, %v3007, 0.0
      %v3038 = vsel %vm3028, %v3008, 0.0
      %v3039 = vsel %vm3029, %v3009, 0.0
      %v3040 = vsel %vm3030, %v3010, 0.0
      %v3041 = vsel %vm3031, %v3011, 0.0
      %v3042 = vsel %vm3032, %v3012, 0.0
      %v3043 = vsel %vm3033, %v3013, 0.0
      %v3044 = vsel %vm3034, %v3014, 0.0
      %v3045 = vsel %vm3035, %v3015, 0.0
      %v3056 = vrot.slane %v3037, 4
      %v3057 = vrot.slane %v3039, 4
      %v3058 = vrot.slane %v3041, 4
      %v3059 = vrot.slane %v3043, 4
      %v3060 = vrot.slane %v3045, 4
      %vm3061 = vcmask 1043456
      %v3062 = vsel %vm3061, %v3036, %v3056
      %v3063 = vsel %vm3061, %v3038, %v3057
      %v3064 = vsel %vm3061, %v3040, %v3058
      %v3065 = vsel %vm3061, %v3042, %v3059
      %v3066 = vsel %vm3061, %v3044, %v3060
      %3072 = vst [vmem:[%s224] sm:$0x77] %v3062
      %3073 = vst [vmem:[%s224 + $0x8] sm:$0x77] %v3063
      %3074 = vst [vmem:[%s224 + $0x10] sm:$0x77] %v3064
      %3075 = vst [vmem:[%s224 + $0x18] sm:$0x77] %v3065
      %vm3076 = vcmask 1042432
      %vm3077 = vcmask 30724
      %vm3078 = vmor %vm3077, %vm3076
      %3079 = vst.msk [vmem:[%s224 + $0x20] sm:$0x77] %vm3078, %v3066
      %p3080 = scmp.lt.s32.totalorder %s16, 1
      %s3081 = scalar_select %p3080, %s16, 1
      %s3082 = smul.addr %s3081, 10
      %s3083 = smul.addr %s3082, 4
      %s3084 = scalar_lea.vmem %s5, %s3083
      // Predicated region
      $region48: #{vdsr_forward.3} parent=39 // pred_check
        %p3085 = pneg %p144
      $region49: #{vdsr_forward.3} parent=39 // pred_check_branch
        %3087 = sbr.rel (%p3085) target = $region51
      $region50: #{vdsr_forward.3} parent=39 // pred_region
        _
      $region51: #{vdsr_forward.3} parent=39 // pred_fallthru
        _
    $region40: #{vdsr_forward.3} parent=5 // pred_fallthru
      _
    %p3088 = scmp.le.s32.totalorder 2, %s11
    // Predicated region
    $region52: #{vdsr_forward.3} parent=5 // pred_check
      %p3089 = pneg %p3088
    $region53: #{vdsr_forward.3} parent=5 // pred_check_branch
      %3091 = sbr.rel (%p3089) target = $region55
    $region54: #{vdsr_forward.3} parent=5 // pred_region
      %s3092 = ssub.s32 %s11, 2
      // Predicated region
      $region56: #{vdsr_forward.3} parent=54 // pred_check
        %p3093 = pneg %p150
      $region57: #{vdsr_forward.3} parent=54 // pred_check_branch
        %3095 = sbr.rel (%p3093) target = $region59
      $region58: #{vdsr_forward.3} parent=54 // pred_region
        %p3096 = scmp.lt.s32.totalorder %s17, 1
        %s3097 = scalar_select %p3096, %s17, 1
        %s3098 = smul.addr %s3097, 10
        %s3099 = smul.addr %s3098, 4
        %s3100 = scalar_lea.vmem %s5, %s3099
      $region59: #{vdsr_forward.3} parent=54 // pred_fallthru
        _
    $region55: #{vdsr_forward.3} parent=5 // pred_fallthru
      _
  $region6: #{vdsr_forward.3} parent=0 // loop_footer
    %s15 = sadd.s32 1, %s11
  $region7: #{vdsr_forward.3} parent=0 // loop_footer_branch
    %10 = sbr.rel target = $region3
  $region8: #{vdsr_forward.3} parent=0 // loop_exit
    _

</llo_original>
